<compile_context>
chip_gen: v5e
topology: v5e:2x2
jax: 0.10.0
libtpu: 0.0.40
codegen_flags: <defaults>
</compile_context>

<pallas_src>
import functools

import jax
import jax.numpy as jnp
from jax.experimental import pallas as pl
from jax.experimental.pallas import tpu as pltpu


# Flip to jnp.bfloat16 to halve matmul-operand VMEM traffic and double MXU throughput
# on v6e/v7x (accumulation stays f32); kept f32 here for exact validation.
_MM_DTYPE = jnp.float32


# ---------------------------------------------------------------------------
# Small helpers (sizes / layout plumbing).
# ---------------------------------------------------------------------------
def _round_up(a, m):
    return ((a + m - 1) // m) * m


def _block_bytes(shape, itemsize=4):
    """VMEM bytes for one buffer, with Mosaic (8, 128) minor-dim padding."""
    lead = 1
    for d in shape[:-2]:
        lead *= int(d)
    return lead * _round_up(int(shape[-2]), 8) * _round_up(int(shape[-1]), 128) * itemsize


def _vmem_limit(op_blocks, transient_blocks):
    est = 2 * sum(_block_bytes(s) for s in op_blocks)        # double-buffered windows
    est += sum(_block_bytes(s) for s in transient_blocks)    # in-kernel live values / spill
    # 32 MiB floor (default scoped VMEM); 96 MiB cap suits v5e/v6e (128 MiB physical).
    # TODO(synk): cap nearer 48 MiB when specifically targeting v7x (64 MiB physical).
    return int(min(96 * 2 ** 20, max(32 * 2 ** 20, 2 * est)))


def _pack_w(w, cin_pad):
    """PyTorch OIHW (C_out, C_in, 3, 3) -> (C_out, 9*cin_pad) matmul weight.

    Column index is (dy*3 + dx) * cin_pad + ci, matching the in-kernel patch order.
    Extra input channels (cin_pad > C_in) are zero (used to pad n_colors=3 -> 8)."""
    co, ci = w.shape[0], w.shape[1]
    wt = jnp.transpose(w, (2, 3, 1, 0))                     # (dy, dx, ci, co)
    if cin_pad > ci:
        wt = jnp.pad(wt, ((0, 0), (0, 0), (0, cin_pad - ci), (0, 0)))
    return wt.reshape(9 * cin_pad, co).T.astype(jnp.float32)


def _to_flat(x_nchw, cin_pad=None):
    """NCHW -> (N, C_pad, S) padded-flat slab (1-pixel zero border, lane-padded)."""
    N, C, H, W = x_nchw.shape
    Hp, Wp = H + 2, W + 2
    S = _round_up(Hp * Wp, 128)
    cp = C if cin_pad is None else cin_pad
    xp = jnp.pad(x_nchw, ((0, 0), (0, cp - C), (1, 1), (1, 1)))
    xf = xp.reshape(N, cp, Hp * Wp)
    if S > Hp * Wp:
        xf = jnp.pad(xf, ((0, 0), (0, 0), (0, S - Hp * Wp)))
    return xf


def _from_flat(xf, c_keep, H, W):
    """(N, C, S) padded-flat slab -> NCHW interior."""
    N = xf.shape[0]
    Hp, Wp = H + 2, W + 2
    x = xf[:, :c_keep, :Hp * Wp].reshape(N, c_keep, Hp, Wp)
    return x[:, :, 1:H + 1, 1:W + 1]


def _interior_mask(H, W):
    """(1, S) f32 mask: 1 on interior pixels, 0 on the padding ring / lane tail."""
    Hp, Wp = H + 2, W + 2
    S = _round_up(Hp * Wp, 128)
    m = jnp.zeros((Hp, Wp), jnp.float32).at[1:H + 1, 1:W + 1].set(1.0)
    m = m.reshape(1, Hp * Wp)
    return jnp.pad(m, ((0, 0), (0, S - Hp * Wp)))


def _pixel_shuffle_nchw(x, r):
    N, C4, H, W = x.shape
    C = C4 // (r * r)
    x = x.reshape(N, C, r, r, H, W)
    x = jnp.transpose(x, (0, 1, 4, 2, 5, 3))
    return x.reshape(N, C, H * r, W * r)


# ---------------------------------------------------------------------------
# In-kernel fused 3x3 conv on a lane-dense padded-flat slab.
#   src  : (C_in, S)   value   (padding ring zeroed)
#   w2   : (C_out, 9*C_in)     (packed by _pack_w)
#   bias : (C_out, 1)
#   mask : (1, S) interior mask
# Returns (C_out, S) with the padding ring re-zeroed.
# ---------------------------------------------------------------------------
def _conv3x3_flat(src, w2, bias, mask, Wp, *, relu=False):
    C_in, S = src.shape
    pad = _round_up(Wp + 2, 128)                           # lane-aligned guard band
    z = jnp.zeros((C_in, pad), src.dtype)
    ext = jnp.concatenate([z, src, z], axis=1)             # aligned lane concat
    taps = []
    for dy in range(3):
        for dx in range(3):
            delta = (dy - 1) * Wp + (dx - 1)
            taps.append(ext[:, pad + delta: pad + delta + S])
    patches = jnp.concatenate(taps, axis=0)                # (9*C_in, S), sublane concat
    acc = jnp.dot(w2.astype(_MM_DTYPE), patches.astype(_MM_DTYPE),
                  preferred_element_type=jnp.float32)      # single K = 9*C_in MXU pass
    acc = acc + bias
    if relu:
        acc = jnp.maximum(acc, 0.0)
    return acc * mask


# ---------------------------------------------------------------------------
# Fused head + ResBlock chain + body-final conv + global skip: ONE pallas_call.
# Activations stay in VMEM/vregs for the whole chain; weights are resident operands.
# ---------------------------------------------------------------------------
def edsr_body_pallas(x_flat, mask, w_head, b_head, w_body, b_body, w_last, b_last,
                     *, H, W, res_scale):
    N, cin_p, S = x_flat.shape
    C = w_head.shape[0]
    Wp = W + 2
    n_convs = w_body.shape[0]          # == 2 * n_resblocks

    def kernel(m_ref, x_ref, wh_ref, bh_ref, wb_ref, bb_ref, wl_ref, bl_ref, o_ref):
        m = m_ref[...]
        h = _conv3x3_flat(x_ref[0], wh_ref[...], bh_ref[...], m, Wp)       # head
        y = h
        for i in range(0, n_convs, 2):                                     # ResBlocks
            t = _conv3x3_flat(y, wb_ref[i], bb_ref[i], m, Wp, relu=True)
            r = _conv3x3_flat(t, wb_ref[i + 1], bb_ref[i + 1], m, Wp)
            if res_scale != 1.0:
                r = r * res_scale
            y = r + y
        y = _conv3x3_flat(y, wl_ref[...], bl_ref[...], m, Wp) + h          # final conv + skip
        o_ref[0] = y.astype(o_ref.dtype)

    op_blocks = [(1, S), (1, cin_p, S), w_head.shape, b_head.shape,
                 w_body.shape, b_body.shape, w_last.shape, b_last.shape, (1, C, S)]
    transient = [(9 * max(C, cin_p), S), (max(C, cin_p), S + 512),
                 (C, S), (C, S), (C, S), (C, S), (C, S), (C, S)]

    return pl.pallas_call(
        kernel,
        out_shape=jax.ShapeDtypeStruct((N, C, S), jnp.float32),
        grid=(N,),
        in_specs=[
            pl.BlockSpec((1, S), lambda n: (0, 0)),               # mask   (resident)
            pl.BlockSpec((1, cin_p, S), lambda n: (n, 0, 0)),     # input  (per-batch)
            pl.BlockSpec(w_head.shape, lambda n: (0, 0)),         # weights (resident)
            pl.BlockSpec(b_head.shape, lambda n: (0, 0)),
            pl.BlockSpec(w_body.shape, lambda n: (0, 0, 0)),
            pl.BlockSpec(b_body.shape, lambda n: (0, 0, 0)),
            pl.BlockSpec(w_last.shape, lambda n: (0, 0)),
            pl.BlockSpec(b_last.shape, lambda n: (0, 0)),
        ],
        out_specs=pl.BlockSpec((1, C, S), lambda n: (n, 0, 0)),
        compiler_params=pltpu.CompilerParams(
            dimension_semantics=("parallel",),
            vmem_limit_bytes=_vmem_limit(op_blocks, transient)),
    )(mask, x_flat, w_head, b_head, w_body, b_body, w_last, b_last)


# ---------------------------------------------------------------------------
# Single fused 3x3 conv (same flat layout) — used for the upsampling tail.
# ---------------------------------------------------------------------------
def conv3x3_flat_pallas(x_flat, mask, w2, b2, *, H, W, relu=False):
    N, cin, S = x_flat.shape
    cout = w2.shape[0]
    Wp = W + 2

    def kernel(m_ref, x_ref, w_ref, b_ref, o_ref):
        o_ref[0] = _conv3x3_flat(x_ref[0], w_ref[...], b_ref[...], m_ref[...],
                                 Wp, relu=relu).astype(o_ref.dtype)

    op_blocks = [(1, S), (1, cin, S), w2.shape, b2.shape, (1, cout, S)]
    transient = [(9 * cin, S), (cin, S + 512), (cout, S), (cout, S)]

    return pl.pallas_call(
        kernel,
        out_shape=jax.ShapeDtypeStruct((N, cout, S), jnp.float32),
        grid=(N,),
        in_specs=[
            pl.BlockSpec((1, S), lambda n: (0, 0)),
            pl.BlockSpec((1, cin, S), lambda n: (n, 0, 0)),
            pl.BlockSpec(w2.shape, lambda n: (0, 0)),
            pl.BlockSpec(b2.shape, lambda n: (0, 0)),
        ],
        out_specs=pl.BlockSpec((1, cout, S), lambda n: (n, 0, 0)),
        compiler_params=pltpu.CompilerParams(
            dimension_semantics=("parallel",),
            vmem_limit_bytes=_vmem_limit(op_blocks, transient)),
    )(mask, x_flat, w2, b2)


# ---------------------------------------------------------------------------
# EDSR forward built from the Pallas kernels (NCHW in / NCHW out).
# ---------------------------------------------------------------------------
def edsr_forward(x_nchw, params, *, res_scale=1.0, no_upsampling=False):
    N, n_colors, H, W = x_nchw.shape
    wh, bh = params["head"]
    C = wh.shape[0]
    cin_p = max(8, _round_up(n_colors, 8))

    # Pack all conv weights into (C_out, 9*C_in) matmul form (one-time layout plumbing).
    w_head = _pack_w(wh, cin_p)
    b_head = bh.reshape(-1, 1).astype(jnp.float32)
    wb, bb = [], []
    for (w1, b1, w2, b2) in params["body_blocks"]:
        wb += [_pack_w(w1, C), _pack_w(w2, C)]
        bb += [b1.reshape(-1, 1), b2.reshape(-1, 1)]
    w_body = jnp.stack(wb)
    b_body = jnp.stack(bb).astype(jnp.float32)
    w_last = _pack_w(params["body_tail"][0], C)
    b_last = params["body_tail"][1].reshape(-1, 1).astype(jnp.float32)

    mask = _interior_mask(H, W)
    x_flat = _to_flat(x_nchw.astype(jnp.float32), cin_pad=cin_p)

    # head + body + global skip: one fused kernel, activations VMEM-resident.
    y_flat = edsr_body_pallas(x_flat, mask, w_head, b_head, w_body, b_body,
                              w_last, b_last, H=H, W=W, res_scale=res_scale)
    if no_upsampling:
        return _from_flat(y_flat, C, H, W)

    # tail: conv (C -> 4C), PixelShuffle(2), conv (C -> n_colors); scale = 2.
    w_up = _pack_w(params["up"][0], C)
    b_up = params["up"][1].reshape(-1, 1).astype(jnp.float32)
    u_flat = conv3x3_flat_pallas(y_flat, mask, w_up, b_up, H=H, W=W)
    u = _from_flat(u_flat, 4 * C, H, W)
    u = _pixel_shuffle_nchw(u, 2)
    # TODO(synk): fold PixelShuffle into the up-conv out_spec to skip this HBM round trip.
    H2, W2 = 2 * H, 2 * W
    mask2 = _interior_mask(H2, W2)
    u_flat2 = _to_flat(u)
    w_tail = _pack_w(params["tail"][0], C)
    b_tail = params["tail"][1].reshape(-1, 1).astype(jnp.float32)
    o_flat = conv3x3_flat_pallas(u_flat2, mask2, w_tail, b_tail, H=H2, W=W2)
    return _from_flat(o_flat, n_colors, H2, W2)


# ---------------------------------------------------------------------------
# Plain-JAX reference (mirrors the PyTorch module, NCHW, HIGHEST precision).
# ---------------------------------------------------------------------------
def _conv_ref(x, w, b):
    y = jax.lax.conv_general_dilated(
        x, w, window_strides=(1, 1), padding="SAME",
        dimension_numbers=("NCHW", "OIHW", "NCHW"),
        precision=jax.lax.Precision.HIGHEST)
    return y + b.reshape(1, -1, 1, 1)


def edsr_reference(x, params, *, res_scale=1.0, no_upsampling=False):
    h = _conv_ref(x, *params["head"])
    y = h
    for (w1, b1, w2, b2) in params["body_blocks"]:
        t = jnp.maximum(_conv_ref(y, w1, b1), 0.0)
        y = _conv_ref(t, w2, b2) * res_scale + y
    y = _conv_ref(y, *params["body_tail"]) + h
    if not no_upsampling:
        t = _conv_ref(y, *params["up"])
        t = _pixel_shuffle_nchw(t, 2)
        y = _conv_ref(t, *params["tail"])
    return y


if __name__ == "__main__":
    # Small EDSR config: batch=2, n_colors=3, n_feats=32, n_resblocks=2, scale=2, 16x16 input.
    N, n_colors, n_feats, n_resblocks = 2, 3, 32, 2
    H = W = 16
    res_scale = 1.0

    key = jax.random.PRNGKey(0)

    def conv_params(k, c_out, c_in, std=0.05):
        kw, kb = jax.random.split(k)
        wgt = jax.random.normal(kw, (c_out, c_in, 3, 3), jnp.float32) * std
        bia = jax.random.normal(kb, (c_out,), jnp.float32) * std
        return wgt, bia

    keys = jax.random.split(key, 2 + 2 * n_resblocks + 3)
    x = jax.random.normal(keys[0], (N, n_colors, H, W), jnp.float32)
    head = conv_params(keys[1], n_feats, n_colors)
    body_blocks = []
    for i in range(n_resblocks):
        w1, b1 = conv_params(keys[2 + 2 * i], n_feats, n_feats)
        w2, b2 = conv_params(keys[3 + 2 * i], n_feats, n_feats)
        body_blocks.append((w1, b1, w2, b2))
    body_tail = conv_params(keys[2 + 2 * n_resblocks], n_feats, n_feats)
    up = conv_params(keys[3 + 2 * n_resblocks], 4 * n_feats, n_feats)
    tail = conv_params(keys[4 + 2 * n_resblocks], n_colors, n_feats)
    params = dict(head=head, body_blocks=body_blocks,
                  body_tail=body_tail, up=up, tail=tail)

    # Encoder configuration (args.no_upsampling=True, out_dim = n_feats).
    fwd_feat = jax.jit(functools.partial(edsr_forward,
                                         res_scale=res_scale, no_upsampling=True))
    out_feat = jax.block_until_ready(fwd_feat(x, params))
    ref_feat = edsr_reference(x, params, res_scale=res_scale, no_upsampling=True)
    assert out_feat.shape == (N, n_feats, H, W)
    assert jnp.allclose(out_feat, ref_feat, atol=3e-3, rtol=3e-3), "feature-path mismatch"

    # Full EDSR with x2 upsampling tail (out_dim = n_colors).
    fwd_full = jax.jit(functools.partial(edsr_forward,
                                         res_scale=res_scale, no_upsampling=False))
    out_full = jax.block_until_ready(fwd_full(x, params))
    ref_full = edsr_reference(x, params, res_scale=res_scale, no_upsampling=False)
    assert out_full.shape == (N, n_colors, 2 * H, 2 * W)
    assert jnp.allclose(out_full, ref_full, atol=3e-3, rtol=3e-3), "tail-path mismatch"

    print("KERNEL_OK")
</pallas_src>

<mosaic_0001>
module attributes {stable_mosaic.version = 11 : i64} {
  func.func @kernel(%arg0: i32, %arg1: memref<1x384xf32, #tpu.memory_space<vmem>>, %arg2: memref<1x8x384xf32, #tpu.memory_space<vmem>>, %arg3: memref<32x72xf32, #tpu.memory_space<vmem>>, %arg4: memref<32x1xf32, #tpu.memory_space<vmem>>, %arg5: memref<4x32x288xf32, #tpu.memory_space<vmem>>, %arg6: memref<4x32x1xf32, #tpu.memory_space<vmem>>, %arg7: memref<32x288xf32, #tpu.memory_space<vmem>>, %arg8: memref<32x1xf32, #tpu.memory_space<vmem>>, %arg9: memref<1x32x384xf32, #tpu.memory_space<vmem>>) attributes {dimension_semantics = [#tpu.dimension_semantics<parallel>], iteration_bounds = array<i64: 2>, scalar_prefetch = 0 : i64, scratch_operands = 0 : i64, tpu.core_type = #tpu.core_type<tc>, window_params = [{pipeline_mode = #tpu.pipeline_mode<synchronous>, transform_indices = @transform_0, window_bounds = array<i64: 1, 384>}, {transform_indices = @transform_1, window_bounds = array<i64: 1, 8, 384>}, {pipeline_mode = #tpu.pipeline_mode<synchronous>, transform_indices = @transform_2, window_bounds = array<i64: 32, 72>}, {pipeline_mode = #tpu.pipeline_mode<synchronous>, transform_indices = @transform_3, window_bounds = array<i64: 32, 1>}, {pipeline_mode = #tpu.pipeline_mode<synchronous>, transform_indices = @transform_4, window_bounds = array<i64: 4, 32, 288>}, {pipeline_mode = #tpu.pipeline_mode<synchronous>, transform_indices = @transform_5, window_bounds = array<i64: 4, 32, 1>}, {pipeline_mode = #tpu.pipeline_mode<synchronous>, transform_indices = @transform_6, window_bounds = array<i64: 32, 288>}, {pipeline_mode = #tpu.pipeline_mode<synchronous>, transform_indices = @transform_7, window_bounds = array<i64: 32, 1>}, {transform_indices = @transform_8, window_bounds = array<i64: 1, 32, 384>}]} {
    %c0 = arith.constant 0 : index
    %c0_0 = arith.constant 0 : index
    %0 = vector.load %arg1[%c0, %c0_0] : memref<1x384xf32, #tpu.memory_space<vmem>>, vector<1x384xf32>
    %c0_1 = arith.constant 0 : index
    %c0_2 = arith.constant 0 : index
    %c0_3 = arith.constant 0 : index
    %1 = vector.load %arg2[%c0_1, %c0_2, %c0_3] : memref<1x8x384xf32, #tpu.memory_space<vmem>>, vector<1x8x384xf32>
    %2 = vector.shape_cast %1 : vector<1x8x384xf32> to vector<8x384xf32>
    %c0_4 = arith.constant 0 : index
    %c0_5 = arith.constant 0 : index
    %3 = vector.load %arg3[%c0_4, %c0_5] : memref<32x72xf32, #tpu.memory_space<vmem>>, vector<32x72xf32>
    %c0_6 = arith.constant 0 : index
    %c0_7 = arith.constant 0 : index
    %4 = vector.load %arg4[%c0_6, %c0_7] : memref<32x1xf32, #tpu.memory_space<vmem>>, vector<32x1xf32>
    %cst = arith.constant 0.000000e+00 : f32
    %5 = vector.broadcast %cst : f32 to vector<8x128xf32>
    %6 = tpu.concatenate %5, %2, %5 in 1 : vector<8x128xf32>, vector<8x384xf32>, vector<8x128xf32> -> vector<8x640xf32>
    %7 = vector.extract_strided_slice %6 {offsets = [0, 109], sizes = [8, 384], strides = [1, 1]} : vector<8x640xf32> to vector<8x384xf32>
    %8 = vector.extract_strided_slice %6 {offsets = [0, 110], sizes = [8, 384], strides = [1, 1]} : vector<8x640xf32> to vector<8x384xf32>
    %9 = vector.extract_strided_slice %6 {offsets = [0, 111], sizes = [8, 384], strides = [1, 1]} : vector<8x640xf32> to vector<8x384xf32>
    %10 = vector.extract_strided_slice %6 {offsets = [0, 127], sizes = [8, 384], strides = [1, 1]} : vector<8x640xf32> to vector<8x384xf32>
    %11 = vector.extract_strided_slice %6 {offsets = [0, 128], sizes = [8, 384], strides = [1, 1]} : vector<8x640xf32> to vector<8x384xf32>
    %12 = vector.extract_strided_slice %6 {offsets = [0, 129], sizes = [8, 384], strides = [1, 1]} : vector<8x640xf32> to vector<8x384xf32>
    %13 = vector.extract_strided_slice %6 {offsets = [0, 145], sizes = [8, 384], strides = [1, 1]} : vector<8x640xf32> to vector<8x384xf32>
    %14 = vector.extract_strided_slice %6 {offsets = [0, 146], sizes = [8, 384], strides = [1, 1]} : vector<8x640xf32> to vector<8x384xf32>
    %15 = vector.extract_strided_slice %6 {offsets = [0, 147], sizes = [8, 384], strides = [1, 1]} : vector<8x640xf32> to vector<8x384xf32>
    %16 = tpu.concatenate %7, %8, %9, %10, %11, %12, %13, %14, %15 in 0 : vector<8x384xf32>, vector<8x384xf32>, vector<8x384xf32>, vector<8x384xf32>, vector<8x384xf32>, vector<8x384xf32>, vector<8x384xf32>, vector<8x384xf32>, vector<8x384xf32> -> vector<72x384xf32>
    %cst_8 = arith.constant dense<0.000000e+00> : vector<32x384xf32>
    %17 = tpu.matmul %3, %16, %cst_8 {dimension_numbers = #tpu.dot_dimension_numbers<[1], [0], [0], [1], [0, 0, 1, 1], [], []>} : vector<32x72xf32>, vector<72x384xf32>, vector<32x384xf32> -> vector<32x384xf32>
    %18 = vector.broadcast %4 : vector<32x1xf32> to vector<32x384xf32>
    %19 = arith.addf %17, %18 : vector<32x384xf32>
    %20 = vector.broadcast %0 : vector<1x384xf32> to vector<32x384xf32>
    %21 = arith.mulf %19, %20 : vector<32x384xf32>
    %c0_9 = arith.constant 0 : index
    %c0_10 = arith.constant 0 : index
    %c0_11 = arith.constant 0 : index
    %22 = vector.load %arg5[%c0_9, %c0_10, %c0_11] : memref<4x32x288xf32, #tpu.memory_space<vmem>>, vector<1x32x288xf32>
    %23 = vector.shape_cast %22 : vector<1x32x288xf32> to vector<32x288xf32>
    %c0_12 = arith.constant 0 : index
    %c0_13 = arith.constant 0 : index
    %c0_14 = arith.constant 0 : index
    %24 = vector.load %arg6[%c0_12, %c0_13, %c0_14] : memref<4x32x1xf32, #tpu.memory_space<vmem>>, vector<1x32x1xf32>
    %25 = vector.shape_cast %24 : vector<1x32x1xf32> to vector<32x1xf32>
    %cst_15 = arith.constant 0.000000e+00 : f32
    %26 = vector.broadcast %cst_15 : f32 to vector<32x128xf32>
    %27 = tpu.concatenate %26, %21, %26 in 1 : vector<32x128xf32>, vector<32x384xf32>, vector<32x128xf32> -> vector<32x640xf32>
    %28 = vector.extract_strided_slice %27 {offsets = [0, 109], sizes = [32, 384], strides = [1, 1]} : vector<32x640xf32> to vector<32x384xf32>
    %29 = vector.extract_strided_slice %27 {offsets = [0, 110], sizes = [32, 384], strides = [1, 1]} : vector<32x640xf32> to vector<32x384xf32>
    %30 = vector.extract_strided_slice %27 {offsets = [0, 111], sizes = [32, 384], strides = [1, 1]} : vector<32x640xf32> to vector<32x384xf32>
    %31 = vector.extract_strided_slice %27 {offsets = [0, 127], sizes = [32, 384], strides = [1, 1]} : vector<32x640xf32> to vector<32x384xf32>
    %32 = vector.extract_strided_slice %27 {offsets = [0, 128], sizes = [32, 384], strides = [1, 1]} : vector<32x640xf32> to vector<32x384xf32>
    %33 = vector.extract_strided_slice %27 {offsets = [0, 129], sizes = [32, 384], strides = [1, 1]} : vector<32x640xf32> to vector<32x384xf32>
    %34 = vector.extract_strided_slice %27 {offsets = [0, 145], sizes = [32, 384], strides = [1, 1]} : vector<32x640xf32> to vector<32x384xf32>
    %35 = vector.extract_strided_slice %27 {offsets = [0, 146], sizes = [32, 384], strides = [1, 1]} : vector<32x640xf32> to vector<32x384xf32>
    %36 = vector.extract_strided_slice %27 {offsets = [0, 147], sizes = [32, 384], strides = [1, 1]} : vector<32x640xf32> to vector<32x384xf32>
    %37 = tpu.concatenate %28, %29, %30, %31, %32, %33, %34, %35, %36 in 0 : vector<32x384xf32>, vector<32x384xf32>, vector<32x384xf32>, vector<32x384xf32>, vector<32x384xf32>, vector<32x384xf32>, vector<32x384xf32>, vector<32x384xf32>, vector<32x384xf32> -> vector<288x384xf32>
    %cst_16 = arith.constant dense<0.000000e+00> : vector<32x384xf32>
    %38 = tpu.matmul %23, %37, %cst_16 {dimension_numbers = #tpu.dot_dimension_numbers<[1], [0], [0], [1], [0, 0, 1, 1], [], []>} : vector<32x288xf32>, vector<288x384xf32>, vector<32x384xf32> -> vector<32x384xf32>
    %39 = vector.broadcast %25 : vector<32x1xf32> to vector<32x384xf32>
    %40 = arith.addf %38, %39 : vector<32x384xf32>
    %cst_17 = arith.constant 0.000000e+00 : f32
    %41 = vector.broadcast %cst_17 : f32 to vector<32x384xf32>
    %42 = arith.maximumf %40, %41 : vector<32x384xf32>
    %43 = vector.broadcast %0 : vector<1x384xf32> to vector<32x384xf32>
    %44 = arith.mulf %42, %43 : vector<32x384xf32>
    %c1 = arith.constant 1 : index
    %c0_18 = arith.constant 0 : index
    %c0_19 = arith.constant 0 : index
    %45 = vector.load %arg5[%c1, %c0_18, %c0_19] : memref<4x32x288xf32, #tpu.memory_space<vmem>>, vector<1x32x288xf32>
    %46 = vector.shape_cast %45 : vector<1x32x288xf32> to vector<32x288xf32>
    %c1_20 = arith.constant 1 : index
    %c0_21 = arith.constant 0 : index
    %c0_22 = arith.constant 0 : index
    %47 = vector.load %arg6[%c1_20, %c0_21, %c0_22] : memref<4x32x1xf32, #tpu.memory_space<vmem>>, vector<1x32x1xf32>
    %48 = vector.shape_cast %47 : vector<1x32x1xf32> to vector<32x1xf32>
    %cst_23 = arith.constant 0.000000e+00 : f32
    %49 = vector.broadcast %cst_23 : f32 to vector<32x128xf32>
    %50 = tpu.concatenate %49, %44, %49 in 1 : vector<32x128xf32>, vector<32x384xf32>, vector<32x128xf32> -> vector<32x640xf32>
    %51 = vector.extract_strided_slice %50 {offsets = [0, 109], sizes = [32, 384], strides = [1, 1]} : vector<32x640xf32> to vector<32x384xf32>
    %52 = vector.extract_strided_slice %50 {offsets = [0, 110], sizes = [32, 384], strides = [1, 1]} : vector<32x640xf32> to vector<32x384xf32>
    %53 = vector.extract_strided_slice %50 {offsets = [0, 111], sizes = [32, 384], strides = [1, 1]} : vector<32x640xf32> to vector<32x384xf32>
    %54 = vector.extract_strided_slice %50 {offsets = [0, 127], sizes = [32, 384], strides = [1, 1]} : vector<32x640xf32> to vector<32x384xf32>
    %55 = vector.extract_strided_slice %50 {offsets = [0, 128], sizes = [32, 384], strides = [1, 1]} : vector<32x640xf32> to vector<32x384xf32>
    %56 = vector.extract_strided_slice %50 {offsets = [0, 129], sizes = [32, 384], strides = [1, 1]} : vector<32x640xf32> to vector<32x384xf32>
    %57 = vector.extract_strided_slice %50 {offsets = [0, 145], sizes = [32, 384], strides = [1, 1]} : vector<32x640xf32> to vector<32x384xf32>
    %58 = vector.extract_strided_slice %50 {offsets = [0, 146], sizes = [32, 384], strides = [1, 1]} : vector<32x640xf32> to vector<32x384xf32>
    %59 = vector.extract_strided_slice %50 {offsets = [0, 147], sizes = [32, 384], strides = [1, 1]} : vector<32x640xf32> to vector<32x384xf32>
    %60 = tpu.concatenate %51, %52, %53, %54, %55, %56, %57, %58, %59 in 0 : vector<32x384xf32>, vector<32x384xf32>, vector<32x384xf32>, vector<32x384xf32>, vector<32x384xf32>, vector<32x384xf32>, vector<32x384xf32>, vector<32x384xf32>, vector<32x384xf32> -> vector<288x384xf32>
    %cst_24 = arith.constant dense<0.000000e+00> : vector<32x384xf32>
    %61 = tpu.matmul %46, %60, %cst_24 {dimension_numbers = #tpu.dot_dimension_numbers<[1], [0], [0], [1], [0, 0, 1, 1], [], []>} : vector<32x288xf32>, vector<288x384xf32>, vector<32x384xf32> -> vector<32x384xf32>
    %62 = vector.broadcast %48 : vector<32x1xf32> to vector<32x384xf32>
    %63 = arith.addf %61, %62 : vector<32x384xf32>
    %64 = vector.broadcast %0 : vector<1x384xf32> to vector<32x384xf32>
    %65 = arith.mulf %63, %64 : vector<32x384xf32>
    %66 = arith.addf %65, %21 : vector<32x384xf32>
    %c2 = arith.constant 2 : index
    %c0_25 = arith.constant 0 : index
    %c0_26 = arith.constant 0 : index
    %67 = vector.load %arg5[%c2, %c0_25, %c0_26] : memref<4x32x288xf32, #tpu.memory_space<vmem>>, vector<1x32x288xf32>
    %68 = vector.shape_cast %67 : vector<1x32x288xf32> to vector<32x288xf32>
    %c2_27 = arith.constant 2 : index
    %c0_28 = arith.constant 0 : index
    %c0_29 = arith.constant 0 : index
    %69 = vector.load %arg6[%c2_27, %c0_28, %c0_29] : memref<4x32x1xf32, #tpu.memory_space<vmem>>, vector<1x32x1xf32>
    %70 = vector.shape_cast %69 : vector<1x32x1xf32> to vector<32x1xf32>
    %cst_30 = arith.constant 0.000000e+00 : f32
    %71 = vector.broadcast %cst_30 : f32 to vector<32x128xf32>
    %72 = tpu.concatenate %71, %66, %71 in 1 : vector<32x128xf32>, vector<32x384xf32>, vector<32x128xf32> -> vector<32x640xf32>
    %73 = vector.extract_strided_slice %72 {offsets = [0, 109], sizes = [32, 384], strides = [1, 1]} : vector<32x640xf32> to vector<32x384xf32>
    %74 = vector.extract_strided_slice %72 {offsets = [0, 110], sizes = [32, 384], strides = [1, 1]} : vector<32x640xf32> to vector<32x384xf32>
    %75 = vector.extract_strided_slice %72 {offsets = [0, 111], sizes = [32, 384], strides = [1, 1]} : vector<32x640xf32> to vector<32x384xf32>
    %76 = vector.extract_strided_slice %72 {offsets = [0, 127], sizes = [32, 384], strides = [1, 1]} : vector<32x640xf32> to vector<32x384xf32>
    %77 = vector.extract_strided_slice %72 {offsets = [0, 128], sizes = [32, 384], strides = [1, 1]} : vector<32x640xf32> to vector<32x384xf32>
    %78 = vector.extract_strided_slice %72 {offsets = [0, 129], sizes = [32, 384], strides = [1, 1]} : vector<32x640xf32> to vector<32x384xf32>
    %79 = vector.extract_strided_slice %72 {offsets = [0, 145], sizes = [32, 384], strides = [1, 1]} : vector<32x640xf32> to vector<32x384xf32>
    %80 = vector.extract_strided_slice %72 {offsets = [0, 146], sizes = [32, 384], strides = [1, 1]} : vector<32x640xf32> to vector<32x384xf32>
    %81 = vector.extract_strided_slice %72 {offsets = [0, 147], sizes = [32, 384], strides = [1, 1]} : vector<32x640xf32> to vector<32x384xf32>
    %82 = tpu.concatenate %73, %74, %75, %76, %77, %78, %79, %80, %81 in 0 : vector<32x384xf32>, vector<32x384xf32>, vector<32x384xf32>, vector<32x384xf32>, vector<32x384xf32>, vector<32x384xf32>, vector<32x384xf32>, vector<32x384xf32>, vector<32x384xf32> -> vector<288x384xf32>
    %cst_31 = arith.constant dense<0.000000e+00> : vector<32x384xf32>
    %83 = tpu.matmul %68, %82, %cst_31 {dimension_numbers = #tpu.dot_dimension_numbers<[1], [0], [0], [1], [0, 0, 1, 1], [], []>} : vector<32x288xf32>, vector<288x384xf32>, vector<32x384xf32> -> vector<32x384xf32>
    %84 = vector.broadcast %70 : vector<32x1xf32> to vector<32x384xf32>
    %85 = arith.addf %83, %84 : vector<32x384xf32>
    %cst_32 = arith.constant 0.000000e+00 : f32
    %86 = vector.broadcast %cst_32 : f32 to vector<32x384xf32>
    %87 = arith.maximumf %85, %86 : vector<32x384xf32>
    %88 = vector.broadcast %0 : vector<1x384xf32> to vector<32x384xf32>
    %89 = arith.mulf %87, %88 : vector<32x384xf32>
    %c3 = arith.constant 3 : index
    %c0_33 = arith.constant 0 : index
    %c0_34 = arith.constant 0 : index
    %90 = vector.load %arg5[%c3, %c0_33, %c0_34] : memref<4x32x288xf32, #tpu.memory_space<vmem>>, vector<1x32x288xf32>
    %91 = vector.shape_cast %90 : vector<1x32x288xf32> to vector<32x288xf32>
    %c3_35 = arith.constant 3 : index
    %c0_36 = arith.constant 0 : index
    %c0_37 = arith.constant 0 : index
    %92 = vector.load %arg6[%c3_35, %c0_36, %c0_37] : memref<4x32x1xf32, #tpu.memory_space<vmem>>, vector<1x32x1xf32>
    %93 = vector.shape_cast %92 : vector<1x32x1xf32> to vector<32x1xf32>
    %cst_38 = arith.constant 0.000000e+00 : f32
    %94 = vector.broadcast %cst_38 : f32 to vector<32x128xf32>
    %95 = tpu.concatenate %94, %89, %94 in 1 : vector<32x128xf32>, vector<32x384xf32>, vector<32x128xf32> -> vector<32x640xf32>
    %96 = vector.extract_strided_slice %95 {offsets = [0, 109], sizes = [32, 384], strides = [1, 1]} : vector<32x640xf32> to vector<32x384xf32>
    %97 = vector.extract_strided_slice %95 {offsets = [0, 110], sizes = [32, 384], strides = [1, 1]} : vector<32x640xf32> to vector<32x384xf32>
    %98 = vector.extract_strided_slice %95 {offsets = [0, 111], sizes = [32, 384], strides = [1, 1]} : vector<32x640xf32> to vector<32x384xf32>
    %99 = vector.extract_strided_slice %95 {offsets = [0, 127], sizes = [32, 384], strides = [1, 1]} : vector<32x640xf32> to vector<32x384xf32>
    %100 = vector.extract_strided_slice %95 {offsets = [0, 128], sizes = [32, 384], strides = [1, 1]} : vector<32x640xf32> to vector<32x384xf32>
    %101 = vector.extract_strided_slice %95 {offsets = [0, 129], sizes = [32, 384], strides = [1, 1]} : vector<32x640xf32> to vector<32x384xf32>
    %102 = vector.extract_strided_slice %95 {offsets = [0, 145], sizes = [32, 384], strides = [1, 1]} : vector<32x640xf32> to vector<32x384xf32>
    %103 = vector.extract_strided_slice %95 {offsets = [0, 146], sizes = [32, 384], strides = [1, 1]} : vector<32x640xf32> to vector<32x384xf32>
    %104 = vector.extract_strided_slice %95 {offsets = [0, 147], sizes = [32, 384], strides = [1, 1]} : vector<32x640xf32> to vector<32x384xf32>
    %105 = tpu.concatenate %96, %97, %98, %99, %100, %101, %102, %103, %104 in 0 : vector<32x384xf32>, vector<32x384xf32>, vector<32x384xf32>, vector<32x384xf32>, vector<32x384xf32>, vector<32x384xf32>, vector<32x384xf32>, vector<32x384xf32>, vector<32x384xf32> -> vector<288x384xf32>
    %cst_39 = arith.constant dense<0.000000e+00> : vector<32x384xf32>
    %106 = tpu.matmul %91, %105, %cst_39 {dimension_numbers = #tpu.dot_dimension_numbers<[1], [0], [0], [1], [0, 0, 1, 1], [], []>} : vector<32x288xf32>, vector<288x384xf32>, vector<32x384xf32> -> vector<32x384xf32>
    %107 = vector.broadcast %93 : vector<32x1xf32> to vector<32x384xf32>
    %108 = arith.addf %106, %107 : vector<32x384xf32>
    %109 = vector.broadcast %0 : vector<1x384xf32> to vector<32x384xf32>
    %110 = arith.mulf %108, %109 : vector<32x384xf32>
    %111 = arith.addf %110, %66 : vector<32x384xf32>
    %c0_40 = arith.constant 0 : index
    %c0_41 = arith.constant 0 : index
    %112 = vector.load %arg7[%c0_40, %c0_41] : memref<32x288xf32, #tpu.memory_space<vmem>>, vector<32x288xf32>
    %c0_42 = arith.constant 0 : index
    %c0_43 = arith.constant 0 : index
    %113 = vector.load %arg8[%c0_42, %c0_43] : memref<32x1xf32, #tpu.memory_space<vmem>>, vector<32x1xf32>
    %cst_44 = arith.constant 0.000000e+00 : f32
    %114 = vector.broadcast %cst_44 : f32 to vector<32x128xf32>
    %115 = tpu.concatenate %114, %111, %114 in 1 : vector<32x128xf32>, vector<32x384xf32>, vector<32x128xf32> -> vector<32x640xf32>
    %116 = vector.extract_strided_slice %115 {offsets = [0, 109], sizes = [32, 384], strides = [1, 1]} : vector<32x640xf32> to vector<32x384xf32>
    %117 = vector.extract_strided_slice %115 {offsets = [0, 110], sizes = [32, 384], strides = [1, 1]} : vector<32x640xf32> to vector<32x384xf32>
    %118 = vector.extract_strided_slice %115 {offsets = [0, 111], sizes = [32, 384], strides = [1, 1]} : vector<32x640xf32> to vector<32x384xf32>
    %119 = vector.extract_strided_slice %115 {offsets = [0, 127], sizes = [32, 384], strides = [1, 1]} : vector<32x640xf32> to vector<32x384xf32>
    %120 = vector.extract_strided_slice %115 {offsets = [0, 128], sizes = [32, 384], strides = [1, 1]} : vector<32x640xf32> to vector<32x384xf32>
    %121 = vector.extract_strided_slice %115 {offsets = [0, 129], sizes = [32, 384], strides = [1, 1]} : vector<32x640xf32> to vector<32x384xf32>
    %122 = vector.extract_strided_slice %115 {offsets = [0, 145], sizes = [32, 384], strides = [1, 1]} : vector<32x640xf32> to vector<32x384xf32>
    %123 = vector.extract_strided_slice %115 {offsets = [0, 146], sizes = [32, 384], strides = [1, 1]} : vector<32x640xf32> to vector<32x384xf32>
    %124 = vector.extract_strided_slice %115 {offsets = [0, 147], sizes = [32, 384], strides = [1, 1]} : vector<32x640xf32> to vector<32x384xf32>
    %125 = tpu.concatenate %116, %117, %118, %119, %120, %121, %122, %123, %124 in 0 : vector<32x384xf32>, vector<32x384xf32>, vector<32x384xf32>, vector<32x384xf32>, vector<32x384xf32>, vector<32x384xf32>, vector<32x384xf32>, vector<32x384xf32>, vector<32x384xf32> -> vector<288x384xf32>
    %cst_45 = arith.constant dense<0.000000e+00> : vector<32x384xf32>
    %126 = tpu.matmul %112, %125, %cst_45 {dimension_numbers = #tpu.dot_dimension_numbers<[1], [0], [0], [1], [0, 0, 1, 1], [], []>} : vector<32x288xf32>, vector<288x384xf32>, vector<32x384xf32> -> vector<32x384xf32>
    %127 = vector.broadcast %113 : vector<32x1xf32> to vector<32x384xf32>
    %128 = arith.addf %126, %127 : vector<32x384xf32>
    %129 = vector.broadcast %0 : vector<1x384xf32> to vector<32x384xf32>
    %130 = arith.mulf %128, %129 : vector<32x384xf32>
    %131 = arith.addf %130, %21 : vector<32x384xf32>
    %c0_46 = arith.constant 0 : index
    %c0_47 = arith.constant 0 : index
    %c0_48 = arith.constant 0 : index
    %132 = vector.load %arg9[%c0_46, %c0_47, %c0_48] : memref<1x32x384xf32, #tpu.memory_space<vmem>>, vector<1x32x384xf32>
    %133 = vector.shape_cast %132 : vector<1x32x384xf32> to vector<32x384xf32>
    %134 = vector.shape_cast %131 : vector<32x384xf32> to vector<1x32x384xf32>
    tpu.vector_store %arg9[%c0_46, %c0_47, %c0_48], %134 {strides = array<i32>} : memref<1x32x384xf32, #tpu.memory_space<vmem>>, vector<1x32x384xf32>,
    return
  }
  func.func @transform_0(%arg0: i32) -> (i32, i32) {
    %c0_i32 = arith.constant 0 : i32
    %c0_i32_0 = arith.constant 0 : i32
    %c0_i32_1 = arith.constant 0 : i32
    return %c0_i32, %c0_i32_0 : i32, i32
  }
  func.func @transform_1(%arg0: i32) -> (i32, i32, i32) {
    %c0_i32 = arith.constant 0 : i32
    %c0_i32_0 = arith.constant 0 : i32
    %c0_i32_1 = arith.constant 0 : i32
    return %arg0, %c0_i32, %c0_i32_0 : i32, i32, i32
  }
  func.func @transform_2(%arg0: i32) -> (i32, i32) {
    %c0_i32 = arith.constant 0 : i32
    %c0_i32_0 = arith.constant 0 : i32
    %c0_i32_1 = arith.constant 0 : i32
    return %c0_i32, %c0_i32_0 : i32, i32
  }
  func.func @transform_3(%arg0: i32) -> (i32, i32) {
    %c0_i32 = arith.constant 0 : i32
    %c0_i32_0 = arith.constant 0 : i32
    %c0_i32_1 = arith.constant 0 : i32
    return %c0_i32, %c0_i32_0 : i32, i32
  }
  func.func @transform_4(%arg0: i32) -> (i32, i32, i32) {
    %c0_i32 = arith.constant 0 : i32
    %c0_i32_0 = arith.constant 0 : i32
    %c0_i32_1 = arith.constant 0 : i32
    %c0_i32_2 = arith.constant 0 : i32
    return %c0_i32, %c0_i32_0, %c0_i32_1 : i32, i32, i32
  }
  func.func @transform_5(%arg0: i32) -> (i32, i32, i32) {
    %c0_i32 = arith.constant 0 : i32
    %c0_i32_0 = arith.constant 0 : i32
    %c0_i32_1 = arith.constant 0 : i32
    %c0_i32_2 = arith.constant 0 : i32
    return %c0_i32, %c0_i32_0, %c0_i32_1 : i32, i32, i32
  }
  func.func @transform_6(%arg0: i32) -> (i32, i32) {
    %c0_i32 = arith.constant 0 : i32
    %c0_i32_0 = arith.constant 0 : i32
    %c0_i32_1 = arith.constant 0 : i32
    return %c0_i32, %c0_i32_0 : i32, i32
  }
  func.func @transform_7(%arg0: i32) -> (i32, i32) {
    %c0_i32 = arith.constant 0 : i32
    %c0_i32_0 = arith.constant 0 : i32
    %c0_i32_1 = arith.constant 0 : i32
    return %c0_i32, %c0_i32_0 : i32, i32
  }
  func.func @transform_8(%arg0: i32) -> (i32, i32, i32) {
    %c0_i32 = arith.constant 0 : i32
    %c0_i32_0 = arith.constant 0 : i32
    %c0_i32_1 = arith.constant 0 : i32
    return %arg0, %c0_i32, %c0_i32_0 : i32, i32, i32
  }
}

</mosaic_0001>

<llo_original>
// kernel: edsr_forward.1
$region0: #{edsr_forward.1}
  #allocation0 [shape = 'u32[]', space=smem, size = 0x4, offset = 0x4, fixed_abs, tag = 'smem constant byte address 0x4 - core index']
  #allocation1 [shape = 'u32[72,128]{1,0:T(1,128)}', space=vmem, size = 0x9000, scoped, tag = 'internal scratch']
  %s0 = inlined_call_operand.vmem [shape: f32[1,384], index: 0, kind: input, shape index: {}]
  %s1 = inlined_call_operand.vmem [shape: f32[2,8,384], index: 1, kind: input, shape index: {}]
  %s2 = inlined_call_operand.vmem [shape: f32[32,72], index: 2, kind: input, shape index: {}]
  %s3 = inlined_call_operand.vmem [shape: f32[32,1], index: 3, kind: input, shape index: {}]
  %s4 = inlined_call_operand.vmem [shape: f32[4,32,288], index: 4, kind: input, shape index: {}]
  %s5 = inlined_call_operand.vmem [shape: f32[4,32,1], index: 5, kind: input, shape index: {}]
  %s6 = inlined_call_operand.vmem [shape: f32[32,288], index: 6, kind: input, shape index: {}]
  %s7 = inlined_call_operand.vmem [shape: f32[32,1], index: 7, kind: input, shape index: {}]
  %s8 = inlined_call_operand.vmem [shape: f32[2,32,384], index: 8, kind: output, shape index: {}]
  %s9 = sld [smem:[#allocation0]]
  $region65: #{edsr_forward.1} parent=0
    _
  %s11 = ssub.s32 1, %s9
  %s12 = scalar_select 0, %s11, %s9
  loop: start=0, step=1, limit=4
  $region2: #{edsr_forward.1} parent=0 // loop_pre_header
    _
  $region3: #{edsr_forward.1} parent=0 // loop_header
    %s14 = sphi 0, %s18
    %p15 = scmp.ge.s32.totalorder %s14, 4
    %s22 = sphi 0, %s22
    %s24 = sphi 0, %s22
    %s25 = sphi 0, %s24
    %s39 = sphi 0, %s25
    %s45 = sphi 0, %s47
    %s48 = sphi 0, %s45
    %s49 = sphi 0, %s48
    %s65 = sphi 0, %s49
    %s69 = sphi 0, %s69
    %s71 = sphi 0, %s69
    %s72 = sphi 0, %s71
    %s86 = sphi 0, %s72
    %s90 = sphi 0, %s90
    %s92 = sphi 0, %s90
    %s93 = sphi 0, %s92
    %s107 = sphi 0, %s93
    %s111 = sphi 0, %s111
    %s113 = sphi 0, %s111
    %s114 = sphi 0, %s113
    %s128 = sphi 0, %s114
    %s132 = sphi 0, %s132
    %s134 = sphi 0, %s132
    %s135 = sphi 0, %s134
    %s149 = sphi 0, %s135
    %s153 = sphi 0, %s153
    %s155 = sphi 0, %s153
    %s156 = sphi 0, %s155
    %s170 = sphi 0, %s156
    %s174 = sphi 0, %s174
    %s176 = sphi 0, %s174
    %s177 = sphi 0, %s176
    %s191 = sphi 0, %s177
    %s197 = sphi 0, %s199
    %s200 = sphi 0, %s197
    %s201 = sphi 0, %s200
    %s217 = sphi 0, %s201
  $region4: #{edsr_forward.1} parent=0 // loop_header_branch
    %17 = sbr.rel (%p15) target = $region8
  $region5: #{edsr_forward.1} parent=0 // loop_body
    %s19 = ssub.s32 %s14, 1
    %s20 = ssub.s32 %s14, 2
    %s21 = sadd.s32 %s14, 1
    %s23 = sadd.s32 %s22, 1
    %p26 = scmp.eq.s32.totalorder %s14, 1
    %p27 = scmp.ne.s32.totalorder %s22, %s24
    %p28 = scmp.eq.s32.totalorder %s14, 0
    %p29 = por %p27, %p28
    %p30 = scmp.ne.s32.totalorder %s22, %s24
    %p31 = scmp.eq.s32.totalorder %s19, 1
    %p32 = por %p30, %p31
    %p33 = scmp.ne.s32.totalorder %s24, %s25
    %p34 = scmp.eq.s32.totalorder %s19, 0
    %p35 = por %p33, %p34
    %p36 = scmp.ne.s32.totalorder %s24, %s25
    %p37 = scmp.eq.s32.totalorder %s20, 1
    %p38 = por %p36, %p37
    %p40 = scmp.ne.s32.totalorder %s25, %s39
    %p41 = scmp.eq.s32.totalorder %s20, 0
    %p42 = por %p40, %p41
    %s43 = ssub.s32 %s14, %s21
    %p44 = scmp.eq.s32.totalorder %s43, 0
    %s46 = sadd.s32 %s45, 1
    %s47 = scalar_select %p44, %s45, %s46
    %p50 = pneg %p44
    %p51 = scmp.eq.s32.totalorder %s14, 1
    %p52 = por %p50, %p51
    %p53 = scmp.ne.s32.totalorder %s45, %s48
    %p54 = scmp.eq.s32.totalorder %s14, 0
    %p55 = por %p53, %p54
    %p56 = scmp.ne.s32.totalorder %s45, %s48
    %p57 = scmp.eq.s32.totalorder %s19, 1
    %p58 = por %p56, %p57
    %p59 = scmp.ne.s32.totalorder %s48, %s49
    %p60 = scmp.eq.s32.totalorder %s19, 0
    %p61 = por %p59, %p60
    %p62 = scmp.ne.s32.totalorder %s48, %s49
    %p63 = scmp.eq.s32.totalorder %s20, 1
    %p64 = por %p62, %p63
    %p66 = scmp.ne.s32.totalorder %s49, %s65
    %p67 = scmp.eq.s32.totalorder %s20, 0
    %p68 = por %p66, %p67
    %s70 = sadd.s32 %s69, 1
    %p73 = scmp.eq.s32.totalorder %s14, 1
    %p74 = scmp.ne.s32.totalorder %s69, %s71
    %p75 = scmp.eq.s32.totalorder %s14, 0
    %p76 = por %p74, %p75
    %p77 = scmp.ne.s32.totalorder %s69, %s71
    %p78 = scmp.eq.s32.totalorder %s19, 1
    %p79 = por %p77, %p78
    %p80 = scmp.ne.s32.totalorder %s71, %s72
    %p81 = scmp.eq.s32.totalorder %s19, 0
    %p82 = por %p80, %p81
    %p83 = scmp.ne.s32.totalorder %s71, %s72
    %p84 = scmp.eq.s32.totalorder %s20, 1
    %p85 = por %p83, %p84
    %p87 = scmp.ne.s32.totalorder %s72, %s86
    %p88 = scmp.eq.s32.totalorder %s20, 0
    %p89 = por %p87, %p88
    %s91 = sadd.s32 %s90, 1
    %p94 = scmp.eq.s32.totalorder %s14, 1
    %p95 = scmp.ne.s32.totalorder %s90, %s92
    %p96 = scmp.eq.s32.totalorder %s14, 0
    %p97 = por %p95, %p96
    %p98 = scmp.ne.s32.totalorder %s90, %s92
    %p99 = scmp.eq.s32.totalorder %s19, 1
    %p100 = por %p98, %p99
    %p101 = scmp.ne.s32.totalorder %s92, %s93
    %p102 = scmp.eq.s32.totalorder %s19, 0
    %p103 = por %p101, %p102
    %p104 = scmp.ne.s32.totalorder %s92, %s93
    %p105 = scmp.eq.s32.totalorder %s20, 1
    %p106 = por %p104, %p105
    %p108 = scmp.ne.s32.totalorder %s93, %s107
    %p109 = scmp.eq.s32.totalorder %s20, 0
    %p110 = por %p108, %p109
    %s112 = sadd.s32 %s111, 1
    %p115 = scmp.eq.s32.totalorder %s14, 1
    %p116 = scmp.ne.s32.totalorder %s111, %s113
    %p117 = scmp.eq.s32.totalorder %s14, 0
    %p118 = por %p116, %p117
    %p119 = scmp.ne.s32.totalorder %s111, %s113
    %p120 = scmp.eq.s32.totalorder %s19, 1
    %p121 = por %p119, %p120
    %p122 = scmp.ne.s32.totalorder %s113, %s114
    %p123 = scmp.eq.s32.totalorder %s19, 0
    %p124 = por %p122, %p123
    %p125 = scmp.ne.s32.totalorder %s113, %s114
    %p126 = scmp.eq.s32.totalorder %s20, 1
    %p127 = por %p125, %p126
    %p129 = scmp.ne.s32.totalorder %s114, %s128
    %p130 = scmp.eq.s32.totalorder %s20, 0
    %p131 = por %p129, %p130
    %s133 = sadd.s32 %s132, 1
    %p136 = scmp.eq.s32.totalorder %s14, 1
    %p137 = scmp.ne.s32.totalorder %s132, %s134
    %p138 = scmp.eq.s32.totalorder %s14, 0
    %p139 = por %p137, %p138
    %p140 = scmp.ne.s32.totalorder %s132, %s134
    %p141 = scmp.eq.s32.totalorder %s19, 1
    %p142 = por %p140, %p141
    %p143 = scmp.ne.s32.totalorder %s134, %s135
    %p144 = scmp.eq.s32.totalorder %s19, 0
    %p145 = por %p143, %p144
    %p146 = scmp.ne.s32.totalorder %s134, %s135
    %p147 = scmp.eq.s32.totalorder %s20, 1
    %p148 = por %p146, %p147
    %p150 = scmp.ne.s32.totalorder %s135, %s149
    %p151 = scmp.eq.s32.totalorder %s20, 0
    %p152 = por %p150, %p151
    %s154 = sadd.s32 %s153, 1
    %p157 = scmp.eq.s32.totalorder %s14, 1
    %p158 = scmp.ne.s32.totalorder %s153, %s155
    %p159 = scmp.eq.s32.totalorder %s14, 0
    %p160 = por %p158, %p159
    %p161 = scmp.ne.s32.totalorder %s153, %s155
    %p162 = scmp.eq.s32.totalorder %s19, 1
    %p163 = por %p161, %p162
    %p164 = scmp.ne.s32.totalorder %s155, %s156
    %p165 = scmp.eq.s32.totalorder %s19, 0
    %p166 = por %p164, %p165
    %p167 = scmp.ne.s32.totalorder %s155, %s156
    %p168 = scmp.eq.s32.totalorder %s20, 1
    %p169 = por %p167, %p168
    %p171 = scmp.ne.s32.totalorder %s156, %s170
    %p172 = scmp.eq.s32.totalorder %s20, 0
    %p173 = por %p171, %p172
    %s175 = sadd.s32 %s174, 1
    %p178 = scmp.eq.s32.totalorder %s14, 1
    %p179 = scmp.ne.s32.totalorder %s174, %s176
    %p180 = scmp.eq.s32.totalorder %s14, 0
    %p181 = por %p179, %p180
    %p182 = scmp.ne.s32.totalorder %s174, %s176
    %p183 = scmp.eq.s32.totalorder %s19, 1
    %p184 = por %p182, %p183
    %p185 = scmp.ne.s32.totalorder %s176, %s177
    %p186 = scmp.eq.s32.totalorder %s19, 0
    %p187 = por %p185, %p186
    %p188 = scmp.ne.s32.totalorder %s176, %s177
    %p189 = scmp.eq.s32.totalorder %s20, 1
    %p190 = por %p188, %p189
    %p192 = scmp.ne.s32.totalorder %s177, %s191
    %p193 = scmp.eq.s32.totalorder %s20, 0
    %p194 = por %p192, %p193
    %s195 = ssub.s32 %s14, %s21
    %p196 = scmp.eq.s32.totalorder %s195, 0
    %s198 = sadd.s32 %s197, 1
    %s199 = scalar_select %p196, %s197, %s198
    %p202 = pneg %p196
    %p203 = scmp.eq.s32.totalorder %s14, 1
    %p204 = por %p202, %p203
    %p205 = scmp.ne.s32.totalorder %s197, %s200
    %p206 = scmp.eq.s32.totalorder %s14, 0
    %p207 = por %p205, %p206
    %p208 = scmp.ne.s32.totalorder %s197, %s200
    %p209 = scmp.eq.s32.totalorder %s19, 1
    %p210 = por %p208, %p209
    %p211 = scmp.ne.s32.totalorder %s200, %s201
    %p212 = scmp.eq.s32.totalorder %s19, 0
    %p213 = por %p211, %p212
    %p214 = scmp.ne.s32.totalorder %s200, %s201
    %p215 = scmp.eq.s32.totalorder %s20, 1
    %p216 = por %p214, %p215
    %p218 = scmp.ne.s32.totalorder %s201, %s217
    %p219 = scmp.eq.s32.totalorder %s20, 0
    %p220 = por %p218, %p219
    %p221 = scmp.le.s32.totalorder 1, %s14
    %p222 = scmp.lt.s32.totalorder %s14, 3
    %p223 = pnand %p221, %p222
    %p224 = pneg %p223
    // Predicated region
    $region9: #{edsr_forward.1} parent=5 // pred_check
      _
    $region10: #{edsr_forward.1} parent=5 // pred_check_branch
      %226 = sbr.rel (%p223) target = $region12
    $region11: #{edsr_forward.1} parent=5 // pred_region
      %s227 = ssub.s32 %s14, 1
      // Predicated region
      $region13: #{edsr_forward.1} parent=11 // pred_check
        %p228 = pneg %p35
      $region14: #{edsr_forward.1} parent=11 // pred_check_branch
        %230 = sbr.rel (%p228) target = $region16
      $region15: #{edsr_forward.1} parent=11 // pred_region
        _
      $region16: #{edsr_forward.1} parent=11 // pred_fallthru
        _
      // Predicated region
      $region17: #{edsr_forward.1} parent=11 // pred_check
        %p231 = pneg %p82
      $region18: #{edsr_forward.1} parent=11 // pred_check_branch
        %233 = sbr.rel (%p231) target = $region20
      $region19: #{edsr_forward.1} parent=11 // pred_region
        _
      $region20: #{edsr_forward.1} parent=11 // pred_fallthru
        _
      // Predicated region
      $region21: #{edsr_forward.1} parent=11 // pred_check
        %p234 = pneg %p103
      $region22: #{edsr_forward.1} parent=11 // pred_check_branch
        %236 = sbr.rel (%p234) target = $region24
      $region23: #{edsr_forward.1} parent=11 // pred_region
        _
      $region24: #{edsr_forward.1} parent=11 // pred_fallthru
        _
      // Predicated region
      $region25: #{edsr_forward.1} parent=11 // pred_check
        %p237 = pneg %p124
      $region26: #{edsr_forward.1} parent=11 // pred_check_branch
        %239 = sbr.rel (%p237) target = $region28
      $region27: #{edsr_forward.1} parent=11 // pred_region
        _
      $region28: #{edsr_forward.1} parent=11 // pred_fallthru
        _
      // Predicated region
      $region29: #{edsr_forward.1} parent=11 // pred_check
        %p240 = pneg %p145
      $region30: #{edsr_forward.1} parent=11 // pred_check_branch
        %242 = sbr.rel (%p240) target = $region32
      $region31: #{edsr_forward.1} parent=11 // pred_region
        _
      $region32: #{edsr_forward.1} parent=11 // pred_fallthru
        _
      // Predicated region
      $region33: #{edsr_forward.1} parent=11 // pred_check
        %p243 = pneg %p166
      $region34: #{edsr_forward.1} parent=11 // pred_check_branch
        %245 = sbr.rel (%p243) target = $region36
      $region35: #{edsr_forward.1} parent=11 // pred_region
        _
      $region36: #{edsr_forward.1} parent=11 // pred_fallthru
        _
      // Predicated region
      $region37: #{edsr_forward.1} parent=11 // pred_check
        %p246 = pneg %p187
      $region38: #{edsr_forward.1} parent=11 // pred_check_branch
        %248 = sbr.rel (%p246) target = $region40
      $region39: #{edsr_forward.1} parent=11 // pred_region
        _
      $region40: #{edsr_forward.1} parent=11 // pred_fallthru
        _
    $region12: #{edsr_forward.1} parent=5 // pred_fallthru
      _
    %p249 = scmp.lt.s32.totalorder %s14, 2
    // Predicated region
    $region41: #{edsr_forward.1} parent=5 // pred_check
      %p250 = pneg %p249
    $region42: #{edsr_forward.1} parent=5 // pred_check_branch
      %252 = sbr.rel (%p250) target = $region44
    $region43: #{edsr_forward.1} parent=5 // pred_region
      // Predicated region
      $region45: #{edsr_forward.1} parent=43 // pred_check
        %p253 = pneg %p55
      $region46: #{edsr_forward.1} parent=43 // pred_check_branch
        %255 = sbr.rel (%p253) target = $region48
      $region47: #{edsr_forward.1} parent=43 // pred_region
        %p256 = scmp.lt.s32.totalorder %s14, 1
        %s257 = scalar_select %p256, %s14, 1
        %s258 = smul.addr %s257, 3
        %s259 = smul.addr %s258, 8
        %s260 = scalar_lea.vmem %s1, %s259
      $region48: #{edsr_forward.1} parent=43 // pred_fallthru
        _
    $region44: #{edsr_forward.1} parent=5 // pred_fallthru
      _
    %p261 = scmp.le.s32.totalorder 1, %s14
    %p262 = scmp.lt.s32.totalorder %s14, 3
    %p263 = pnand %p261, %p262
    %p264 = pneg %p263
    // Predicated region
    $region49: #{edsr_forward.1} parent=5 // pred_check
      _
    $region50: #{edsr_forward.1} parent=5 // pred_check_branch
      %266 = sbr.rel (%p263) target = $region52
    $region51: #{edsr_forward.1} parent=5 // pred_region
      %s267 = ssub.s32 %s14, 1
      %p268 = pneg %p35
      %p269 = pneg %p32
      %p270 = scmp.lt.s32.totalorder %s19, 1
      %s271 = scalar_select %p270, %s19, 1
      %s272 = smul.addr %s271, 3
      %s273 = smul.addr %s272, 8
      %s274 = scalar_lea.vmem %s1, %s273
      %p275 = pneg %p61
      %p276 = pneg %p58
      %p277 = pneg %p82
      %p278 = pneg %p79
      %p279 = pneg %p103
      %p280 = pneg %p100
      %p281 = pneg %p124
      %p282 = pneg %p121
      %p283 = pneg %p145
      %p284 = pneg %p142
      %p285 = pneg %p166
      %p286 = pneg %p163
      %p287 = pneg %p187
      %p288 = pneg %p184
      %p289 = pneg %p213
      %p290 = pneg %p210
      %p291 = scmp.lt.s32.totalorder %s19, 1
      %s292 = scalar_select %p291, %s19, 1
      %s293 = smul.addr %s292, 12
      %s294 = smul.addr %s293, 8
      %s295 = scalar_lea.vmem %s8, %s294
      %p296 = scmp.lt.s32.totalorder %s19, 1
      %s297 = scalar_select %p296, %s19, 1
      %s298 = smul.addr %s297, 3
      %s299 = smul.addr %s298, 8
      %s300 = scalar_lea.vmem %s1, %s299
      %p301 = scmp.lt.s32.totalorder %s19, 1
      %s302 = scalar_select %p301, %s19, 1
      %s303 = smul.addr %s302, 12
      %s304 = smul.addr %s303, 8
      %s305 = scalar_lea.vmem %s8, %s304
      %v306 = vld [vmem:[%s0] sm:$0x7]
      %v307 = vld [vmem:[%s300] sm:$0xff]
      %v308 = vld [vmem:[%s300 + $0x8] sm:$0xff]
      %v309 = vld [vmem:[%s300 + $0x10] sm:$0xff]
      %v310 = vld [vmem:[%s2] sm:$0xff]
      %v311 = vld [vmem:[%s2 + $0x8] sm:$0xff]
      %v312 = vld [vmem:[%s2 + $0x10] sm:$0xff]
      %v313 = vld [vmem:[%s2 + $0x18] sm:$0xff]
      %v314 = vld [vmem:[%s3] sm:$0xff]
      %v315 = vld [vmem:[%s3 + $0x8] sm:$0xff]
      %v316 = vld [vmem:[%s3 + $0x10] sm:$0xff]
      %v317 = vld [vmem:[%s3 + $0x18] sm:$0xff]
      %322 = vrot.lane.b32.xlu0 0.0, 127
      %v323 = vpop.permute.xlu0 %322
      %324 = vrot.lane.b32.xlu0 %v307, 127
      %v325 = vpop.permute.xlu0 %324
      %326 = vrot.lane.b32.xlu0 %v308, 127
      %v327 = vpop.permute.xlu0 %326
      %328 = vrot.lane.b32.xlu0 %v309, 127
      %v329 = vpop.permute.xlu0 %328
      %vm330 = vcmask 1039360
      %v331 = vsel %vm330, %v323, %v325
      %v332 = vsel %vm330, %v325, %v327
      %v333 = vsel %vm330, %v327, %v329
      %334 = vrot.lane.b32.xlu0 0.0, 126
      %v335 = vpop.permute.xlu0 %334
      %336 = vrot.lane.b32.xlu0 %v307, 126
      %v337 = vpop.permute.xlu0 %336
      %338 = vrot.lane.b32.xlu0 %v308, 126
      %v339 = vpop.permute.xlu0 %338
      %340 = vrot.lane.b32.xlu0 %v309, 126
      %v341 = vpop.permute.xlu0 %340
      %vm342 = vcmask 1031168
      %v343 = vsel %vm342, %v335, %v337
      %v344 = vsel %vm342, %v337, %v339
      %v345 = vsel %vm342, %v339, %v341
      %346 = vrot.lane.b32.xlu0 0.0, 110
      %v347 = vpop.permute.xlu0 %346
      %348 = vrot.lane.b32.xlu0 %v307, 110
      %v349 = vpop.permute.xlu0 %348
      %350 = vrot.lane.b32.xlu0 %v308, 110
      %v351 = vpop.permute.xlu0 %350
      %352 = vrot.lane.b32.xlu0 %v309, 110
      %v353 = vpop.permute.xlu0 %352
      %vm354 = vcmask 900096
      %v355 = vsel %vm354, %v347, %v349
      %v356 = vsel %vm354, %v349, %v351
      %v357 = vsel %vm354, %v351, %v353
      %358 = vrot.lane.b32.xlu0 %v307, 109
      %v359 = vpop.permute.xlu0 %358
      %360 = vrot.lane.b32.xlu0 %v308, 109
      %v361 = vpop.permute.xlu0 %360
      %362 = vrot.lane.b32.xlu0 %v309, 109
      %v363 = vpop.permute.xlu0 %362
      %vm364 = vcmask 891904
      %v365 = vsel %vm364, %v359, %v361
      %v366 = vsel %vm364, %v361, %v363
      %367 = vrot.lane.b32.xlu0 %v307, 108
      %v368 = vpop.permute.xlu0 %367
      %369 = vrot.lane.b32.xlu0 %v308, 108
      %v370 = vpop.permute.xlu0 %369
      %371 = vrot.lane.b32.xlu0 %v309, 108
      %v372 = vpop.permute.xlu0 %371
      %373 = vrot.lane.b32.xlu0 0.0, 108
      %v374 = vpop.permute.xlu0 %373
      %vm375 = vcmask 883712
      %v376 = vsel %vm375, %v368, %v370
      %v377 = vsel %vm375, %v370, %v372
      %v378 = vsel %vm375, %v372, %v374
      %379 = vrot.lane.b32.xlu0 %v307, 92
      %v380 = vpop.permute.xlu0 %379
      %381 = vrot.lane.b32.xlu0 %v308, 92
      %v382 = vpop.permute.xlu0 %381
      %383 = vrot.lane.b32.xlu0 %v309, 92
      %v384 = vpop.permute.xlu0 %383
      %385 = vrot.lane.b32.xlu0 0.0, 92
      %v386 = vpop.permute.xlu0 %385
      %vm387 = vcmask 752640
      %v388 = vsel %vm387, %v380, %v382
      %v389 = vsel %vm387, %v382, %v384
      %v390 = vsel %vm387, %v384, %v386
      %391 = vrot.lane.b32.xlu0 %v307, 91
      %v392 = vpop.permute.xlu0 %391
      %393 = vrot.lane.b32.xlu0 %v308, 91
      %v394 = vpop.permute.xlu0 %393
      %395 = vrot.lane.b32.xlu0 %v309, 91
      %v396 = vpop.permute.xlu0 %395
      %397 = vrot.lane.b32.xlu0 0.0, 91
      %v398 = vpop.permute.xlu0 %397
      %vm399 = vcmask 744448
      %v400 = vsel %vm399, %v392, %v394
      %v401 = vsel %vm399, %v394, %v396
      %v402 = vsel %vm399, %v396, %v398
      %403 = vrot.lane.b32.xlu0 %v307, 90
      %v404 = vpop.permute.xlu0 %403
      %405 = vrot.lane.b32.xlu0 %v308, 90
      %v406 = vpop.permute.xlu0 %405
      %407 = vrot.lane.b32.xlu0 %v309, 90
      %v408 = vpop.permute.xlu0 %407
      %409 = vrot.lane.b32.xlu0 0.0, 90
      %v410 = vpop.permute.xlu0 %409
      %vm411 = vcmask 736256
      %v412 = vsel %vm411, %v404, %v406
      %v413 = vsel %vm411, %v406, %v408
      %v414 = vsel %vm411, %v408, %v410
      %416 = vset.pattern.permute.xlu0 0
      %417 = vperm.xlu0 %416, %v314
      %v418 = vpop.permute.xlu0 %417
      %421 = vset.pattern.permute.xlu0 0
      %422 = vperm.xlu0 %421, %v315
      %v423 = vpop.permute.xlu0 %422
      %426 = vset.pattern.permute.xlu0 0
      %427 = vperm.xlu0 %426, %v316
      %v428 = vpop.permute.xlu0 %427
      %431 = vset.pattern.permute.xlu0 0
      %432 = vperm.xlu0 %431, %v317
      %v433 = vpop.permute.xlu0 %432
      %435 = vrot.lane.b32.xlu0 0.0, 19
      %v436 = vpop.permute.xlu0 %435
      %437 = vrot.lane.b32.xlu0 %v307, 19
      %v438 = vpop.permute.xlu0 %437
      %439 = vrot.lane.b32.xlu0 %v308, 19
      %v440 = vpop.permute.xlu0 %439
      %441 = vrot.lane.b32.xlu0 %v309, 19
      %v442 = vpop.permute.xlu0 %441
      %443 = vrot.lane.b32.xlu0 %v331, 19
      %v444 = vpop.permute.xlu0 %443
      %445 = vrot.lane.b32.xlu0 %v332, 19
      %v446 = vpop.permute.xlu0 %445
      %447 = vrot.lane.b32.xlu0 %v333, 19
      %v448 = vpop.permute.xlu0 %447
      %449 = vrot.lane.b32.xlu0 %v329, 19
      %v450 = vpop.permute.xlu0 %449
      %451 = vrot.lane.b32.xlu0 %v343, 19
      %v452 = vpop.permute.xlu0 %451
      %453 = vrot.lane.b32.xlu0 %v344, 19
      %v454 = vpop.permute.xlu0 %453
      %455 = vrot.lane.b32.xlu0 %v345, 19
      %v456 = vpop.permute.xlu0 %455
      %457 = vrot.lane.b32.xlu0 %v341, 19
      %v458 = vpop.permute.xlu0 %457
      %459 = vrot.lane.b32.xlu0 %v355, 19
      %v460 = vpop.permute.xlu0 %459
      %461 = vrot.lane.b32.xlu0 %v356, 19
      %v462 = vpop.permute.xlu0 %461
      %463 = vrot.lane.b32.xlu0 %v357, 19
      %v464 = vpop.permute.xlu0 %463
      %465 = vrot.lane.b32.xlu0 %v353, 19
      %v466 = vpop.permute.xlu0 %465
      %467 = vrot.lane.b32.xlu0 %v359, 19
      %v468 = vpop.permute.xlu0 %467
      %469 = vrot.lane.b32.xlu0 %v365, 19
      %v470 = vpop.permute.xlu0 %469
      %471 = vrot.lane.b32.xlu0 %v366, 19
      %v472 = vpop.permute.xlu0 %471
      %473 = vrot.lane.b32.xlu0 %v363, 19
      %v474 = vpop.permute.xlu0 %473
      %475 = vrot.lane.b32.xlu0 %v368, 19
      %v476 = vpop.permute.xlu0 %475
      %477 = vrot.lane.b32.xlu0 %v376, 19
      %v478 = vpop.permute.xlu0 %477
      %479 = vrot.lane.b32.xlu0 %v377, 19
      %v480 = vpop.permute.xlu0 %479
      %481 = vrot.lane.b32.xlu0 %v378, 19
      %v482 = vpop.permute.xlu0 %481
      %483 = vrot.lane.b32.xlu0 %v380, 19
      %v484 = vpop.permute.xlu0 %483
      %485 = vrot.lane.b32.xlu0 %v388, 19
      %v486 = vpop.permute.xlu0 %485
      %487 = vrot.lane.b32.xlu0 %v389, 19
      %v488 = vpop.permute.xlu0 %487
      %489 = vrot.lane.b32.xlu0 %v390, 19
      %v490 = vpop.permute.xlu0 %489
      %491 = vrot.lane.b32.xlu0 %v392, 19
      %v492 = vpop.permute.xlu0 %491
      %493 = vrot.lane.b32.xlu0 %v400, 19
      %v494 = vpop.permute.xlu0 %493
      %495 = vrot.lane.b32.xlu0 %v401, 19
      %v496 = vpop.permute.xlu0 %495
      %497 = vrot.lane.b32.xlu0 %v402, 19
      %v498 = vpop.permute.xlu0 %497
      %499 = vrot.lane.b32.xlu0 %v404, 19
      %v500 = vpop.permute.xlu0 %499
      %501 = vrot.lane.b32.xlu0 %v412, 19
      %v502 = vpop.permute.xlu0 %501
      %503 = vrot.lane.b32.xlu0 %v413, 19
      %v504 = vpop.permute.xlu0 %503
      %505 = vrot.lane.b32.xlu0 %v414, 19
      %v506 = vpop.permute.xlu0 %505
      %vm507 = vcmask 154624
      %v508 = vsel %vm507, %v436, %v438
      %v509 = vsel %vm507, %v438, %v440
      %v510 = vsel %vm507, %v440, %v442
      %v511 = vsel %vm507, %v444, %v446
      %v512 = vsel %vm507, %v446, %v448
      %v513 = vsel %vm507, %v448, %v450
      %v514 = vsel %vm507, %v452, %v454
      %v515 = vsel %vm507, %v454, %v456
      %v516 = vsel %vm507, %v456, %v458
      %v517 = vsel %vm507, %v460, %v462
      %v518 = vsel %vm507, %v462, %v464
      %v519 = vsel %vm507, %v464, %v466
      %v520 = vsel %vm507, %v468, %v470
      %v521 = vsel %vm507, %v470, %v472
      %v522 = vsel %vm507, %v472, %v474
      %v523 = vsel %vm507, %v476, %v478
      %v524 = vsel %vm507, %v478, %v480
      %v525 = vsel %vm507, %v480, %v482
      %v526 = vsel %vm507, %v484, %v486
      %v527 = vsel %vm507, %v486, %v488
      %v528 = vsel %vm507, %v488, %v490
      %v529 = vsel %vm507, %v492, %v494
      %v530 = vsel %vm507, %v494, %v496
      %v531 = vsel %vm507, %v496, %v498
      %v532 = vsel %vm507, %v500, %v502
      %v533 = vsel %vm507, %v502, %v504
      %v534 = vsel %vm507, %v504, %v506
      %vm562 = vcmask 588800
      %v564 = vsel %vm562, %v310, 0
      %v567 = vsel %vm562, %v311, 0
      %v570 = vsel %vm562, %v312, 0
      %v573 = vsel %vm562, %v313, 0
      %575 = vmatpush.msra.mxu0 0.0
      %576 = vmatpush.msra.mxu0 0.0
      %577 = vmatpush.msra.mxu0 0.0
      %578 = vmatpush.msra.mxu0 0.0
      %579 = vmatpush.msra.mxu0 0.0
      %580 = vmatpush.msra.mxu0 0.0
      %581 = vmatpush.msra.mxu0 0.0
      %582 = vmatpush.msra.mxu0 %v532
      %583 = vmatpush.msra.mxu0 %v529
      %584 = vmatpush.msra.mxu0 %v526
      %585 = vmatpush.msra.mxu0 %v523
      %586 = vmatpush.msra.mxu0 %v520
      %587 = vmatpush.msra.mxu0 %v517
      %588 = vmatpush.msra.mxu0 %v514
      %589 = vmatpush.msra.mxu0 %v511
      %590 = vmatpush.msra.mxu0 %v508
      %591 = vmatmul.f32.gmra.mxu0 %v564
      %v592 = vpop.f32.mrf.mxu0
      %v593 = vadd.f32 %v418, %v592
      %594 = vmatmul.f32.gmra.mxu0 %v567
      %v595 = vpop.f32.mrf.mxu0
      %v596 = vadd.f32 %v423, %v595
      %597 = vmatmul.f32.gmra.mxu0 %v570
      %v598 = vpop.f32.mrf.mxu0
      %v599 = vadd.f32 %v428, %v598
      %600 = vmatmul.f32.gmra.mxu0 %v573
      %v601 = vpop.f32.mrf.mxu0
      %v602 = vadd.f32 %v433, %v601
      %603 = vdwg.mxu0
      %604 = vmatpush.msra.mxu0 0.0
      %605 = vmatpush.msra.mxu0 0.0
      %606 = vmatpush.msra.mxu0 0.0
      %607 = vmatpush.msra.mxu0 0.0
      %608 = vmatpush.msra.mxu0 0.0
      %609 = vmatpush.msra.mxu0 0.0
      %610 = vmatpush.msra.mxu0 0.0
      %611 = vmatpush.msra.mxu0 %v533
      %612 = vmatpush.msra.mxu0 %v530
      %613 = vmatpush.msra.mxu0 %v527
      %614 = vmatpush.msra.mxu0 %v524
      %615 = vmatpush.msra.mxu0 %v521
      %616 = vmatpush.msra.mxu0 %v518
      %617 = vmatpush.msra.mxu0 %v515
      %618 = vmatpush.msra.mxu0 %v512
      %619 = vmatpush.msra.mxu0 %v509
      %620 = vmatmul.f32.gmra.mxu0 %v564
      %v621 = vpop.f32.mrf.mxu0
      %v622 = vadd.f32 %v418, %v621
      %623 = vmatmul.f32.gmra.mxu0 %v567
      %v624 = vpop.f32.mrf.mxu0
      %v625 = vadd.f32 %v423, %v624
      %626 = vmatmul.f32.gmra.mxu0 %v570
      %v627 = vpop.f32.mrf.mxu0
      %v628 = vadd.f32 %v428, %v627
      %629 = vmatmul.f32.gmra.mxu0 %v573
      %v630 = vpop.f32.mrf.mxu0
      %v631 = vadd.f32 %v433, %v630
      %632 = vdwg.mxu0
      %633 = vmatpush.msra.mxu0 0.0
      %634 = vmatpush.msra.mxu0 0.0
      %635 = vmatpush.msra.mxu0 0.0
      %636 = vmatpush.msra.mxu0 0.0
      %637 = vmatpush.msra.mxu0 0.0
      %638 = vmatpush.msra.mxu0 0.0
      %639 = vmatpush.msra.mxu0 0.0
      %640 = vmatpush.msra.mxu0 %v534
      %641 = vmatpush.msra.mxu0 %v531
      %642 = vmatpush.msra.mxu0 %v528
      %643 = vmatpush.msra.mxu0 %v525
      %644 = vmatpush.msra.mxu0 %v522
      %645 = vmatpush.msra.mxu0 %v519
      %646 = vmatpush.msra.mxu0 %v516
      %647 = vmatpush.msra.mxu0 %v513
      %648 = vmatpush.msra.mxu0 %v510
      %649 = vmatmul.f32.gmra.mxu0 %v564
      %v650 = vpop.f32.mrf.mxu0
      %v651 = vadd.f32 %v418, %v650
      %652 = vmatmul.f32.gmra.mxu0 %v567
      %v653 = vpop.f32.mrf.mxu0
      %v654 = vadd.f32 %v423, %v653
      %655 = vmatmul.f32.gmra.mxu0 %v570
      %v656 = vpop.f32.mrf.mxu0
      %v657 = vadd.f32 %v428, %v656
      %658 = vmatmul.f32.gmra.mxu0 %v573
      %v659 = vpop.f32.mrf.mxu0
      %v660 = vadd.f32 %v433, %v659
      %661 = vdwg.mxu0
      %v663 = vperm.slane %v306, 0
      %v664 = vperm.slane %v306, 1
      %v665 = vperm.slane %v306, 2
      %v669 = vmul.f32 %v593, %v663
      %v670 = vmul.f32 %v622, %v664
      %v671 = vmul.f32 %v651, %v665
      %v672 = vmul.f32 %v596, %v663
      %v673 = vmul.f32 %v625, %v664
      %v674 = vmul.f32 %v654, %v665
      %v675 = vmul.f32 %v599, %v663
      %v676 = vmul.f32 %v628, %v664
      %v677 = vmul.f32 %v657, %v665
      %v678 = vmul.f32 %v602, %v663
      %v679 = vmul.f32 %v631, %v664
      %v680 = vmul.f32 %v660, %v665
      %v681 = vld [vmem:[%s4] sm:$0xff]
      %v682 = vld [vmem:[%s4 + $0x8] sm:$0xff]
      %v683 = vld [vmem:[%s4 + $0x10] sm:$0xff]
      %v684 = vld [vmem:[%s4 + $0x18] sm:$0xff]
      %v685 = vld [vmem:[%s4 + $0x20] sm:$0xff]
      %v686 = vld [vmem:[%s4 + $0x28] sm:$0xff]
      %v687 = vld [vmem:[%s4 + $0x30] sm:$0xff]
      %v688 = vld [vmem:[%s4 + $0x38] sm:$0xff]
      %v689 = vld [vmem:[%s4 + $0x40] sm:$0xff]
      %v690 = vld [vmem:[%s4 + $0x48] sm:$0xff]
      %v691 = vld [vmem:[%s4 + $0x50] sm:$0xff]
      %v692 = vld [vmem:[%s4 + $0x58] sm:$0xff]
      %v693 = vld [vmem:[%s5] sm:$0xff]
      %v694 = vld [vmem:[%s5 + $0x8] sm:$0xff]
      %v695 = vld [vmem:[%s5 + $0x10] sm:$0xff]
      %v696 = vld [vmem:[%s5 + $0x18] sm:$0xff]
      %709 = vrot.lane.b32.xlu0 %v669, 127
      %v710 = vpop.permute.xlu0 %709
      %711 = vrot.lane.b32.xlu0 %v670, 127
      %v712 = vpop.permute.xlu0 %711
      %713 = vrot.lane.b32.xlu0 %v671, 127
      %v714 = vpop.permute.xlu0 %713
      %715 = vrot.lane.b32.xlu0 %v672, 127
      %v716 = vpop.permute.xlu0 %715
      %717 = vrot.lane.b32.xlu0 %v673, 127
      %v718 = vpop.permute.xlu0 %717
      %719 = vrot.lane.b32.xlu0 %v674, 127
      %v720 = vpop.permute.xlu0 %719
      %721 = vrot.lane.b32.xlu0 %v675, 127
      %v722 = vpop.permute.xlu0 %721
      %723 = vrot.lane.b32.xlu0 %v676, 127
      %v724 = vpop.permute.xlu0 %723
      %725 = vrot.lane.b32.xlu0 %v677, 127
      %v726 = vpop.permute.xlu0 %725
      %727 = vrot.lane.b32.xlu0 %v678, 127
      %v728 = vpop.permute.xlu0 %727
      %729 = vrot.lane.b32.xlu0 %v679, 127
      %v730 = vpop.permute.xlu0 %729
      %731 = vrot.lane.b32.xlu0 %v680, 127
      %v732 = vpop.permute.xlu0 %731
      %v733 = vsel %vm330, %v323, %v710
      %v734 = vsel %vm330, %v710, %v712
      %v735 = vsel %vm330, %v712, %v714
      %v736 = vsel %vm330, %v323, %v716
      %v737 = vsel %vm330, %v716, %v718
      %v738 = vsel %vm330, %v718, %v720
      %v739 = vsel %vm330, %v323, %v722
      %v740 = vsel %vm330, %v722, %v724
      %v741 = vsel %vm330, %v724, %v726
      %v742 = vsel %vm330, %v323, %v728
      %v743 = vsel %vm330, %v728, %v730
      %v744 = vsel %vm330, %v730, %v732
      %745 = vrot.lane.b32.xlu0 %v669, 126
      %v746 = vpop.permute.xlu0 %745
      %747 = vrot.lane.b32.xlu0 %v670, 126
      %v748 = vpop.permute.xlu0 %747
      %749 = vrot.lane.b32.xlu0 %v671, 126
      %v750 = vpop.permute.xlu0 %749
      %751 = vrot.lane.b32.xlu0 %v672, 126
      %v752 = vpop.permute.xlu0 %751
      %753 = vrot.lane.b32.xlu0 %v673, 126
      %v754 = vpop.permute.xlu0 %753
      %755 = vrot.lane.b32.xlu0 %v674, 126
      %v756 = vpop.permute.xlu0 %755
      %757 = vrot.lane.b32.xlu0 %v675, 126
      %v758 = vpop.permute.xlu0 %757
      %759 = vrot.lane.b32.xlu0 %v676, 126
      %v760 = vpop.permute.xlu0 %759
      %761 = vrot.lane.b32.xlu0 %v677, 126
      %v762 = vpop.permute.xlu0 %761
      %763 = vrot.lane.b32.xlu0 %v678, 126
      %v764 = vpop.permute.xlu0 %763
      %765 = vrot.lane.b32.xlu0 %v679, 126
      %v766 = vpop.permute.xlu0 %765
      %767 = vrot.lane.b32.xlu0 %v680, 126
      %v768 = vpop.permute.xlu0 %767
      %v769 = vsel %vm342, %v335, %v746
      %v770 = vsel %vm342, %v746, %v748
      %v771 = vsel %vm342, %v748, %v750
      %v772 = vsel %vm342, %v335, %v752
      %v773 = vsel %vm342, %v752, %v754
      %v774 = vsel %vm342, %v754, %v756
      %v775 = vsel %vm342, %v335, %v758
      %v776 = vsel %vm342, %v758, %v760
      %v777 = vsel %vm342, %v760, %v762
      %v778 = vsel %vm342, %v335, %v764
      %v779 = vsel %vm342, %v764, %v766
      %v780 = vsel %vm342, %v766, %v768
      %781 = vrot.lane.b32.xlu0 %v669, 110
      %v782 = vpop.permute.xlu0 %781
      %783 = vrot.lane.b32.xlu0 %v670, 110
      %v784 = vpop.permute.xlu0 %783
      %785 = vrot.lane.b32.xlu0 %v671, 110
      %v786 = vpop.permute.xlu0 %785
      %787 = vrot.lane.b32.xlu0 %v672, 110
      %v788 = vpop.permute.xlu0 %787
      %789 = vrot.lane.b32.xlu0 %v673, 110
      %v790 = vpop.permute.xlu0 %789
      %791 = vrot.lane.b32.xlu0 %v674, 110
      %v792 = vpop.permute.xlu0 %791
      %793 = vrot.lane.b32.xlu0 %v675, 110
      %v794 = vpop.permute.xlu0 %793
      %795 = vrot.lane.b32.xlu0 %v676, 110
      %v796 = vpop.permute.xlu0 %795
      %797 = vrot.lane.b32.xlu0 %v677, 110
      %v798 = vpop.permute.xlu0 %797
      %799 = vrot.lane.b32.xlu0 %v678, 110
      %v800 = vpop.permute.xlu0 %799
      %801 = vrot.lane.b32.xlu0 %v679, 110
      %v802 = vpop.permute.xlu0 %801
      %803 = vrot.lane.b32.xlu0 %v680, 110
      %v804 = vpop.permute.xlu0 %803
      %v805 = vsel %vm354, %v347, %v782
      %v806 = vsel %vm354, %v782, %v784
      %v807 = vsel %vm354, %v784, %v786
      %v808 = vsel %vm354, %v347, %v788
      %v809 = vsel %vm354, %v788, %v790
      %v810 = vsel %vm354, %v790, %v792
      %v811 = vsel %vm354, %v347, %v794
      %v812 = vsel %vm354, %v794, %v796
      %v813 = vsel %vm354, %v796, %v798
      %v814 = vsel %vm354, %v347, %v800
      %v815 = vsel %vm354, %v800, %v802
      %v816 = vsel %vm354, %v802, %v804
      %817 = vrot.lane.b32.xlu0 %v669, 109
      %v818 = vpop.permute.xlu0 %817
      %819 = vrot.lane.b32.xlu0 %v670, 109
      %v820 = vpop.permute.xlu0 %819
      %821 = vrot.lane.b32.xlu0 %v671, 109
      %v822 = vpop.permute.xlu0 %821
      %823 = vrot.lane.b32.xlu0 %v672, 109
      %v824 = vpop.permute.xlu0 %823
      %825 = vrot.lane.b32.xlu0 %v673, 109
      %v826 = vpop.permute.xlu0 %825
      %827 = vrot.lane.b32.xlu0 %v674, 109
      %v828 = vpop.permute.xlu0 %827
      %829 = vrot.lane.b32.xlu0 %v675, 109
      %v830 = vpop.permute.xlu0 %829
      %831 = vrot.lane.b32.xlu0 %v676, 109
      %v832 = vpop.permute.xlu0 %831
      %833 = vrot.lane.b32.xlu0 %v677, 109
      %v834 = vpop.permute.xlu0 %833
      %835 = vrot.lane.b32.xlu0 %v678, 109
      %v836 = vpop.permute.xlu0 %835
      %837 = vrot.lane.b32.xlu0 %v679, 109
      %v838 = vpop.permute.xlu0 %837
      %839 = vrot.lane.b32.xlu0 %v680, 109
      %v840 = vpop.permute.xlu0 %839
      %v841 = vsel %vm364, %v818, %v820
      %v842 = vsel %vm364, %v820, %v822
      %v843 = vsel %vm364, %v824, %v826
      %v844 = vsel %vm364, %v826, %v828
      %v845 = vsel %vm364, %v830, %v832
      %v846 = vsel %vm364, %v832, %v834
      %v847 = vsel %vm364, %v836, %v838
      %v848 = vsel %vm364, %v838, %v840
      %849 = vrot.lane.b32.xlu0 %v669, 108
      %v850 = vpop.permute.xlu0 %849
      %851 = vrot.lane.b32.xlu0 %v670, 108
      %v852 = vpop.permute.xlu0 %851
      %853 = vrot.lane.b32.xlu0 %v671, 108
      %v854 = vpop.permute.xlu0 %853
      %855 = vrot.lane.b32.xlu0 %v672, 108
      %v856 = vpop.permute.xlu0 %855
      %857 = vrot.lane.b32.xlu0 %v673, 108
      %v858 = vpop.permute.xlu0 %857
      %859 = vrot.lane.b32.xlu0 %v674, 108
      %v860 = vpop.permute.xlu0 %859
      %861 = vrot.lane.b32.xlu0 %v675, 108
      %v862 = vpop.permute.xlu0 %861
      %863 = vrot.lane.b32.xlu0 %v676, 108
      %v864 = vpop.permute.xlu0 %863
      %865 = vrot.lane.b32.xlu0 %v677, 108
      %v866 = vpop.permute.xlu0 %865
      %867 = vrot.lane.b32.xlu0 %v678, 108
      %v868 = vpop.permute.xlu0 %867
      %869 = vrot.lane.b32.xlu0 %v679, 108
      %v870 = vpop.permute.xlu0 %869
      %871 = vrot.lane.b32.xlu0 %v680, 108
      %v872 = vpop.permute.xlu0 %871
      %v873 = vsel %vm375, %v850, %v852
      %v874 = vsel %vm375, %v852, %v854
      %v875 = vsel %vm375, %v854, %v374
      %v876 = vsel %vm375, %v856, %v858
      %v877 = vsel %vm375, %v858, %v860
      %v878 = vsel %vm375, %v860, %v374
      %v879 = vsel %vm375, %v862, %v864
      %v880 = vsel %vm375, %v864, %v866
      %v881 = vsel %vm375, %v866, %v374
      %v882 = vsel %vm375, %v868, %v870
      %v883 = vsel %vm375, %v870, %v872
      %v884 = vsel %vm375, %v872, %v374
      %885 = vrot.lane.b32.xlu0 %v669, 92
      %v886 = vpop.permute.xlu0 %885
      %887 = vrot.lane.b32.xlu0 %v670, 92
      %v888 = vpop.permute.xlu0 %887
      %889 = vrot.lane.b32.xlu0 %v671, 92
      %v890 = vpop.permute.xlu0 %889
      %891 = vrot.lane.b32.xlu0 %v672, 92
      %v892 = vpop.permute.xlu0 %891
      %893 = vrot.lane.b32.xlu0 %v673, 92
      %v894 = vpop.permute.xlu0 %893
      %895 = vrot.lane.b32.xlu0 %v674, 92
      %v896 = vpop.permute.xlu0 %895
      %897 = vrot.lane.b32.xlu0 %v675, 92
      %v898 = vpop.permute.xlu0 %897
      %899 = vrot.lane.b32.xlu0 %v676, 92
      %v900 = vpop.permute.xlu0 %899
      %901 = vrot.lane.b32.xlu0 %v677, 92
      %v902 = vpop.permute.xlu0 %901
      %903 = vrot.lane.b32.xlu0 %v678, 92
      %v904 = vpop.permute.xlu0 %903
      %905 = vrot.lane.b32.xlu0 %v679, 92
      %v906 = vpop.permute.xlu0 %905
      %907 = vrot.lane.b32.xlu0 %v680, 92
      %v908 = vpop.permute.xlu0 %907
      %v909 = vsel %vm387, %v886, %v888
      %v910 = vsel %vm387, %v888, %v890
      %v911 = vsel %vm387, %v890, %v386
      %v912 = vsel %vm387, %v892, %v894
      %v913 = vsel %vm387, %v894, %v896
      %v914 = vsel %vm387, %v896, %v386
      %v915 = vsel %vm387, %v898, %v900
      %v916 = vsel %vm387, %v900, %v902
      %v917 = vsel %vm387, %v902, %v386
      %v918 = vsel %vm387, %v904, %v906
      %v919 = vsel %vm387, %v906, %v908
      %v920 = vsel %vm387, %v908, %v386
      %921 = vrot.lane.b32.xlu0 %v669, 91
      %v922 = vpop.permute.xlu0 %921
      %923 = vrot.lane.b32.xlu0 %v670, 91
      %v924 = vpop.permute.xlu0 %923
      %925 = vrot.lane.b32.xlu0 %v671, 91
      %v926 = vpop.permute.xlu0 %925
      %927 = vrot.lane.b32.xlu0 %v672, 91
      %v928 = vpop.permute.xlu0 %927
      %929 = vrot.lane.b32.xlu0 %v673, 91
      %v930 = vpop.permute.xlu0 %929
      %931 = vrot.lane.b32.xlu0 %v674, 91
      %v932 = vpop.permute.xlu0 %931
      %933 = vrot.lane.b32.xlu0 %v675, 91
      %v934 = vpop.permute.xlu0 %933
      %935 = vrot.lane.b32.xlu0 %v676, 91
      %v936 = vpop.permute.xlu0 %935
      %937 = vrot.lane.b32.xlu0 %v677, 91
      %v938 = vpop.permute.xlu0 %937
      %939 = vrot.lane.b32.xlu0 %v678, 91
      %v940 = vpop.permute.xlu0 %939
      %941 = vrot.lane.b32.xlu0 %v679, 91
      %v942 = vpop.permute.xlu0 %941
      %943 = vrot.lane.b32.xlu0 %v680, 91
      %v944 = vpop.permute.xlu0 %943
      %v945 = vsel %vm399, %v922, %v924
      %v946 = vsel %vm399, %v924, %v926
      %v947 = vsel %vm399, %v926, %v398
      %v948 = vsel %vm399, %v928, %v930
      %v949 = vsel %vm399, %v930, %v932
      %v950 = vsel %vm399, %v932, %v398
      %v951 = vsel %vm399, %v934, %v936
      %v952 = vsel %vm399, %v936, %v938
      %v953 = vsel %vm399, %v938, %v398
      %v954 = vsel %vm399, %v940, %v942
      %v955 = vsel %vm399, %v942, %v944
      %v956 = vsel %vm399, %v944, %v398
      %957 = vrot.lane.b32.xlu0 %v669, 90
      %v958 = vpop.permute.xlu0 %957
      %959 = vrot.lane.b32.xlu0 %v670, 90
      %v960 = vpop.permute.xlu0 %959
      %961 = vrot.lane.b32.xlu0 %v671, 90
      %v962 = vpop.permute.xlu0 %961
      %963 = vrot.lane.b32.xlu0 %v672, 90
      %v964 = vpop.permute.xlu0 %963
      %965 = vrot.lane.b32.xlu0 %v673, 90
      %v966 = vpop.permute.xlu0 %965
      %967 = vrot.lane.b32.xlu0 %v674, 90
      %v968 = vpop.permute.xlu0 %967
      %969 = vrot.lane.b32.xlu0 %v675, 90
      %v970 = vpop.permute.xlu0 %969
      %971 = vrot.lane.b32.xlu0 %v676, 90
      %v972 = vpop.permute.xlu0 %971
      %973 = vrot.lane.b32.xlu0 %v677, 90
      %v974 = vpop.permute.xlu0 %973
      %975 = vrot.lane.b32.xlu0 %v678, 90
      %v976 = vpop.permute.xlu0 %975
      %977 = vrot.lane.b32.xlu0 %v679, 90
      %v978 = vpop.permute.xlu0 %977
      %979 = vrot.lane.b32.xlu0 %v680, 90
      %v980 = vpop.permute.xlu0 %979
      %v981 = vsel %vm411, %v958, %v960
      %v982 = vsel %vm411, %v960, %v962
      %v983 = vsel %vm411, %v962, %v410
      %v984 = vsel %vm411, %v964, %v966
      %v985 = vsel %vm411, %v966, %v968
      %v986 = vsel %vm411, %v968, %v410
      %v987 = vsel %vm411, %v970, %v972
      %v988 = vsel %vm411, %v972, %v974
      %v989 = vsel %vm411, %v974, %v410
      %v990 = vsel %vm411, %v976, %v978
      %v991 = vsel %vm411, %v978, %v980
      %v992 = vsel %vm411, %v980, %v410
      %994 = vset.pattern.permute.xlu0 0
      %995 = vperm.xlu0 %994, %v693
      %v996 = vpop.permute.xlu0 %995
      %999 = vset.pattern.permute.xlu0 0
      %1000 = vperm.xlu0 %999, %v694
      %v1001 = vpop.permute.xlu0 %1000
      %1004 = vset.pattern.permute.xlu0 0
      %1005 = vperm.xlu0 %1004, %v695
      %v1006 = vpop.permute.xlu0 %1005
      %1009 = vset.pattern.permute.xlu0 0
      %1010 = vperm.xlu0 %1009, %v696
      %v1011 = vpop.permute.xlu0 %1010
      %1013 = vrot.lane.b32.xlu0 %v669, 19
      %v1014 = vpop.permute.xlu0 %1013
      %1015 = vrot.lane.b32.xlu0 %v670, 19
      %v1016 = vpop.permute.xlu0 %1015
      %1017 = vrot.lane.b32.xlu0 %v671, 19
      %v1018 = vpop.permute.xlu0 %1017
      %1019 = vrot.lane.b32.xlu0 %v672, 19
      %v1020 = vpop.permute.xlu0 %1019
      %1021 = vrot.lane.b32.xlu0 %v673, 19
      %v1022 = vpop.permute.xlu0 %1021
      %1023 = vrot.lane.b32.xlu0 %v674, 19
      %v1024 = vpop.permute.xlu0 %1023
      %1025 = vrot.lane.b32.xlu0 %v675, 19
      %v1026 = vpop.permute.xlu0 %1025
      %1027 = vrot.lane.b32.xlu0 %v676, 19
      %v1028 = vpop.permute.xlu0 %1027
      %1029 = vrot.lane.b32.xlu0 %v677, 19
      %v1030 = vpop.permute.xlu0 %1029
      %1031 = vrot.lane.b32.xlu0 %v678, 19
      %v1032 = vpop.permute.xlu0 %1031
      %1033 = vrot.lane.b32.xlu0 %v679, 19
      %v1034 = vpop.permute.xlu0 %1033
      %1035 = vrot.lane.b32.xlu0 %v680, 19
      %v1036 = vpop.permute.xlu0 %1035
      %1037 = vrot.lane.b32.xlu0 %v733, 19
      %v1038 = vpop.permute.xlu0 %1037
      %1039 = vrot.lane.b32.xlu0 %v734, 19
      %v1040 = vpop.permute.xlu0 %1039
      %1041 = vrot.lane.b32.xlu0 %v735, 19
      %v1042 = vpop.permute.xlu0 %1041
      %1043 = vrot.lane.b32.xlu0 %v714, 19
      %v1044 = vpop.permute.xlu0 %1043
      %1045 = vrot.lane.b32.xlu0 %v736, 19
      %v1046 = vpop.permute.xlu0 %1045
      %1047 = vrot.lane.b32.xlu0 %v737, 19
      %v1048 = vpop.permute.xlu0 %1047
      %1049 = vrot.lane.b32.xlu0 %v738, 19
      %v1050 = vpop.permute.xlu0 %1049
      %1051 = vrot.lane.b32.xlu0 %v720, 19
      %v1052 = vpop.permute.xlu0 %1051
      %1053 = vrot.lane.b32.xlu0 %v739, 19
      %v1054 = vpop.permute.xlu0 %1053
      %1055 = vrot.lane.b32.xlu0 %v740, 19
      %v1056 = vpop.permute.xlu0 %1055
      %1057 = vrot.lane.b32.xlu0 %v741, 19
      %v1058 = vpop.permute.xlu0 %1057
      %1059 = vrot.lane.b32.xlu0 %v726, 19
      %v1060 = vpop.permute.xlu0 %1059
      %1061 = vrot.lane.b32.xlu0 %v742, 19
      %v1062 = vpop.permute.xlu0 %1061
      %1063 = vrot.lane.b32.xlu0 %v743, 19
      %v1064 = vpop.permute.xlu0 %1063
      %1065 = vrot.lane.b32.xlu0 %v744, 19
      %v1066 = vpop.permute.xlu0 %1065
      %1067 = vrot.lane.b32.xlu0 %v732, 19
      %v1068 = vpop.permute.xlu0 %1067
      %1069 = vrot.lane.b32.xlu0 %v769, 19
      %v1070 = vpop.permute.xlu0 %1069
      %1071 = vrot.lane.b32.xlu0 %v770, 19
      %v1072 = vpop.permute.xlu0 %1071
      %1073 = vrot.lane.b32.xlu0 %v771, 19
      %v1074 = vpop.permute.xlu0 %1073
      %1075 = vrot.lane.b32.xlu0 %v750, 19
      %v1076 = vpop.permute.xlu0 %1075
      %1077 = vrot.lane.b32.xlu0 %v772, 19
      %v1078 = vpop.permute.xlu0 %1077
      %1079 = vrot.lane.b32.xlu0 %v773, 19
      %v1080 = vpop.permute.xlu0 %1079
      %1081 = vrot.lane.b32.xlu0 %v774, 19
      %v1082 = vpop.permute.xlu0 %1081
      %1083 = vrot.lane.b32.xlu0 %v756, 19
      %v1084 = vpop.permute.xlu0 %1083
      %1085 = vrot.lane.b32.xlu0 %v775, 19
      %v1086 = vpop.permute.xlu0 %1085
      %1087 = vrot.lane.b32.xlu0 %v776, 19
      %v1088 = vpop.permute.xlu0 %1087
      %1089 = vrot.lane.b32.xlu0 %v777, 19
      %v1090 = vpop.permute.xlu0 %1089
      %1091 = vrot.lane.b32.xlu0 %v762, 19
      %v1092 = vpop.permute.xlu0 %1091
      %1093 = vrot.lane.b32.xlu0 %v778, 19
      %v1094 = vpop.permute.xlu0 %1093
      %1095 = vrot.lane.b32.xlu0 %v779, 19
      %v1096 = vpop.permute.xlu0 %1095
      %1097 = vrot.lane.b32.xlu0 %v780, 19
      %v1098 = vpop.permute.xlu0 %1097
      %1099 = vrot.lane.b32.xlu0 %v768, 19
      %v1100 = vpop.permute.xlu0 %1099
      %1101 = vrot.lane.b32.xlu0 %v805, 19
      %v1102 = vpop.permute.xlu0 %1101
      %1103 = vrot.lane.b32.xlu0 %v806, 19
      %v1104 = vpop.permute.xlu0 %1103
      %1105 = vrot.lane.b32.xlu0 %v807, 19
      %v1106 = vpop.permute.xlu0 %1105
      %1107 = vrot.lane.b32.xlu0 %v786, 19
      %v1108 = vpop.permute.xlu0 %1107
      %1109 = vrot.lane.b32.xlu0 %v808, 19
      %v1110 = vpop.permute.xlu0 %1109
      %1111 = vrot.lane.b32.xlu0 %v809, 19
      %v1112 = vpop.permute.xlu0 %1111
      %1113 = vrot.lane.b32.xlu0 %v810, 19
      %v1114 = vpop.permute.xlu0 %1113
      %1115 = vrot.lane.b32.xlu0 %v792, 19
      %v1116 = vpop.permute.xlu0 %1115
      %1117 = vrot.lane.b32.xlu0 %v811, 19
      %v1118 = vpop.permute.xlu0 %1117
      %1119 = vrot.lane.b32.xlu0 %v812, 19
      %v1120 = vpop.permute.xlu0 %1119
      %1121 = vrot.lane.b32.xlu0 %v813, 19
      %v1122 = vpop.permute.xlu0 %1121
      %1123 = vrot.lane.b32.xlu0 %v798, 19
      %v1124 = vpop.permute.xlu0 %1123
      %1125 = vrot.lane.b32.xlu0 %v814, 19
      %v1126 = vpop.permute.xlu0 %1125
      %1127 = vrot.lane.b32.xlu0 %v815, 19
      %v1128 = vpop.permute.xlu0 %1127
      %1129 = vrot.lane.b32.xlu0 %v816, 19
      %v1130 = vpop.permute.xlu0 %1129
      %1131 = vrot.lane.b32.xlu0 %v804, 19
      %v1132 = vpop.permute.xlu0 %1131
      %1133 = vrot.lane.b32.xlu0 %v818, 19
      %v1134 = vpop.permute.xlu0 %1133
      %1135 = vrot.lane.b32.xlu0 %v841, 19
      %v1136 = vpop.permute.xlu0 %1135
      %1137 = vrot.lane.b32.xlu0 %v842, 19
      %v1138 = vpop.permute.xlu0 %1137
      %1139 = vrot.lane.b32.xlu0 %v822, 19
      %v1140 = vpop.permute.xlu0 %1139
      %1141 = vrot.lane.b32.xlu0 %v824, 19
      %v1142 = vpop.permute.xlu0 %1141
      %1143 = vrot.lane.b32.xlu0 %v843, 19
      %v1144 = vpop.permute.xlu0 %1143
      %1145 = vrot.lane.b32.xlu0 %v844, 19
      %v1146 = vpop.permute.xlu0 %1145
      %1147 = vrot.lane.b32.xlu0 %v828, 19
      %v1148 = vpop.permute.xlu0 %1147
      %1149 = vrot.lane.b32.xlu0 %v830, 19
      %v1150 = vpop.permute.xlu0 %1149
      %1151 = vrot.lane.b32.xlu0 %v845, 19
      %v1152 = vpop.permute.xlu0 %1151
      %1153 = vrot.lane.b32.xlu0 %v846, 19
      %v1154 = vpop.permute.xlu0 %1153
      %1155 = vrot.lane.b32.xlu0 %v834, 19
      %v1156 = vpop.permute.xlu0 %1155
      %1157 = vrot.lane.b32.xlu0 %v836, 19
      %v1158 = vpop.permute.xlu0 %1157
      %1159 = vrot.lane.b32.xlu0 %v847, 19
      %v1160 = vpop.permute.xlu0 %1159
      %1161 = vrot.lane.b32.xlu0 %v848, 19
      %v1162 = vpop.permute.xlu0 %1161
      %1163 = vrot.lane.b32.xlu0 %v840, 19
      %v1164 = vpop.permute.xlu0 %1163
      %1165 = vrot.lane.b32.xlu0 %v850, 19
      %v1166 = vpop.permute.xlu0 %1165
      %1167 = vrot.lane.b32.xlu0 %v873, 19
      %v1168 = vpop.permute.xlu0 %1167
      %1169 = vrot.lane.b32.xlu0 %v874, 19
      %v1170 = vpop.permute.xlu0 %1169
      %1171 = vrot.lane.b32.xlu0 %v875, 19
      %v1172 = vpop.permute.xlu0 %1171
      %1173 = vrot.lane.b32.xlu0 %v856, 19
      %v1174 = vpop.permute.xlu0 %1173
      %1175 = vrot.lane.b32.xlu0 %v876, 19
      %v1176 = vpop.permute.xlu0 %1175
      %1177 = vrot.lane.b32.xlu0 %v877, 19
      %v1178 = vpop.permute.xlu0 %1177
      %1179 = vrot.lane.b32.xlu0 %v878, 19
      %v1180 = vpop.permute.xlu0 %1179
      %1181 = vrot.lane.b32.xlu0 %v862, 19
      %v1182 = vpop.permute.xlu0 %1181
      %1183 = vrot.lane.b32.xlu0 %v879, 19
      %v1184 = vpop.permute.xlu0 %1183
      %1185 = vrot.lane.b32.xlu0 %v880, 19
      %v1186 = vpop.permute.xlu0 %1185
      %1187 = vrot.lane.b32.xlu0 %v881, 19
      %v1188 = vpop.permute.xlu0 %1187
      %1189 = vrot.lane.b32.xlu0 %v868, 19
      %v1190 = vpop.permute.xlu0 %1189
      %1191 = vrot.lane.b32.xlu0 %v882, 19
      %v1192 = vpop.permute.xlu0 %1191
      %1193 = vrot.lane.b32.xlu0 %v883, 19
      %v1194 = vpop.permute.xlu0 %1193
      %1195 = vrot.lane.b32.xlu0 %v884, 19
      %v1196 = vpop.permute.xlu0 %1195
      %1197 = vrot.lane.b32.xlu0 %v886, 19
      %v1198 = vpop.permute.xlu0 %1197
      %1199 = vrot.lane.b32.xlu0 %v909, 19
      %v1200 = vpop.permute.xlu0 %1199
      %1201 = vrot.lane.b32.xlu0 %v910, 19
      %v1202 = vpop.permute.xlu0 %1201
      %1203 = vrot.lane.b32.xlu0 %v911, 19
      %v1204 = vpop.permute.xlu0 %1203
      %1205 = vrot.lane.b32.xlu0 %v892, 19
      %v1206 = vpop.permute.xlu0 %1205
      %1207 = vrot.lane.b32.xlu0 %v912, 19
      %v1208 = vpop.permute.xlu0 %1207
      %1209 = vrot.lane.b32.xlu0 %v913, 19
      %v1210 = vpop.permute.xlu0 %1209
      %1211 = vrot.lane.b32.xlu0 %v914, 19
      %v1212 = vpop.permute.xlu0 %1211
      %1213 = vrot.lane.b32.xlu0 %v898, 19
      %v1214 = vpop.permute.xlu0 %1213
      %1215 = vrot.lane.b32.xlu0 %v915, 19
      %v1216 = vpop.permute.xlu0 %1215
      %1217 = vrot.lane.b32.xlu0 %v916, 19
      %v1218 = vpop.permute.xlu0 %1217
      %1219 = vrot.lane.b32.xlu0 %v917, 19
      %v1220 = vpop.permute.xlu0 %1219
      %1221 = vrot.lane.b32.xlu0 %v904, 19
      %v1222 = vpop.permute.xlu0 %1221
      %1223 = vrot.lane.b32.xlu0 %v918, 19
      %v1224 = vpop.permute.xlu0 %1223
      %1225 = vrot.lane.b32.xlu0 %v919, 19
      %v1226 = vpop.permute.xlu0 %1225
      %1227 = vrot.lane.b32.xlu0 %v920, 19
      %v1228 = vpop.permute.xlu0 %1227
      %1229 = vrot.lane.b32.xlu0 %v922, 19
      %v1230 = vpop.permute.xlu0 %1229
      %1231 = vrot.lane.b32.xlu0 %v945, 19
      %v1232 = vpop.permute.xlu0 %1231
      %1233 = vrot.lane.b32.xlu0 %v946, 19
      %v1234 = vpop.permute.xlu0 %1233
      %1235 = vrot.lane.b32.xlu0 %v947, 19
      %v1236 = vpop.permute.xlu0 %1235
      %1237 = vrot.lane.b32.xlu0 %v928, 19
      %v1238 = vpop.permute.xlu0 %1237
      %1239 = vrot.lane.b32.xlu0 %v948, 19
      %v1240 = vpop.permute.xlu0 %1239
      %1241 = vrot.lane.b32.xlu0 %v949, 19
      %v1242 = vpop.permute.xlu0 %1241
      %1243 = vrot.lane.b32.xlu0 %v950, 19
      %v1244 = vpop.permute.xlu0 %1243
      %1245 = vrot.lane.b32.xlu0 %v934, 19
      %v1246 = vpop.permute.xlu0 %1245
      %1247 = vrot.lane.b32.xlu0 %v951, 19
      %v1248 = vpop.permute.xlu0 %1247
      %1249 = vrot.lane.b32.xlu0 %v952, 19
      %v1250 = vpop.permute.xlu0 %1249
      %1251 = vrot.lane.b32.xlu0 %v953, 19
      %v1252 = vpop.permute.xlu0 %1251
      %1253 = vrot.lane.b32.xlu0 %v940, 19
      %v1254 = vpop.permute.xlu0 %1253
      %1255 = vrot.lane.b32.xlu0 %v954, 19
      %v1256 = vpop.permute.xlu0 %1255
      %1257 = vrot.lane.b32.xlu0 %v955, 19
      %v1258 = vpop.permute.xlu0 %1257
      %1259 = vrot.lane.b32.xlu0 %v956, 19
      %v1260 = vpop.permute.xlu0 %1259
      %1261 = vrot.lane.b32.xlu0 %v958, 19
      %v1262 = vpop.permute.xlu0 %1261
      %1263 = vrot.lane.b32.xlu0 %v981, 19
      %v1264 = vpop.permute.xlu0 %1263
      %1265 = vrot.lane.b32.xlu0 %v982, 19
      %v1266 = vpop.permute.xlu0 %1265
      %1267 = vrot.lane.b32.xlu0 %v983, 19
      %v1268 = vpop.permute.xlu0 %1267
      %1269 = vrot.lane.b32.xlu0 %v964, 19
      %v1270 = vpop.permute.xlu0 %1269
      %1271 = vrot.lane.b32.xlu0 %v984, 19
      %v1272 = vpop.permute.xlu0 %1271
      %1273 = vrot.lane.b32.xlu0 %v985, 19
      %v1274 = vpop.permute.xlu0 %1273
      %1275 = vrot.lane.b32.xlu0 %v986, 19
      %v1276 = vpop.permute.xlu0 %1275
      %1277 = vrot.lane.b32.xlu0 %v970, 19
      %v1278 = vpop.permute.xlu0 %1277
      %1279 = vrot.lane.b32.xlu0 %v987, 19
      %v1280 = vpop.permute.xlu0 %1279
      %1281 = vrot.lane.b32.xlu0 %v988, 19
      %v1282 = vpop.permute.xlu0 %1281
      %1283 = vrot.lane.b32.xlu0 %v989, 19
      %v1284 = vpop.permute.xlu0 %1283
      %1285 = vrot.lane.b32.xlu0 %v976, 19
      %v1286 = vpop.permute.xlu0 %1285
      %1287 = vrot.lane.b32.xlu0 %v990, 19
      %v1288 = vpop.permute.xlu0 %1287
      %1289 = vrot.lane.b32.xlu0 %v991, 19
      %v1290 = vpop.permute.xlu0 %1289
      %1291 = vrot.lane.b32.xlu0 %v992, 19
      %v1292 = vpop.permute.xlu0 %1291
      %v1293 = vsel %vm507, %v436, %v1014
      %v1294 = vsel %vm507, %v1014, %v1016
      %v1295 = vsel %vm507, %v1016, %v1018
      %v1296 = vsel %vm507, %v436, %v1020
      %v1297 = vsel %vm507, %v1020, %v1022
      %v1298 = vsel %vm507, %v1022, %v1024
      %v1299 = vsel %vm507, %v436, %v1026
      %v1300 = vsel %vm507, %v1026, %v1028
      %v1301 = vsel %vm507, %v1028, %v1030
      %v1302 = vsel %vm507, %v436, %v1032
      %v1303 = vsel %vm507, %v1032, %v1034
      %v1304 = vsel %vm507, %v1034, %v1036
      %v1305 = vsel %vm507, %v1038, %v1040
      %v1306 = vsel %vm507, %v1040, %v1042
      %v1307 = vsel %vm507, %v1042, %v1044
      %v1308 = vsel %vm507, %v1046, %v1048
      %v1309 = vsel %vm507, %v1048, %v1050
      %v1310 = vsel %vm507, %v1050, %v1052
      %v1311 = vsel %vm507, %v1054, %v1056
      %v1312 = vsel %vm507, %v1056, %v1058
      %v1313 = vsel %vm507, %v1058, %v1060
      %v1314 = vsel %vm507, %v1062, %v1064
      %v1315 = vsel %vm507, %v1064, %v1066
      %v1316 = vsel %vm507, %v1066, %v1068
      %v1317 = vsel %vm507, %v1070, %v1072
      %v1318 = vsel %vm507, %v1072, %v1074
      %v1319 = vsel %vm507, %v1074, %v1076
      %v1320 = vsel %vm507, %v1078, %v1080
      %v1321 = vsel %vm507, %v1080, %v1082
      %v1322 = vsel %vm507, %v1082, %v1084
      %v1323 = vsel %vm507, %v1086, %v1088
      %v1324 = vsel %vm507, %v1088, %v1090
      %v1325 = vsel %vm507, %v1090, %v1092
      %v1326 = vsel %vm507, %v1094, %v1096
      %v1327 = vsel %vm507, %v1096, %v1098
      %v1328 = vsel %vm507, %v1098, %v1100
      %v1329 = vsel %vm507, %v1102, %v1104
      %v1330 = vsel %vm507, %v1104, %v1106
      %v1331 = vsel %vm507, %v1106, %v1108
      %v1332 = vsel %vm507, %v1110, %v1112
      %v1333 = vsel %vm507, %v1112, %v1114
      %v1334 = vsel %vm507, %v1114, %v1116
      %v1335 = vsel %vm507, %v1118, %v1120
      %v1336 = vsel %vm507, %v1120, %v1122
      %v1337 = vsel %vm507, %v1122, %v1124
      %v1338 = vsel %vm507, %v1126, %v1128
      %v1339 = vsel %vm507, %v1128, %v1130
      %v1340 = vsel %vm507, %v1130, %v1132
      %v1341 = vsel %vm507, %v1134, %v1136
      %v1342 = vsel %vm507, %v1136, %v1138
      %v1343 = vsel %vm507, %v1138, %v1140
      %v1344 = vsel %vm507, %v1142, %v1144
      %v1345 = vsel %vm507, %v1144, %v1146
      %v1346 = vsel %vm507, %v1146, %v1148
      %v1347 = vsel %vm507, %v1150, %v1152
      %v1348 = vsel %vm507, %v1152, %v1154
      %v1349 = vsel %vm507, %v1154, %v1156
      %v1350 = vsel %vm507, %v1158, %v1160
      %v1351 = vsel %vm507, %v1160, %v1162
      %v1352 = vsel %vm507, %v1162, %v1164
      %v1353 = vsel %vm507, %v1166, %v1168
      %v1354 = vsel %vm507, %v1168, %v1170
      %v1355 = vsel %vm507, %v1170, %v1172
      %v1356 = vsel %vm507, %v1174, %v1176
      %v1357 = vsel %vm507, %v1176, %v1178
      %v1358 = vsel %vm507, %v1178, %v1180
      %v1359 = vsel %vm507, %v1182, %v1184
      %v1360 = vsel %vm507, %v1184, %v1186
      %v1361 = vsel %vm507, %v1186, %v1188
      %v1362 = vsel %vm507, %v1190, %v1192
      %v1363 = vsel %vm507, %v1192, %v1194
      %v1364 = vsel %vm507, %v1194, %v1196
      %v1365 = vsel %vm507, %v1198, %v1200
      %v1366 = vsel %vm507, %v1200, %v1202
      %v1367 = vsel %vm507, %v1202, %v1204
      %v1368 = vsel %vm507, %v1206, %v1208
      %v1369 = vsel %vm507, %v1208, %v1210
      %v1370 = vsel %vm507, %v1210, %v1212
      %v1371 = vsel %vm507, %v1214, %v1216
      %v1372 = vsel %vm507, %v1216, %v1218
      %v1373 = vsel %vm507, %v1218, %v1220
      %v1374 = vsel %vm507, %v1222, %v1224
      %v1375 = vsel %vm507, %v1224, %v1226
      %v1376 = vsel %vm507, %v1226, %v1228
      %v1377 = vsel %vm507, %v1230, %v1232
      %v1378 = vsel %vm507, %v1232, %v1234
      %v1379 = vsel %vm507, %v1234, %v1236
      %v1380 = vsel %vm507, %v1238, %v1240
      %v1381 = vsel %vm507, %v1240, %v1242
      %v1382 = vsel %vm507, %v1242, %v1244
      %v1383 = vsel %vm507, %v1246, %v1248
      %v1384 = vsel %vm507, %v1248, %v1250
      %v1385 = vsel %vm507, %v1250, %v1252
      %v1386 = vsel %vm507, %v1254, %v1256
      %v1387 = vsel %vm507, %v1256, %v1258
      %v1388 = vsel %vm507, %v1258, %v1260
      %v1389 = vsel %vm507, %v1262, %v1264
      %v1390 = vsel %vm507, %v1264, %v1266
      %v1391 = vsel %vm507, %v1266, %v1268
      %v1392 = vsel %vm507, %v1270, %v1272
      %v1393 = vsel %vm507, %v1272, %v1274
      %v1394 = vsel %vm507, %v1274, %v1276
      %v1395 = vsel %vm507, %v1278, %v1280
      %v1396 = vsel %vm507, %v1280, %v1282
      %v1397 = vsel %vm507, %v1282, %v1284
      %v1398 = vsel %vm507, %v1286, %v1288
      %v1399 = vsel %vm507, %v1288, %v1290
      %v1400 = vsel %vm507, %v1290, %v1292
      %vm1509 = vcmask 261120
      %v1511 = vsel %vm1509, %v683, 0
      %v1514 = vsel %vm1509, %v686, 0
      %v1517 = vsel %vm1509, %v689, 0
      %v1520 = vsel %vm1509, %v692, 0
      %1522 = vmatpush.msra.mxu0 %v1338
      %1523 = vmatpush.msra.mxu0 %v1335
      %1524 = vmatpush.msra.mxu0 %v1332
      %1525 = vmatpush.msra.mxu0 %v1329
      %1526 = vmatpush.msra.mxu0 %v1326
      %1527 = vmatpush.msra.mxu0 %v1323
      %1528 = vmatpush.msra.mxu0 %v1320
      %1529 = vmatpush.msra.mxu0 %v1317
      %1530 = vmatpush.msra.mxu0 %v1314
      %1531 = vmatpush.msra.mxu0 %v1311
      %1532 = vmatpush.msra.mxu0 %v1308
      %1533 = vmatpush.msra.mxu0 %v1305
      %1534 = vmatpush.msra.mxu0 %v1302
      %1535 = vmatpush.msra.mxu0 %v1299
      %1536 = vmatpush.msra.mxu0 %v1296
      %1537 = vmatpush.msra.mxu0 %v1293
      %1538 = vmatmul.f32.gmra.mxu0 %v681
      %v1539 = vpop.f32.mrf.mxu0
      %v1540 = vadd.f32 %v996, %v1539
      %1541 = vmatmul.f32.gmra.mxu0 %v684
      %v1542 = vpop.f32.mrf.mxu0
      %v1543 = vadd.f32 %v1001, %v1542
      %1544 = vmatmul.f32.gmra.mxu0 %v687
      %v1545 = vpop.f32.mrf.mxu0
      %v1546 = vadd.f32 %v1006, %v1545
      %1547 = vmatmul.f32.gmra.mxu0 %v690
      %v1548 = vpop.f32.mrf.mxu0
      %v1549 = vadd.f32 %v1011, %v1548
      %1550 = vdwg.mxu0
      %1551 = vmatpush.msra.mxu0 %v1386
      %1552 = vmatpush.msra.mxu0 %v1383
      %1553 = vmatpush.msra.mxu0 %v1380
      %1554 = vmatpush.msra.mxu0 %v1377
      %1555 = vmatpush.msra.mxu0 %v1374
      %1556 = vmatpush.msra.mxu0 %v1371
      %1557 = vmatpush.msra.mxu0 %v1368
      %1558 = vmatpush.msra.mxu0 %v1365
      %1559 = vmatpush.msra.mxu0 %v1362
      %1560 = vmatpush.msra.mxu0 %v1359
      %1561 = vmatpush.msra.mxu0 %v1356
      %1562 = vmatpush.msra.mxu0 %v1353
      %1563 = vmatpush.msra.mxu0 %v1350
      %1564 = vmatpush.msra.mxu0 %v1347
      %1565 = vmatpush.msra.mxu0 %v1344
      %1566 = vmatpush.msra.mxu0 %v1341
      %1567 = vmatmul.f32.gmra.mxu0 %v682
      %v1568 = vpop.f32.mrf.mxu0
      %v1569 = vadd.f32 %v1540, %v1568
      %1570 = vmatmul.f32.gmra.mxu0 %v685
      %v1571 = vpop.f32.mrf.mxu0
      %v1572 = vadd.f32 %v1543, %v1571
      %1573 = vmatmul.f32.gmra.mxu0 %v688
      %v1574 = vpop.f32.mrf.mxu0
      %v1575 = vadd.f32 %v1546, %v1574
      %1576 = vmatmul.f32.gmra.mxu0 %v691
      %v1577 = vpop.f32.mrf.mxu0
      %v1578 = vadd.f32 %v1549, %v1577
      %1579 = vdwg.mxu0
      %1580 = vmatpush.msra.mxu0 0.0
      %1581 = vmatpush.msra.mxu0 0.0
      %1582 = vmatpush.msra.mxu0 0.0
      %1583 = vmatpush.msra.mxu0 0.0
      %1584 = vmatpush.msra.mxu0 0.0
      %1585 = vmatpush.msra.mxu0 0.0
      %1586 = vmatpush.msra.mxu0 0.0
      %1587 = vmatpush.msra.mxu0 0.0
      %1588 = vmatpush.msra.mxu0 0.0
      %1589 = vmatpush.msra.mxu0 0.0
      %1590 = vmatpush.msra.mxu0 0.0
      %1591 = vmatpush.msra.mxu0 0.0
      %1592 = vmatpush.msra.mxu0 %v1398
      %1593 = vmatpush.msra.mxu0 %v1395
      %1594 = vmatpush.msra.mxu0 %v1392
      %1595 = vmatpush.msra.mxu0 %v1389
      %1596 = vmatmul.f32.gmra.mxu0 %v1511
      %v1597 = vpop.f32.mrf.mxu0
      %v1598 = vadd.f32 %v1569, %v1597
      %1599 = vmatmul.f32.gmra.mxu0 %v1514
      %v1600 = vpop.f32.mrf.mxu0
      %v1601 = vadd.f32 %v1572, %v1600
      %1602 = vmatmul.f32.gmra.mxu0 %v1517
      %v1603 = vpop.f32.mrf.mxu0
      %v1604 = vadd.f32 %v1575, %v1603
      %1605 = vmatmul.f32.gmra.mxu0 %v1520
      %v1606 = vpop.f32.mrf.mxu0
      %v1607 = vadd.f32 %v1578, %v1606
      %1608 = vdwg.mxu0
      %1609 = vmatpush.msra.mxu0 %v1339
      %1610 = vmatpush.msra.mxu0 %v1336
      %1611 = vmatpush.msra.mxu0 %v1333
      %1612 = vmatpush.msra.mxu0 %v1330
      %1613 = vmatpush.msra.mxu0 %v1327
      %1614 = vmatpush.msra.mxu0 %v1324
      %1615 = vmatpush.msra.mxu0 %v1321
      %1616 = vmatpush.msra.mxu0 %v1318
      %1617 = vmatpush.msra.mxu0 %v1315
      %1618 = vmatpush.msra.mxu0 %v1312
      %1619 = vmatpush.msra.mxu0 %v1309
      %1620 = vmatpush.msra.mxu0 %v1306
      %1621 = vmatpush.msra.mxu0 %v1303
      %1622 = vmatpush.msra.mxu0 %v1300
      %1623 = vmatpush.msra.mxu0 %v1297
      %1624 = vmatpush.msra.mxu0 %v1294
      %1625 = vmatmul.f32.gmra.mxu0 %v681
      %v1626 = vpop.f32.mrf.mxu0
      %v1627 = vadd.f32 %v996, %v1626
      %1628 = vmatmul.f32.gmra.mxu0 %v684
      %v1629 = vpop.f32.mrf.mxu0
      %v1630 = vadd.f32 %v1001, %v1629
      %1631 = vmatmul.f32.gmra.mxu0 %v687
      %v1632 = vpop.f32.mrf.mxu0
      %v1633 = vadd.f32 %v1006, %v1632
      %1634 = vmatmul.f32.gmra.mxu0 %v690
      %v1635 = vpop.f32.mrf.mxu0
      %v1636 = vadd.f32 %v1011, %v1635
      %1637 = vdwg.mxu0
      %1638 = vmatpush.msra.mxu0 %v1387
      %1639 = vmatpush.msra.mxu0 %v1384
      %1640 = vmatpush.msra.mxu0 %v1381
      %1641 = vmatpush.msra.mxu0 %v1378
      %1642 = vmatpush.msra.mxu0 %v1375
      %1643 = vmatpush.msra.mxu0 %v1372
      %1644 = vmatpush.msra.mxu0 %v1369
      %1645 = vmatpush.msra.mxu0 %v1366
      %1646 = vmatpush.msra.mxu0 %v1363
      %1647 = vmatpush.msra.mxu0 %v1360
      %1648 = vmatpush.msra.mxu0 %v1357
      %1649 = vmatpush.msra.mxu0 %v1354
      %1650 = vmatpush.msra.mxu0 %v1351
      %1651 = vmatpush.msra.mxu0 %v1348
      %1652 = vmatpush.msra.mxu0 %v1345
      %1653 = vmatpush.msra.mxu0 %v1342
      %1654 = vmatmul.f32.gmra.mxu0 %v682
      %v1655 = vpop.f32.mrf.mxu0
      %v1656 = vadd.f32 %v1627, %v1655
      %1657 = vmatmul.f32.gmra.mxu0 %v685
      %v1658 = vpop.f32.mrf.mxu0
      %v1659 = vadd.f32 %v1630, %v1658
      %1660 = vmatmul.f32.gmra.mxu0 %v688
      %v1661 = vpop.f32.mrf.mxu0
      %v1662 = vadd.f32 %v1633, %v1661
      %1663 = vmatmul.f32.gmra.mxu0 %v691
      %v1664 = vpop.f32.mrf.mxu0
      %v1665 = vadd.f32 %v1636, %v1664
      %1666 = vdwg.mxu0
      %1667 = vmatpush.msra.mxu0 0.0
      %1668 = vmatpush.msra.mxu0 0.0
      %1669 = vmatpush.msra.mxu0 0.0
      %1670 = vmatpush.msra.mxu0 0.0
      %1671 = vmatpush.msra.mxu0 0.0
      %1672 = vmatpush.msra.mxu0 0.0
      %1673 = vmatpush.msra.mxu0 0.0
      %1674 = vmatpush.msra.mxu0 0.0
      %1675 = vmatpush.msra.mxu0 0.0
      %1676 = vmatpush.msra.mxu0 0.0
      %1677 = vmatpush.msra.mxu0 0.0
      %1678 = vmatpush.msra.mxu0 0.0
      %1679 = vmatpush.msra.mxu0 %v1399
      %1680 = vmatpush.msra.mxu0 %v1396
      %1681 = vmatpush.msra.mxu0 %v1393
      %1682 = vmatpush.msra.mxu0 %v1390
      %1683 = vmatmul.f32.gmra.mxu0 %v1511
      %v1684 = vpop.f32.mrf.mxu0
      %v1685 = vadd.f32 %v1656, %v1684
      %1686 = vmatmul.f32.gmra.mxu0 %v1514
      %v1687 = vpop.f32.mrf.mxu0
      %v1688 = vadd.f32 %v1659, %v1687
      %1689 = vmatmul.f32.gmra.mxu0 %v1517
      %v1690 = vpop.f32.mrf.mxu0
      %v1691 = vadd.f32 %v1662, %v1690
      %1692 = vmatmul.f32.gmra.mxu0 %v1520
      %v1693 = vpop.f32.mrf.mxu0
      %v1694 = vadd.f32 %v1665, %v1693
      %1695 = vdwg.mxu0
      %1696 = vmatpush.msra.mxu0 %v1340
      %1697 = vmatpush.msra.mxu0 %v1337
      %1698 = vmatpush.msra.mxu0 %v1334
      %1699 = vmatpush.msra.mxu0 %v1331
      %1700 = vmatpush.msra.mxu0 %v1328
      %1701 = vmatpush.msra.mxu0 %v1325
      %1702 = vmatpush.msra.mxu0 %v1322
      %1703 = vmatpush.msra.mxu0 %v1319
      %1704 = vmatpush.msra.mxu0 %v1316
      %1705 = vmatpush.msra.mxu0 %v1313
      %1706 = vmatpush.msra.mxu0 %v1310
      %1707 = vmatpush.msra.mxu0 %v1307
      %1708 = vmatpush.msra.mxu0 %v1304
      %1709 = vmatpush.msra.mxu0 %v1301
      %1710 = vmatpush.msra.mxu0 %v1298
      %1711 = vmatpush.msra.mxu0 %v1295
      %1712 = vmatmul.f32.gmra.mxu0 %v681
      %v1713 = vpop.f32.mrf.mxu0
      %v1714 = vadd.f32 %v996, %v1713
      %1715 = vmatmul.f32.gmra.mxu0 %v684
      %v1716 = vpop.f32.mrf.mxu0
      %v1717 = vadd.f32 %v1001, %v1716
      %1718 = vmatmul.f32.gmra.mxu0 %v687
      %v1719 = vpop.f32.mrf.mxu0
      %v1720 = vadd.f32 %v1006, %v1719
      %1721 = vmatmul.f32.gmra.mxu0 %v690
      %v1722 = vpop.f32.mrf.mxu0
      %v1723 = vadd.f32 %v1011, %v1722
      %1724 = vdwg.mxu0
      %1725 = vmatpush.msra.mxu0 %v1388
      %1726 = vmatpush.msra.mxu0 %v1385
      %1727 = vmatpush.msra.mxu0 %v1382
      %1728 = vmatpush.msra.mxu0 %v1379
      %1729 = vmatpush.msra.mxu0 %v1376
      %1730 = vmatpush.msra.mxu0 %v1373
      %1731 = vmatpush.msra.mxu0 %v1370
      %1732 = vmatpush.msra.mxu0 %v1367
      %1733 = vmatpush.msra.mxu0 %v1364
      %1734 = vmatpush.msra.mxu0 %v1361
      %1735 = vmatpush.msra.mxu0 %v1358
      %1736 = vmatpush.msra.mxu0 %v1355
      %1737 = vmatpush.msra.mxu0 %v1352
      %1738 = vmatpush.msra.mxu0 %v1349
      %1739 = vmatpush.msra.mxu0 %v1346
      %1740 = vmatpush.msra.mxu0 %v1343
      %1741 = vmatmul.f32.gmra.mxu0 %v682
      %v1742 = vpop.f32.mrf.mxu0
      %v1743 = vadd.f32 %v1714, %v1742
      %1744 = vmatmul.f32.gmra.mxu0 %v685
      %v1745 = vpop.f32.mrf.mxu0
      %v1746 = vadd.f32 %v1717, %v1745
      %1747 = vmatmul.f32.gmra.mxu0 %v688
      %v1748 = vpop.f32.mrf.mxu0
      %v1749 = vadd.f32 %v1720, %v1748
      %1750 = vmatmul.f32.gmra.mxu0 %v691
      %v1751 = vpop.f32.mrf.mxu0
      %v1752 = vadd.f32 %v1723, %v1751
      %1753 = vdwg.mxu0
      %1754 = vmatpush.msra.mxu0 0.0
      %1755 = vmatpush.msra.mxu0 0.0
      %1756 = vmatpush.msra.mxu0 0.0
      %1757 = vmatpush.msra.mxu0 0.0
      %1758 = vmatpush.msra.mxu0 0.0
      %1759 = vmatpush.msra.mxu0 0.0
      %1760 = vmatpush.msra.mxu0 0.0
      %1761 = vmatpush.msra.mxu0 0.0
      %1762 = vmatpush.msra.mxu0 0.0
      %1763 = vmatpush.msra.mxu0 0.0
      %1764 = vmatpush.msra.mxu0 0.0
      %1765 = vmatpush.msra.mxu0 0.0
      %1766 = vmatpush.msra.mxu0 %v1400
      %1767 = vmatpush.msra.mxu0 %v1397
      %1768 = vmatpush.msra.mxu0 %v1394
      %1769 = vmatpush.msra.mxu0 %v1391
      %1770 = vmatmul.f32.gmra.mxu0 %v1511
      %v1771 = vpop.f32.mrf.mxu0
      %v1772 = vadd.f32 %v1743, %v1771
      %1773 = vmatmul.f32.gmra.mxu0 %v1514
      %v1774 = vpop.f32.mrf.mxu0
      %v1775 = vadd.f32 %v1746, %v1774
      %1776 = vmatmul.f32.gmra.mxu0 %v1517
      %v1777 = vpop.f32.mrf.mxu0
      %v1778 = vadd.f32 %v1749, %v1777
      %1779 = vmatmul.f32.gmra.mxu0 %v1520
      %v1780 = vpop.f32.mrf.mxu0
      %v1781 = vadd.f32 %v1752, %v1780
      %1782 = vdwg.mxu0
      %v1783 = vmax.f32 %v1598, 0.0
      %v1784 = vmax.f32 %v1685, 0.0
      %v1785 = vmax.f32 %v1772, 0.0
      %v1786 = vmax.f32 %v1601, 0.0
      %v1787 = vmax.f32 %v1688, 0.0
      %v1788 = vmax.f32 %v1775, 0.0
      %v1789 = vmax.f32 %v1604, 0.0
      %v1790 = vmax.f32 %v1691, 0.0
      %v1791 = vmax.f32 %v1778, 0.0
      %v1792 = vmax.f32 %v1607, 0.0
      %v1793 = vmax.f32 %v1694, 0.0
      %v1794 = vmax.f32 %v1781, 0.0
      %v1795 = vmul.f32 %v1783, %v663
      %v1796 = vmul.f32 %v1784, %v664
      %v1797 = vmul.f32 %v1785, %v665
      %v1798 = vmul.f32 %v1786, %v663
      %v1799 = vmul.f32 %v1787, %v664
      %v1800 = vmul.f32 %v1788, %v665
      %v1801 = vmul.f32 %v1789, %v663
      %v1802 = vmul.f32 %v1790, %v664
      %v1803 = vmul.f32 %v1791, %v665
      %v1804 = vmul.f32 %v1792, %v663
      %v1805 = vmul.f32 %v1793, %v664
      %v1806 = vmul.f32 %v1794, %v665
      %s1807 = scalar_lea.vmem %s4, 96
      %v1808 = vld [vmem:[%s1807] sm:$0xff]
      %v1809 = vld [vmem:[%s1807 + $0x8] sm:$0xff]
      %v1810 = vld [vmem:[%s1807 + $0x10] sm:$0xff]
      %v1811 = vld [vmem:[%s1807 + $0x18] sm:$0xff]
      %v1812 = vld [vmem:[%s1807 + $0x20] sm:$0xff]
      %v1813 = vld [vmem:[%s1807 + $0x28] sm:$0xff]
      %v1814 = vld [vmem:[%s1807 + $0x30] sm:$0xff]
      %v1815 = vld [vmem:[%s1807 + $0x38] sm:$0xff]
      %v1816 = vld [vmem:[%s1807 + $0x40] sm:$0xff]
      %v1817 = vld [vmem:[%s1807 + $0x48] sm:$0xff]
      %v1818 = vld [vmem:[%s1807 + $0x50] sm:$0xff]
      %v1819 = vld [vmem:[%s1807 + $0x58] sm:$0xff]
      %s1820 = scalar_lea.vmem %s5, 32
      %v1821 = vld [vmem:[%s1820] sm:$0xff]
      %v1822 = vld [vmem:[%s1820 + $0x8] sm:$0xff]
      %v1823 = vld [vmem:[%s1820 + $0x10] sm:$0xff]
      %v1824 = vld [vmem:[%s1820 + $0x18] sm:$0xff]
      %1837 = vrot.lane.b32.xlu0 %v1795, 127
      %v1838 = vpop.permute.xlu0 %1837
      %1839 = vrot.lane.b32.xlu0 %v1796, 127
      %v1840 = vpop.permute.xlu0 %1839
      %1841 = vrot.lane.b32.xlu0 %v1797, 127
      %v1842 = vpop.permute.xlu0 %1841
      %1843 = vrot.lane.b32.xlu0 %v1798, 127
      %v1844 = vpop.permute.xlu0 %1843
      %1845 = vrot.lane.b32.xlu0 %v1799, 127
      %v1846 = vpop.permute.xlu0 %1845
      %1847 = vrot.lane.b32.xlu0 %v1800, 127
      %v1848 = vpop.permute.xlu0 %1847
      %1849 = vrot.lane.b32.xlu0 %v1801, 127
      %v1850 = vpop.permute.xlu0 %1849
      %1851 = vrot.lane.b32.xlu0 %v1802, 127
      %v1852 = vpop.permute.xlu0 %1851
      %1853 = vrot.lane.b32.xlu0 %v1803, 127
      %v1854 = vpop.permute.xlu0 %1853
      %1855 = vrot.lane.b32.xlu0 %v1804, 127
      %v1856 = vpop.permute.xlu0 %1855
      %1857 = vrot.lane.b32.xlu0 %v1805, 127
      %v1858 = vpop.permute.xlu0 %1857
      %1859 = vrot.lane.b32.xlu0 %v1806, 127
      %v1860 = vpop.permute.xlu0 %1859
      %v1861 = vsel %vm330, %v323, %v1838
      %v1862 = vsel %vm330, %v1838, %v1840
      %v1863 = vsel %vm330, %v1840, %v1842
      %v1864 = vsel %vm330, %v323, %v1844
      %v1865 = vsel %vm330, %v1844, %v1846
      %v1866 = vsel %vm330, %v1846, %v1848
      %v1867 = vsel %vm330, %v323, %v1850
      %v1868 = vsel %vm330, %v1850, %v1852
      %v1869 = vsel %vm330, %v1852, %v1854
      %v1870 = vsel %vm330, %v323, %v1856
      %v1871 = vsel %vm330, %v1856, %v1858
      %v1872 = vsel %vm330, %v1858, %v1860
      %1873 = vrot.lane.b32.xlu0 %v1795, 126
      %v1874 = vpop.permute.xlu0 %1873
      %1875 = vrot.lane.b32.xlu0 %v1796, 126
      %v1876 = vpop.permute.xlu0 %1875
      %1877 = vrot.lane.b32.xlu0 %v1797, 126
      %v1878 = vpop.permute.xlu0 %1877
      %1879 = vrot.lane.b32.xlu0 %v1798, 126
      %v1880 = vpop.permute.xlu0 %1879
      %1881 = vrot.lane.b32.xlu0 %v1799, 126
      %v1882 = vpop.permute.xlu0 %1881
      %1883 = vrot.lane.b32.xlu0 %v1800, 126
      %v1884 = vpop.permute.xlu0 %1883
      %1885 = vrot.lane.b32.xlu0 %v1801, 126
      %v1886 = vpop.permute.xlu0 %1885
      %1887 = vrot.lane.b32.xlu0 %v1802, 126
      %v1888 = vpop.permute.xlu0 %1887
      %1889 = vrot.lane.b32.xlu0 %v1803, 126
      %v1890 = vpop.permute.xlu0 %1889
      %1891 = vrot.lane.b32.xlu0 %v1804, 126
      %v1892 = vpop.permute.xlu0 %1891
      %1893 = vrot.lane.b32.xlu0 %v1805, 126
      %v1894 = vpop.permute.xlu0 %1893
      %1895 = vrot.lane.b32.xlu0 %v1806, 126
      %v1896 = vpop.permute.xlu0 %1895
      %v1897 = vsel %vm342, %v335, %v1874
      %v1898 = vsel %vm342, %v1874, %v1876
      %v1899 = vsel %vm342, %v1876, %v1878
      %v1900 = vsel %vm342, %v335, %v1880
      %v1901 = vsel %vm342, %v1880, %v1882
      %v1902 = vsel %vm342, %v1882, %v1884
      %v1903 = vsel %vm342, %v335, %v1886
      %v1904 = vsel %vm342, %v1886, %v1888
      %v1905 = vsel %vm342, %v1888, %v1890
      %v1906 = vsel %vm342, %v335, %v1892
      %v1907 = vsel %vm342, %v1892, %v1894
      %v1908 = vsel %vm342, %v1894, %v1896
      %1909 = vrot.lane.b32.xlu0 %v1795, 110
      %v1910 = vpop.permute.xlu0 %1909
      %1911 = vrot.lane.b32.xlu0 %v1796, 110
      %v1912 = vpop.permute.xlu0 %1911
      %1913 = vrot.lane.b32.xlu0 %v1797, 110
      %v1914 = vpop.permute.xlu0 %1913
      %1915 = vrot.lane.b32.xlu0 %v1798, 110
      %v1916 = vpop.permute.xlu0 %1915
      %1917 = vrot.lane.b32.xlu0 %v1799, 110
      %v1918 = vpop.permute.xlu0 %1917
      %1919 = vrot.lane.b32.xlu0 %v1800, 110
      %v1920 = vpop.permute.xlu0 %1919
      %1921 = vrot.lane.b32.xlu0 %v1801, 110
      %v1922 = vpop.permute.xlu0 %1921
      %1923 = vrot.lane.b32.xlu0 %v1802, 110
      %v1924 = vpop.permute.xlu0 %1923
      %1925 = vrot.lane.b32.xlu0 %v1803, 110
      %v1926 = vpop.permute.xlu0 %1925
      %1927 = vrot.lane.b32.xlu0 %v1804, 110
      %v1928 = vpop.permute.xlu0 %1927
      %1929 = vrot.lane.b32.xlu0 %v1805, 110
      %v1930 = vpop.permute.xlu0 %1929
      %1931 = vrot.lane.b32.xlu0 %v1806, 110
      %v1932 = vpop.permute.xlu0 %1931
      %v1933 = vsel %vm354, %v347, %v1910
      %v1934 = vsel %vm354, %v1910, %v1912
      %v1935 = vsel %vm354, %v1912, %v1914
      %v1936 = vsel %vm354, %v347, %v1916
      %v1937 = vsel %vm354, %v1916, %v1918
      %v1938 = vsel %vm354, %v1918, %v1920
      %v1939 = vsel %vm354, %v347, %v1922
      %v1940 = vsel %vm354, %v1922, %v1924
      %v1941 = vsel %vm354, %v1924, %v1926
      %v1942 = vsel %vm354, %v347, %v1928
      %v1943 = vsel %vm354, %v1928, %v1930
      %v1944 = vsel %vm354, %v1930, %v1932
      %1945 = vrot.lane.b32.xlu0 %v1795, 109
      %v1946 = vpop.permute.xlu0 %1945
      %1947 = vrot.lane.b32.xlu0 %v1796, 109
      %v1948 = vpop.permute.xlu0 %1947
      %1949 = vrot.lane.b32.xlu0 %v1797, 109
      %v1950 = vpop.permute.xlu0 %1949
      %1951 = vrot.lane.b32.xlu0 %v1798, 109
      %v1952 = vpop.permute.xlu0 %1951
      %1953 = vrot.lane.b32.xlu0 %v1799, 109
      %v1954 = vpop.permute.xlu0 %1953
      %1955 = vrot.lane.b32.xlu0 %v1800, 109
      %v1956 = vpop.permute.xlu0 %1955
      %1957 = vrot.lane.b32.xlu0 %v1801, 109
      %v1958 = vpop.permute.xlu0 %1957
      %1959 = vrot.lane.b32.xlu0 %v1802, 109
      %v1960 = vpop.permute.xlu0 %1959
      %1961 = vrot.lane.b32.xlu0 %v1803, 109
      %v1962 = vpop.permute.xlu0 %1961
      %1963 = vrot.lane.b32.xlu0 %v1804, 109
      %v1964 = vpop.permute.xlu0 %1963
      %1965 = vrot.lane.b32.xlu0 %v1805, 109
      %v1966 = vpop.permute.xlu0 %1965
      %1967 = vrot.lane.b32.xlu0 %v1806, 109
      %v1968 = vpop.permute.xlu0 %1967
      %v1969 = vsel %vm364, %v1946, %v1948
      %v1970 = vsel %vm364, %v1948, %v1950
      %v1971 = vsel %vm364, %v1952, %v1954
      %v1972 = vsel %vm364, %v1954, %v1956
      %v1973 = vsel %vm364, %v1958, %v1960
      %v1974 = vsel %vm364, %v1960, %v1962
      %v1975 = vsel %vm364, %v1964, %v1966
      %v1976 = vsel %vm364, %v1966, %v1968
      %1977 = vrot.lane.b32.xlu0 %v1795, 108
      %v1978 = vpop.permute.xlu0 %1977
      %1979 = vrot.lane.b32.xlu0 %v1796, 108
      %v1980 = vpop.permute.xlu0 %1979
      %1981 = vrot.lane.b32.xlu0 %v1797, 108
      %v1982 = vpop.permute.xlu0 %1981
      %1983 = vrot.lane.b32.xlu0 %v1798, 108
      %v1984 = vpop.permute.xlu0 %1983
      %1985 = vrot.lane.b32.xlu0 %v1799, 108
      %v1986 = vpop.permute.xlu0 %1985
      %1987 = vrot.lane.b32.xlu0 %v1800, 108
      %v1988 = vpop.permute.xlu0 %1987
      %1989 = vrot.lane.b32.xlu0 %v1801, 108
      %v1990 = vpop.permute.xlu0 %1989
      %1991 = vrot.lane.b32.xlu0 %v1802, 108
      %v1992 = vpop.permute.xlu0 %1991
      %1993 = vrot.lane.b32.xlu0 %v1803, 108
      %v1994 = vpop.permute.xlu0 %1993
      %1995 = vrot.lane.b32.xlu0 %v1804, 108
      %v1996 = vpop.permute.xlu0 %1995
      %1997 = vrot.lane.b32.xlu0 %v1805, 108
      %v1998 = vpop.permute.xlu0 %1997
      %1999 = vrot.lane.b32.xlu0 %v1806, 108
      %v2000 = vpop.permute.xlu0 %1999
      %v2001 = vsel %vm375, %v1978, %v1980
      %v2002 = vsel %vm375, %v1980, %v1982
      %v2003 = vsel %vm375, %v1982, %v374
      %v2004 = vsel %vm375, %v1984, %v1986
      %v2005 = vsel %vm375, %v1986, %v1988
      %v2006 = vsel %vm375, %v1988, %v374
      %v2007 = vsel %vm375, %v1990, %v1992
      %v2008 = vsel %vm375, %v1992, %v1994
      %v2009 = vsel %vm375, %v1994, %v374
      %v2010 = vsel %vm375, %v1996, %v1998
      %v2011 = vsel %vm375, %v1998, %v2000
      %v2012 = vsel %vm375, %v2000, %v374
      %2013 = vrot.lane.b32.xlu0 %v1795, 92
      %v2014 = vpop.permute.xlu0 %2013
      %2015 = vrot.lane.b32.xlu0 %v1796, 92
      %v2016 = vpop.permute.xlu0 %2015
      %2017 = vrot.lane.b32.xlu0 %v1797, 92
      %v2018 = vpop.permute.xlu0 %2017
      %2019 = vrot.lane.b32.xlu0 %v1798, 92
      %v2020 = vpop.permute.xlu0 %2019
      %2021 = vrot.lane.b32.xlu0 %v1799, 92
      %v2022 = vpop.permute.xlu0 %2021
      %2023 = vrot.lane.b32.xlu0 %v1800, 92
      %v2024 = vpop.permute.xlu0 %2023
      %2025 = vrot.lane.b32.xlu0 %v1801, 92
      %v2026 = vpop.permute.xlu0 %2025
      %2027 = vrot.lane.b32.xlu0 %v1802, 92
      %v2028 = vpop.permute.xlu0 %2027
      %2029 = vrot.lane.b32.xlu0 %v1803, 92
      %v2030 = vpop.permute.xlu0 %2029
      %2031 = vrot.lane.b32.xlu0 %v1804, 92
      %v2032 = vpop.permute.xlu0 %2031
      %2033 = vrot.lane.b32.xlu0 %v1805, 92
      %v2034 = vpop.permute.xlu0 %2033
      %2035 = vrot.lane.b32.xlu0 %v1806, 92
      %v2036 = vpop.permute.xlu0 %2035
      %v2037 = vsel %vm387, %v2014, %v2016
      %v2038 = vsel %vm387, %v2016, %v2018
      %v2039 = vsel %vm387, %v2018, %v386
      %v2040 = vsel %vm387, %v2020, %v2022
      %v2041 = vsel %vm387, %v2022, %v2024
      %v2042 = vsel %vm387, %v2024, %v386
      %v2043 = vsel %vm387, %v2026, %v2028
      %v2044 = vsel %vm387, %v2028, %v2030
      %v2045 = vsel %vm387, %v2030, %v386
      %v2046 = vsel %vm387, %v2032, %v2034
      %v2047 = vsel %vm387, %v2034, %v2036
      %v2048 = vsel %vm387, %v2036, %v386
      %2049 = vrot.lane.b32.xlu0 %v1795, 91
      %v2050 = vpop.permute.xlu0 %2049
      %2051 = vrot.lane.b32.xlu0 %v1796, 91
      %v2052 = vpop.permute.xlu0 %2051
      %2053 = vrot.lane.b32.xlu0 %v1797, 91
      %v2054 = vpop.permute.xlu0 %2053
      %2055 = vrot.lane.b32.xlu0 %v1798, 91
      %v2056 = vpop.permute.xlu0 %2055
      %2057 = vrot.lane.b32.xlu0 %v1799, 91
      %v2058 = vpop.permute.xlu0 %2057
      %2059 = vrot.lane.b32.xlu0 %v1800, 91
      %v2060 = vpop.permute.xlu0 %2059
      %2061 = vrot.lane.b32.xlu0 %v1801, 91
      %v2062 = vpop.permute.xlu0 %2061
      %2063 = vrot.lane.b32.xlu0 %v1802, 91
      %v2064 = vpop.permute.xlu0 %2063
      %2065 = vrot.lane.b32.xlu0 %v1803, 91
      %v2066 = vpop.permute.xlu0 %2065
      %2067 = vrot.lane.b32.xlu0 %v1804, 91
      %v2068 = vpop.permute.xlu0 %2067
      %2069 = vrot.lane.b32.xlu0 %v1805, 91
      %v2070 = vpop.permute.xlu0 %2069
      %2071 = vrot.lane.b32.xlu0 %v1806, 91
      %v2072 = vpop.permute.xlu0 %2071
      %v2073 = vsel %vm399, %v2050, %v2052
      %v2074 = vsel %vm399, %v2052, %v2054
      %v2075 = vsel %vm399, %v2054, %v398
      %v2076 = vsel %vm399, %v2056, %v2058
      %v2077 = vsel %vm399, %v2058, %v2060
      %v2078 = vsel %vm399, %v2060, %v398
      %v2079 = vsel %vm399, %v2062, %v2064
      %v2080 = vsel %vm399, %v2064, %v2066
      %v2081 = vsel %vm399, %v2066, %v398
      %v2082 = vsel %vm399, %v2068, %v2070
      %v2083 = vsel %vm399, %v2070, %v2072
      %v2084 = vsel %vm399, %v2072, %v398
      %2085 = vrot.lane.b32.xlu0 %v1795, 90
      %v2086 = vpop.permute.xlu0 %2085
      %2087 = vrot.lane.b32.xlu0 %v1796, 90
      %v2088 = vpop.permute.xlu0 %2087
      %2089 = vrot.lane.b32.xlu0 %v1797, 90
      %v2090 = vpop.permute.xlu0 %2089
      %2091 = vrot.lane.b32.xlu0 %v1798, 90
      %v2092 = vpop.permute.xlu0 %2091
      %2093 = vrot.lane.b32.xlu0 %v1799, 90
      %v2094 = vpop.permute.xlu0 %2093
      %2095 = vrot.lane.b32.xlu0 %v1800, 90
      %v2096 = vpop.permute.xlu0 %2095
      %2097 = vrot.lane.b32.xlu0 %v1801, 90
      %v2098 = vpop.permute.xlu0 %2097
      %2099 = vrot.lane.b32.xlu0 %v1802, 90
      %v2100 = vpop.permute.xlu0 %2099
      %2101 = vrot.lane.b32.xlu0 %v1803, 90
      %v2102 = vpop.permute.xlu0 %2101
      %2103 = vrot.lane.b32.xlu0 %v1804, 90
      %v2104 = vpop.permute.xlu0 %2103
      %2105 = vrot.lane.b32.xlu0 %v1805, 90
      %v2106 = vpop.permute.xlu0 %2105
      %2107 = vrot.lane.b32.xlu0 %v1806, 90
      %v2108 = vpop.permute.xlu0 %2107
      %v2109 = vsel %vm411, %v2086, %v2088
      %v2110 = vsel %vm411, %v2088, %v2090
      %v2111 = vsel %vm411, %v2090, %v410
      %v2112 = vsel %vm411, %v2092, %v2094
      %v2113 = vsel %vm411, %v2094, %v2096
      %v2114 = vsel %vm411, %v2096, %v410
      %v2115 = vsel %vm411, %v2098, %v2100
      %v2116 = vsel %vm411, %v2100, %v2102
      %v2117 = vsel %vm411, %v2102, %v410
      %v2118 = vsel %vm411, %v2104, %v2106
      %v2119 = vsel %vm411, %v2106, %v2108
      %v2120 = vsel %vm411, %v2108, %v410
      %2122 = vset.pattern.permute.xlu0 0
      %2123 = vperm.xlu0 %2122, %v1821
      %v2124 = vpop.permute.xlu0 %2123
      %2127 = vset.pattern.permute.xlu0 0
      %2128 = vperm.xlu0 %2127, %v1822
      %v2129 = vpop.permute.xlu0 %2128
      %2132 = vset.pattern.permute.xlu0 0
      %2133 = vperm.xlu0 %2132, %v1823
      %v2134 = vpop.permute.xlu0 %2133
      %2137 = vset.pattern.permute.xlu0 0
      %2138 = vperm.xlu0 %2137, %v1824
      %v2139 = vpop.permute.xlu0 %2138
      %2141 = vrot.lane.b32.xlu0 %v1795, 19
      %v2142 = vpop.permute.xlu0 %2141
      %2143 = vrot.lane.b32.xlu0 %v1796, 19
      %v2144 = vpop.permute.xlu0 %2143
      %2145 = vrot.lane.b32.xlu0 %v1797, 19
      %v2146 = vpop.permute.xlu0 %2145
      %2147 = vrot.lane.b32.xlu0 %v1798, 19
      %v2148 = vpop.permute.xlu0 %2147
      %2149 = vrot.lane.b32.xlu0 %v1799, 19
      %v2150 = vpop.permute.xlu0 %2149
      %2151 = vrot.lane.b32.xlu0 %v1800, 19
      %v2152 = vpop.permute.xlu0 %2151
      %2153 = vrot.lane.b32.xlu0 %v1801, 19
      %v2154 = vpop.permute.xlu0 %2153
      %2155 = vrot.lane.b32.xlu0 %v1802, 19
      %v2156 = vpop.permute.xlu0 %2155
      %2157 = vrot.lane.b32.xlu0 %v1803, 19
      %v2158 = vpop.permute.xlu0 %2157
      %2159 = vrot.lane.b32.xlu0 %v1804, 19
      %v2160 = vpop.permute.xlu0 %2159
      %2161 = vrot.lane.b32.xlu0 %v1805, 19
      %v2162 = vpop.permute.xlu0 %2161
      %2163 = vrot.lane.b32.xlu0 %v1806, 19
      %v2164 = vpop.permute.xlu0 %2163
      %2165 = vrot.lane.b32.xlu0 %v1861, 19
      %v2166 = vpop.permute.xlu0 %2165
      %2167 = vrot.lane.b32.xlu0 %v1862, 19
      %v2168 = vpop.permute.xlu0 %2167
      %2169 = vrot.lane.b32.xlu0 %v1863, 19
      %v2170 = vpop.permute.xlu0 %2169
      %2171 = vrot.lane.b32.xlu0 %v1842, 19
      %v2172 = vpop.permute.xlu0 %2171
      %2173 = vrot.lane.b32.xlu0 %v1864, 19
      %v2174 = vpop.permute.xlu0 %2173
      %2175 = vrot.lane.b32.xlu0 %v1865, 19
      %v2176 = vpop.permute.xlu0 %2175
      %2177 = vrot.lane.b32.xlu0 %v1866, 19
      %v2178 = vpop.permute.xlu0 %2177
      %2179 = vrot.lane.b32.xlu0 %v1848, 19
      %v2180 = vpop.permute.xlu0 %2179
      %2181 = vrot.lane.b32.xlu0 %v1867, 19
      %v2182 = vpop.permute.xlu0 %2181
      %2183 = vrot.lane.b32.xlu0 %v1868, 19
      %v2184 = vpop.permute.xlu0 %2183
      %2185 = vrot.lane.b32.xlu0 %v1869, 19
      %v2186 = vpop.permute.xlu0 %2185
      %2187 = vrot.lane.b32.xlu0 %v1854, 19
      %v2188 = vpop.permute.xlu0 %2187
      %2189 = vrot.lane.b32.xlu0 %v1870, 19
      %v2190 = vpop.permute.xlu0 %2189
      %2191 = vrot.lane.b32.xlu0 %v1871, 19
      %v2192 = vpop.permute.xlu0 %2191
      %2193 = vrot.lane.b32.xlu0 %v1872, 19
      %v2194 = vpop.permute.xlu0 %2193
      %2195 = vrot.lane.b32.xlu0 %v1860, 19
      %v2196 = vpop.permute.xlu0 %2195
      %2197 = vrot.lane.b32.xlu0 %v1897, 19
      %v2198 = vpop.permute.xlu0 %2197
      %2199 = vrot.lane.b32.xlu0 %v1898, 19
      %v2200 = vpop.permute.xlu0 %2199
      %2201 = vrot.lane.b32.xlu0 %v1899, 19
      %v2202 = vpop.permute.xlu0 %2201
      %2203 = vrot.lane.b32.xlu0 %v1878, 19
      %v2204 = vpop.permute.xlu0 %2203
      %2205 = vrot.lane.b32.xlu0 %v1900, 19
      %v2206 = vpop.permute.xlu0 %2205
      %2207 = vrot.lane.b32.xlu0 %v1901, 19
      %v2208 = vpop.permute.xlu0 %2207
      %2209 = vrot.lane.b32.xlu0 %v1902, 19
      %v2210 = vpop.permute.xlu0 %2209
      %2211 = vrot.lane.b32.xlu0 %v1884, 19
      %v2212 = vpop.permute.xlu0 %2211
      %2213 = vrot.lane.b32.xlu0 %v1903, 19
      %v2214 = vpop.permute.xlu0 %2213
      %2215 = vrot.lane.b32.xlu0 %v1904, 19
      %v2216 = vpop.permute.xlu0 %2215
      %2217 = vrot.lane.b32.xlu0 %v1905, 19
      %v2218 = vpop.permute.xlu0 %2217
      %2219 = vrot.lane.b32.xlu0 %v1890, 19
      %v2220 = vpop.permute.xlu0 %2219
      %2221 = vrot.lane.b32.xlu0 %v1906, 19
      %v2222 = vpop.permute.xlu0 %2221
      %2223 = vrot.lane.b32.xlu0 %v1907, 19
      %v2224 = vpop.permute.xlu0 %2223
      %2225 = vrot.lane.b32.xlu0 %v1908, 19
      %v2226 = vpop.permute.xlu0 %2225
      %2227 = vrot.lane.b32.xlu0 %v1896, 19
      %v2228 = vpop.permute.xlu0 %2227
      %2229 = vrot.lane.b32.xlu0 %v1933, 19
      %v2230 = vpop.permute.xlu0 %2229
      %2231 = vrot.lane.b32.xlu0 %v1934, 19
      %v2232 = vpop.permute.xlu0 %2231
      %2233 = vrot.lane.b32.xlu0 %v1935, 19
      %v2234 = vpop.permute.xlu0 %2233
      %2235 = vrot.lane.b32.xlu0 %v1914, 19
      %v2236 = vpop.permute.xlu0 %2235
      %2237 = vrot.lane.b32.xlu0 %v1936, 19
      %v2238 = vpop.permute.xlu0 %2237
      %2239 = vrot.lane.b32.xlu0 %v1937, 19
      %v2240 = vpop.permute.xlu0 %2239
      %2241 = vrot.lane.b32.xlu0 %v1938, 19
      %v2242 = vpop.permute.xlu0 %2241
      %2243 = vrot.lane.b32.xlu0 %v1920, 19
      %v2244 = vpop.permute.xlu0 %2243
      %2245 = vrot.lane.b32.xlu0 %v1939, 19
      %v2246 = vpop.permute.xlu0 %2245
      %2247 = vrot.lane.b32.xlu0 %v1940, 19
      %v2248 = vpop.permute.xlu0 %2247
      %2249 = vrot.lane.b32.xlu0 %v1941, 19
      %v2250 = vpop.permute.xlu0 %2249
      %2251 = vrot.lane.b32.xlu0 %v1926, 19
      %v2252 = vpop.permute.xlu0 %2251
      %2253 = vrot.lane.b32.xlu0 %v1942, 19
      %v2254 = vpop.permute.xlu0 %2253
      %2255 = vrot.lane.b32.xlu0 %v1943, 19
      %v2256 = vpop.permute.xlu0 %2255
      %2257 = vrot.lane.b32.xlu0 %v1944, 19
      %v2258 = vpop.permute.xlu0 %2257
      %2259 = vrot.lane.b32.xlu0 %v1932, 19
      %v2260 = vpop.permute.xlu0 %2259
      %2261 = vrot.lane.b32.xlu0 %v1946, 19
      %v2262 = vpop.permute.xlu0 %2261
      %2263 = vrot.lane.b32.xlu0 %v1969, 19
      %v2264 = vpop.permute.xlu0 %2263
      %2265 = vrot.lane.b32.xlu0 %v1970, 19
      %v2266 = vpop.permute.xlu0 %2265
      %2267 = vrot.lane.b32.xlu0 %v1950, 19
      %v2268 = vpop.permute.xlu0 %2267
      %2269 = vrot.lane.b32.xlu0 %v1952, 19
      %v2270 = vpop.permute.xlu0 %2269
      %2271 = vrot.lane.b32.xlu0 %v1971, 19
      %v2272 = vpop.permute.xlu0 %2271
      %2273 = vrot.lane.b32.xlu0 %v1972, 19
      %v2274 = vpop.permute.xlu0 %2273
      %2275 = vrot.lane.b32.xlu0 %v1956, 19
      %v2276 = vpop.permute.xlu0 %2275
      %2277 = vrot.lane.b32.xlu0 %v1958, 19
      %v2278 = vpop.permute.xlu0 %2277
      %2279 = vrot.lane.b32.xlu0 %v1973, 19
      %v2280 = vpop.permute.xlu0 %2279
      %2281 = vrot.lane.b32.xlu0 %v1974, 19
      %v2282 = vpop.permute.xlu0 %2281
      %2283 = vrot.lane.b32.xlu0 %v1962, 19
      %v2284 = vpop.permute.xlu0 %2283
      %2285 = vrot.lane.b32.xlu0 %v1964, 19
      %v2286 = vpop.permute.xlu0 %2285
      %2287 = vrot.lane.b32.xlu0 %v1975, 19
      %v2288 = vpop.permute.xlu0 %2287
      %2289 = vrot.lane.b32.xlu0 %v1976, 19
      %v2290 = vpop.permute.xlu0 %2289
      %2291 = vrot.lane.b32.xlu0 %v1968, 19
      %v2292 = vpop.permute.xlu0 %2291
      %2293 = vrot.lane.b32.xlu0 %v1978, 19
      %v2294 = vpop.permute.xlu0 %2293
      %2295 = vrot.lane.b32.xlu0 %v2001, 19
      %v2296 = vpop.permute.xlu0 %2295
      %2297 = vrot.lane.b32.xlu0 %v2002, 19
      %v2298 = vpop.permute.xlu0 %2297
      %2299 = vrot.lane.b32.xlu0 %v2003, 19
      %v2300 = vpop.permute.xlu0 %2299
      %2301 = vrot.lane.b32.xlu0 %v1984, 19
      %v2302 = vpop.permute.xlu0 %2301
      %2303 = vrot.lane.b32.xlu0 %v2004, 19
      %v2304 = vpop.permute.xlu0 %2303
      %2305 = vrot.lane.b32.xlu0 %v2005, 19
      %v2306 = vpop.permute.xlu0 %2305
      %2307 = vrot.lane.b32.xlu0 %v2006, 19
      %v2308 = vpop.permute.xlu0 %2307
      %2309 = vrot.lane.b32.xlu0 %v1990, 19
      %v2310 = vpop.permute.xlu0 %2309
      %2311 = vrot.lane.b32.xlu0 %v2007, 19
      %v2312 = vpop.permute.xlu0 %2311
      %2313 = vrot.lane.b32.xlu0 %v2008, 19
      %v2314 = vpop.permute.xlu0 %2313
      %2315 = vrot.lane.b32.xlu0 %v2009, 19
      %v2316 = vpop.permute.xlu0 %2315
      %2317 = vrot.lane.b32.xlu0 %v1996, 19
      %v2318 = vpop.permute.xlu0 %2317
      %2319 = vrot.lane.b32.xlu0 %v2010, 19
      %v2320 = vpop.permute.xlu0 %2319
      %2321 = vrot.lane.b32.xlu0 %v2011, 19
      %v2322 = vpop.permute.xlu0 %2321
      %2323 = vrot.lane.b32.xlu0 %v2012, 19
      %v2324 = vpop.permute.xlu0 %2323
      %2325 = vrot.lane.b32.xlu0 %v2014, 19
      %v2326 = vpop.permute.xlu0 %2325
      %2327 = vrot.lane.b32.xlu0 %v2037, 19
      %v2328 = vpop.permute.xlu0 %2327
      %2329 = vrot.lane.b32.xlu0 %v2038, 19
      %v2330 = vpop.permute.xlu0 %2329
      %2331 = vrot.lane.b32.xlu0 %v2039, 19
      %v2332 = vpop.permute.xlu0 %2331
      %2333 = vrot.lane.b32.xlu0 %v2020, 19
      %v2334 = vpop.permute.xlu0 %2333
      %2335 = vrot.lane.b32.xlu0 %v2040, 19
      %v2336 = vpop.permute.xlu0 %2335
      %2337 = vrot.lane.b32.xlu0 %v2041, 19
      %v2338 = vpop.permute.xlu0 %2337
      %2339 = vrot.lane.b32.xlu0 %v2042, 19
      %v2340 = vpop.permute.xlu0 %2339
      %2341 = vrot.lane.b32.xlu0 %v2026, 19
      %v2342 = vpop.permute.xlu0 %2341
      %2343 = vrot.lane.b32.xlu0 %v2043, 19
      %v2344 = vpop.permute.xlu0 %2343
      %2345 = vrot.lane.b32.xlu0 %v2044, 19
      %v2346 = vpop.permute.xlu0 %2345
      %2347 = vrot.lane.b32.xlu0 %v2045, 19
      %v2348 = vpop.permute.xlu0 %2347
      %2349 = vrot.lane.b32.xlu0 %v2032, 19
      %v2350 = vpop.permute.xlu0 %2349
      %2351 = vrot.lane.b32.xlu0 %v2046, 19
      %v2352 = vpop.permute.xlu0 %2351
      %2353 = vrot.lane.b32.xlu0 %v2047, 19
      %v2354 = vpop.permute.xlu0 %2353
      %2355 = vrot.lane.b32.xlu0 %v2048, 19
      %v2356 = vpop.permute.xlu0 %2355
      %2357 = vrot.lane.b32.xlu0 %v2050, 19
      %v2358 = vpop.permute.xlu0 %2357
      %2359 = vrot.lane.b32.xlu0 %v2073, 19
      %v2360 = vpop.permute.xlu0 %2359
      %2361 = vrot.lane.b32.xlu0 %v2074, 19
      %v2362 = vpop.permute.xlu0 %2361
      %2363 = vrot.lane.b32.xlu0 %v2075, 19
      %v2364 = vpop.permute.xlu0 %2363
      %2365 = vrot.lane.b32.xlu0 %v2056, 19
      %v2366 = vpop.permute.xlu0 %2365
      %2367 = vrot.lane.b32.xlu0 %v2076, 19
      %v2368 = vpop.permute.xlu0 %2367
      %2369 = vrot.lane.b32.xlu0 %v2077, 19
      %v2370 = vpop.permute.xlu0 %2369
      %2371 = vrot.lane.b32.xlu0 %v2078, 19
      %v2372 = vpop.permute.xlu0 %2371
      %2373 = vrot.lane.b32.xlu0 %v2062, 19
      %v2374 = vpop.permute.xlu0 %2373
      %2375 = vrot.lane.b32.xlu0 %v2079, 19
      %v2376 = vpop.permute.xlu0 %2375
      %2377 = vrot.lane.b32.xlu0 %v2080, 19
      %v2378 = vpop.permute.xlu0 %2377
      %2379 = vrot.lane.b32.xlu0 %v2081, 19
      %v2380 = vpop.permute.xlu0 %2379
      %2381 = vrot.lane.b32.xlu0 %v2068, 19
      %v2382 = vpop.permute.xlu0 %2381
      %2383 = vrot.lane.b32.xlu0 %v2082, 19
      %v2384 = vpop.permute.xlu0 %2383
      %2385 = vrot.lane.b32.xlu0 %v2083, 19
      %v2386 = vpop.permute.xlu0 %2385
      %2387 = vrot.lane.b32.xlu0 %v2084, 19
      %v2388 = vpop.permute.xlu0 %2387
      %2389 = vrot.lane.b32.xlu0 %v2086, 19
      %v2390 = vpop.permute.xlu0 %2389
      %2391 = vrot.lane.b32.xlu0 %v2109, 19
      %v2392 = vpop.permute.xlu0 %2391
      %2393 = vrot.lane.b32.xlu0 %v2110, 19
      %v2394 = vpop.permute.xlu0 %2393
      %2395 = vrot.lane.b32.xlu0 %v2111, 19
      %v2396 = vpop.permute.xlu0 %2395
      %2397 = vrot.lane.b32.xlu0 %v2092, 19
      %v2398 = vpop.permute.xlu0 %2397
      %2399 = vrot.lane.b32.xlu0 %v2112, 19
      %v2400 = vpop.permute.xlu0 %2399
      %2401 = vrot.lane.b32.xlu0 %v2113, 19
      %v2402 = vpop.permute.xlu0 %2401
      %2403 = vrot.lane.b32.xlu0 %v2114, 19
      %v2404 = vpop.permute.xlu0 %2403
      %2405 = vrot.lane.b32.xlu0 %v2098, 19
      %v2406 = vpop.permute.xlu0 %2405
      %2407 = vrot.lane.b32.xlu0 %v2115, 19
      %v2408 = vpop.permute.xlu0 %2407
      %2409 = vrot.lane.b32.xlu0 %v2116, 19
      %v2410 = vpop.permute.xlu0 %2409
      %2411 = vrot.lane.b32.xlu0 %v2117, 19
      %v2412 = vpop.permute.xlu0 %2411
      %2413 = vrot.lane.b32.xlu0 %v2104, 19
      %v2414 = vpop.permute.xlu0 %2413
      %2415 = vrot.lane.b32.xlu0 %v2118, 19
      %v2416 = vpop.permute.xlu0 %2415
      %2417 = vrot.lane.b32.xlu0 %v2119, 19
      %v2418 = vpop.permute.xlu0 %2417
      %2419 = vrot.lane.b32.xlu0 %v2120, 19
      %v2420 = vpop.permute.xlu0 %2419
      %v2421 = vsel %vm507, %v436, %v2142
      %v2422 = vsel %vm507, %v2142, %v2144
      %v2423 = vsel %vm507, %v2144, %v2146
      %v2424 = vsel %vm507, %v436, %v2148
      %v2425 = vsel %vm507, %v2148, %v2150
      %v2426 = vsel %vm507, %v2150, %v2152
      %v2427 = vsel %vm507, %v436, %v2154
      %v2428 = vsel %vm507, %v2154, %v2156
      %v2429 = vsel %vm507, %v2156, %v2158
      %v2430 = vsel %vm507, %v436, %v2160
      %v2431 = vsel %vm507, %v2160, %v2162
      %v2432 = vsel %vm507, %v2162, %v2164
      %v2433 = vsel %vm507, %v2166, %v2168
      %v2434 = vsel %vm507, %v2168, %v2170
      %v2435 = vsel %vm507, %v2170, %v2172
      %v2436 = vsel %vm507, %v2174, %v2176
      %v2437 = vsel %vm507, %v2176, %v2178
      %v2438 = vsel %vm507, %v2178, %v2180
      %v2439 = vsel %vm507, %v2182, %v2184
      %v2440 = vsel %vm507, %v2184, %v2186
      %v2441 = vsel %vm507, %v2186, %v2188
      %v2442 = vsel %vm507, %v2190, %v2192
      %v2443 = vsel %vm507, %v2192, %v2194
      %v2444 = vsel %vm507, %v2194, %v2196
      %v2445 = vsel %vm507, %v2198, %v2200
      %v2446 = vsel %vm507, %v2200, %v2202
      %v2447 = vsel %vm507, %v2202, %v2204
      %v2448 = vsel %vm507, %v2206, %v2208
      %v2449 = vsel %vm507, %v2208, %v2210
      %v2450 = vsel %vm507, %v2210, %v2212
      %v2451 = vsel %vm507, %v2214, %v2216
      %v2452 = vsel %vm507, %v2216, %v2218
      %v2453 = vsel %vm507, %v2218, %v2220
      %v2454 = vsel %vm507, %v2222, %v2224
      %v2455 = vsel %vm507, %v2224, %v2226
      %v2456 = vsel %vm507, %v2226, %v2228
      %v2457 = vsel %vm507, %v2230, %v2232
      %v2458 = vsel %vm507, %v2232, %v2234
      %v2459 = vsel %vm507, %v2234, %v2236
      %v2460 = vsel %vm507, %v2238, %v2240
      %v2461 = vsel %vm507, %v2240, %v2242
      %v2462 = vsel %vm507, %v2242, %v2244
      %v2463 = vsel %vm507, %v2246, %v2248
      %v2464 = vsel %vm507, %v2248, %v2250
      %v2465 = vsel %vm507, %v2250, %v2252
      %v2466 = vsel %vm507, %v2254, %v2256
      %v2467 = vsel %vm507, %v2256, %v2258
      %v2468 = vsel %vm507, %v2258, %v2260
      %v2469 = vsel %vm507, %v2262, %v2264
      %v2470 = vsel %vm507, %v2264, %v2266
      %v2471 = vsel %vm507, %v2266, %v2268
      %v2472 = vsel %vm507, %v2270, %v2272
      %v2473 = vsel %vm507, %v2272, %v2274
      %v2474 = vsel %vm507, %v2274, %v2276
      %v2475 = vsel %vm507, %v2278, %v2280
      %v2476 = vsel %vm507, %v2280, %v2282
      %v2477 = vsel %vm507, %v2282, %v2284
      %v2478 = vsel %vm507, %v2286, %v2288
      %v2479 = vsel %vm507, %v2288, %v2290
      %v2480 = vsel %vm507, %v2290, %v2292
      %v2481 = vsel %vm507, %v2294, %v2296
      %v2482 = vsel %vm507, %v2296, %v2298
      %v2483 = vsel %vm507, %v2298, %v2300
      %v2484 = vsel %vm507, %v2302, %v2304
      %v2485 = vsel %vm507, %v2304, %v2306
      %v2486 = vsel %vm507, %v2306, %v2308
      %v2487 = vsel %vm507, %v2310, %v2312
      %v2488 = vsel %vm507, %v2312, %v2314
      %v2489 = vsel %vm507, %v2314, %v2316
      %v2490 = vsel %vm507, %v2318, %v2320
      %v2491 = vsel %vm507, %v2320, %v2322
      %v2492 = vsel %vm507, %v2322, %v2324
      %v2493 = vsel %vm507, %v2326, %v2328
      %v2494 = vsel %vm507, %v2328, %v2330
      %v2495 = vsel %vm507, %v2330, %v2332
      %v2496 = vsel %vm507, %v2334, %v2336
      %v2497 = vsel %vm507, %v2336, %v2338
      %v2498 = vsel %vm507, %v2338, %v2340
      %v2499 = vsel %vm507, %v2342, %v2344
      %v2500 = vsel %vm507, %v2344, %v2346
      %v2501 = vsel %vm507, %v2346, %v2348
      %v2502 = vsel %vm507, %v2350, %v2352
      %v2503 = vsel %vm507, %v2352, %v2354
      %v2504 = vsel %vm507, %v2354, %v2356
      %v2505 = vsel %vm507, %v2358, %v2360
      %v2506 = vsel %vm507, %v2360, %v2362
      %v2507 = vsel %vm507, %v2362, %v2364
      %v2508 = vsel %vm507, %v2366, %v2368
      %v2509 = vsel %vm507, %v2368, %v2370
      %v2510 = vsel %vm507, %v2370, %v2372
      %v2511 = vsel %vm507, %v2374, %v2376
      %v2512 = vsel %vm507, %v2376, %v2378
      %v2513 = vsel %vm507, %v2378, %v2380
      %v2514 = vsel %vm507, %v2382, %v2384
      %v2515 = vsel %vm507, %v2384, %v2386
      %v2516 = vsel %vm507, %v2386, %v2388
      %v2517 = vsel %vm507, %v2390, %v2392
      %v2518 = vsel %vm507, %v2392, %v2394
      %v2519 = vsel %vm507, %v2394, %v2396
      %v2520 = vsel %vm507, %v2398, %v2400
      %v2521 = vsel %vm507, %v2400, %v2402
      %v2522 = vsel %vm507, %v2402, %v2404
      %v2523 = vsel %vm507, %v2406, %v2408
      %v2524 = vsel %vm507, %v2408, %v2410
      %v2525 = vsel %vm507, %v2410, %v2412
      %v2526 = vsel %vm507, %v2414, %v2416
      %v2527 = vsel %vm507, %v2416, %v2418
      %v2528 = vsel %vm507, %v2418, %v2420
      %v2638 = vsel %vm1509, %v1810, 0
      %v2641 = vsel %vm1509, %v1813, 0
      %v2644 = vsel %vm1509, %v1816, 0
      %v2647 = vsel %vm1509, %v1819, 0
      %2649 = vmatpush.msra.mxu0 %v2466
      %2650 = vmatpush.msra.mxu0 %v2463
      %2651 = vmatpush.msra.mxu0 %v2460
      %2652 = vmatpush.msra.mxu0 %v2457
      %2653 = vmatpush.msra.mxu0 %v2454
      %2654 = vmatpush.msra.mxu0 %v2451
      %2655 = vmatpush.msra.mxu0 %v2448
      %2656 = vmatpush.msra.mxu0 %v2445
      %2657 = vmatpush.msra.mxu0 %v2442
      %2658 = vmatpush.msra.mxu0 %v2439
      %2659 = vmatpush.msra.mxu0 %v2436
      %2660 = vmatpush.msra.mxu0 %v2433
      %2661 = vmatpush.msra.mxu0 %v2430
      %2662 = vmatpush.msra.mxu0 %v2427
      %2663 = vmatpush.msra.mxu0 %v2424
      %2664 = vmatpush.msra.mxu0 %v2421
      %2665 = vmatmul.f32.gmra.mxu0 %v1808
      %v2666 = vpop.f32.mrf.mxu0
      %v2667 = vadd.f32 %v2124, %v2666
      %2668 = vmatmul.f32.gmra.mxu0 %v1811
      %v2669 = vpop.f32.mrf.mxu0
      %v2670 = vadd.f32 %v2129, %v2669
      %2671 = vmatmul.f32.gmra.mxu0 %v1814
      %v2672 = vpop.f32.mrf.mxu0
      %v2673 = vadd.f32 %v2134, %v2672
      %2674 = vmatmul.f32.gmra.mxu0 %v1817
      %v2675 = vpop.f32.mrf.mxu0
      %v2676 = vadd.f32 %v2139, %v2675
      %2677 = vdwg.mxu0
      %2678 = vmatpush.msra.mxu0 %v2514
      %2679 = vmatpush.msra.mxu0 %v2511
      %2680 = vmatpush.msra.mxu0 %v2508
      %2681 = vmatpush.msra.mxu0 %v2505
      %2682 = vmatpush.msra.mxu0 %v2502
      %2683 = vmatpush.msra.mxu0 %v2499
      %2684 = vmatpush.msra.mxu0 %v2496
      %2685 = vmatpush.msra.mxu0 %v2493
      %2686 = vmatpush.msra.mxu0 %v2490
      %2687 = vmatpush.msra.mxu0 %v2487
      %2688 = vmatpush.msra.mxu0 %v2484
      %2689 = vmatpush.msra.mxu0 %v2481
      %2690 = vmatpush.msra.mxu0 %v2478
      %2691 = vmatpush.msra.mxu0 %v2475
      %2692 = vmatpush.msra.mxu0 %v2472
      %2693 = vmatpush.msra.mxu0 %v2469
      %2694 = vmatmul.f32.gmra.mxu0 %v1809
      %v2695 = vpop.f32.mrf.mxu0
      %v2696 = vadd.f32 %v2667, %v2695
      %2697 = vmatmul.f32.gmra.mxu0 %v1812
      %v2698 = vpop.f32.mrf.mxu0
      %v2699 = vadd.f32 %v2670, %v2698
      %2700 = vmatmul.f32.gmra.mxu0 %v1815
      %v2701 = vpop.f32.mrf.mxu0
      %v2702 = vadd.f32 %v2673, %v2701
      %2703 = vmatmul.f32.gmra.mxu0 %v1818
      %v2704 = vpop.f32.mrf.mxu0
      %v2705 = vadd.f32 %v2676, %v2704
      %2706 = vdwg.mxu0
      %2707 = vmatpush.msra.mxu0 0.0
      %2708 = vmatpush.msra.mxu0 0.0
      %2709 = vmatpush.msra.mxu0 0.0
      %2710 = vmatpush.msra.mxu0 0.0
      %2711 = vmatpush.msra.mxu0 0.0
      %2712 = vmatpush.msra.mxu0 0.0
      %2713 = vmatpush.msra.mxu0 0.0
      %2714 = vmatpush.msra.mxu0 0.0
      %2715 = vmatpush.msra.mxu0 0.0
      %2716 = vmatpush.msra.mxu0 0.0
      %2717 = vmatpush.msra.mxu0 0.0
      %2718 = vmatpush.msra.mxu0 0.0
      %2719 = vmatpush.msra.mxu0 %v2526
      %2720 = vmatpush.msra.mxu0 %v2523
      %2721 = vmatpush.msra.mxu0 %v2520
      %2722 = vmatpush.msra.mxu0 %v2517
      %2723 = vmatmul.f32.gmra.mxu0 %v2638
      %v2724 = vpop.f32.mrf.mxu0
      %v2725 = vadd.f32 %v2696, %v2724
      %2726 = vmatmul.f32.gmra.mxu0 %v2641
      %v2727 = vpop.f32.mrf.mxu0
      %v2728 = vadd.f32 %v2699, %v2727
      %2729 = vmatmul.f32.gmra.mxu0 %v2644
      %v2730 = vpop.f32.mrf.mxu0
      %v2731 = vadd.f32 %v2702, %v2730
      %2732 = vmatmul.f32.gmra.mxu0 %v2647
      %v2733 = vpop.f32.mrf.mxu0
      %v2734 = vadd.f32 %v2705, %v2733
      %2735 = vdwg.mxu0
      %2736 = vmatpush.msra.mxu0 %v2467
      %2737 = vmatpush.msra.mxu0 %v2464
      %2738 = vmatpush.msra.mxu0 %v2461
      %2739 = vmatpush.msra.mxu0 %v2458
      %2740 = vmatpush.msra.mxu0 %v2455
      %2741 = vmatpush.msra.mxu0 %v2452
      %2742 = vmatpush.msra.mxu0 %v2449
      %2743 = vmatpush.msra.mxu0 %v2446
      %2744 = vmatpush.msra.mxu0 %v2443
      %2745 = vmatpush.msra.mxu0 %v2440
      %2746 = vmatpush.msra.mxu0 %v2437
      %2747 = vmatpush.msra.mxu0 %v2434
      %2748 = vmatpush.msra.mxu0 %v2431
      %2749 = vmatpush.msra.mxu0 %v2428
      %2750 = vmatpush.msra.mxu0 %v2425
      %2751 = vmatpush.msra.mxu0 %v2422
      %2752 = vmatmul.f32.gmra.mxu0 %v1808
      %v2753 = vpop.f32.mrf.mxu0
      %v2754 = vadd.f32 %v2124, %v2753
      %2755 = vmatmul.f32.gmra.mxu0 %v1811
      %v2756 = vpop.f32.mrf.mxu0
      %v2757 = vadd.f32 %v2129, %v2756
      %2758 = vmatmul.f32.gmra.mxu0 %v1814
      %v2759 = vpop.f32.mrf.mxu0
      %v2760 = vadd.f32 %v2134, %v2759
      %2761 = vmatmul.f32.gmra.mxu0 %v1817
      %v2762 = vpop.f32.mrf.mxu0
      %v2763 = vadd.f32 %v2139, %v2762
      %2764 = vdwg.mxu0
      %2765 = vmatpush.msra.mxu0 %v2515
      %2766 = vmatpush.msra.mxu0 %v2512
      %2767 = vmatpush.msra.mxu0 %v2509
      %2768 = vmatpush.msra.mxu0 %v2506
      %2769 = vmatpush.msra.mxu0 %v2503
      %2770 = vmatpush.msra.mxu0 %v2500
      %2771 = vmatpush.msra.mxu0 %v2497
      %2772 = vmatpush.msra.mxu0 %v2494
      %2773 = vmatpush.msra.mxu0 %v2491
      %2774 = vmatpush.msra.mxu0 %v2488
      %2775 = vmatpush.msra.mxu0 %v2485
      %2776 = vmatpush.msra.mxu0 %v2482
      %2777 = vmatpush.msra.mxu0 %v2479
      %2778 = vmatpush.msra.mxu0 %v2476
      %2779 = vmatpush.msra.mxu0 %v2473
      %2780 = vmatpush.msra.mxu0 %v2470
      %2781 = vmatmul.f32.gmra.mxu0 %v1809
      %v2782 = vpop.f32.mrf.mxu0
      %v2783 = vadd.f32 %v2754, %v2782
      %2784 = vmatmul.f32.gmra.mxu0 %v1812
      %v2785 = vpop.f32.mrf.mxu0
      %v2786 = vadd.f32 %v2757, %v2785
      %2787 = vmatmul.f32.gmra.mxu0 %v1815
      %v2788 = vpop.f32.mrf.mxu0
      %v2789 = vadd.f32 %v2760, %v2788
      %2790 = vmatmul.f32.gmra.mxu0 %v1818
      %v2791 = vpop.f32.mrf.mxu0
      %v2792 = vadd.f32 %v2763, %v2791
      %2793 = vdwg.mxu0
      %2794 = vmatpush.msra.mxu0 0.0
      %2795 = vmatpush.msra.mxu0 0.0
      %2796 = vmatpush.msra.mxu0 0.0
      %2797 = vmatpush.msra.mxu0 0.0
      %2798 = vmatpush.msra.mxu0 0.0
      %2799 = vmatpush.msra.mxu0 0.0
      %2800 = vmatpush.msra.mxu0 0.0
      %2801 = vmatpush.msra.mxu0 0.0
      %2802 = vmatpush.msra.mxu0 0.0
      %2803 = vmatpush.msra.mxu0 0.0
      %2804 = vmatpush.msra.mxu0 0.0
      %2805 = vmatpush.msra.mxu0 0.0
      %2806 = vmatpush.msra.mxu0 %v2527
      %2807 = vmatpush.msra.mxu0 %v2524
      %2808 = vmatpush.msra.mxu0 %v2521
      %2809 = vmatpush.msra.mxu0 %v2518
      %2810 = vmatmul.f32.gmra.mxu0 %v2638
      %v2811 = vpop.f32.mrf.mxu0
      %v2812 = vadd.f32 %v2783, %v2811
      %2813 = vmatmul.f32.gmra.mxu0 %v2641
      %v2814 = vpop.f32.mrf.mxu0
      %v2815 = vadd.f32 %v2786, %v2814
      %2816 = vmatmul.f32.gmra.mxu0 %v2644
      %v2817 = vpop.f32.mrf.mxu0
      %v2818 = vadd.f32 %v2789, %v2817
      %2819 = vmatmul.f32.gmra.mxu0 %v2647
      %v2820 = vpop.f32.mrf.mxu0
      %v2821 = vadd.f32 %v2792, %v2820
      %2822 = vdwg.mxu0
      %2823 = vmatpush.msra.mxu0 %v2468
      %2824 = vmatpush.msra.mxu0 %v2465
      %2825 = vmatpush.msra.mxu0 %v2462
      %2826 = vmatpush.msra.mxu0 %v2459
      %2827 = vmatpush.msra.mxu0 %v2456
      %2828 = vmatpush.msra.mxu0 %v2453
      %2829 = vmatpush.msra.mxu0 %v2450
      %2830 = vmatpush.msra.mxu0 %v2447
      %2831 = vmatpush.msra.mxu0 %v2444
      %2832 = vmatpush.msra.mxu0 %v2441
      %2833 = vmatpush.msra.mxu0 %v2438
      %2834 = vmatpush.msra.mxu0 %v2435
      %2835 = vmatpush.msra.mxu0 %v2432
      %2836 = vmatpush.msra.mxu0 %v2429
      %2837 = vmatpush.msra.mxu0 %v2426
      %2838 = vmatpush.msra.mxu0 %v2423
      %2839 = vmatmul.f32.gmra.mxu0 %v1808
      %v2840 = vpop.f32.mrf.mxu0
      %v2841 = vadd.f32 %v2124, %v2840
      %2842 = vmatmul.f32.gmra.mxu0 %v1811
      %v2843 = vpop.f32.mrf.mxu0
      %v2844 = vadd.f32 %v2129, %v2843
      %2845 = vmatmul.f32.gmra.mxu0 %v1814
      %v2846 = vpop.f32.mrf.mxu0
      %v2847 = vadd.f32 %v2134, %v2846
      %2848 = vmatmul.f32.gmra.mxu0 %v1817
      %v2849 = vpop.f32.mrf.mxu0
      %v2850 = vadd.f32 %v2139, %v2849
      %2851 = vdwg.mxu0
      %2852 = vmatpush.msra.mxu0 %v2516
      %2853 = vmatpush.msra.mxu0 %v2513
      %2854 = vmatpush.msra.mxu0 %v2510
      %2855 = vmatpush.msra.mxu0 %v2507
      %2856 = vmatpush.msra.mxu0 %v2504
      %2857 = vmatpush.msra.mxu0 %v2501
      %2858 = vmatpush.msra.mxu0 %v2498
      %2859 = vmatpush.msra.mxu0 %v2495
      %2860 = vmatpush.msra.mxu0 %v2492
      %2861 = vmatpush.msra.mxu0 %v2489
      %2862 = vmatpush.msra.mxu0 %v2486
      %2863 = vmatpush.msra.mxu0 %v2483
      %2864 = vmatpush.msra.mxu0 %v2480
      %2865 = vmatpush.msra.mxu0 %v2477
      %2866 = vmatpush.msra.mxu0 %v2474
      %2867 = vmatpush.msra.mxu0 %v2471
      %2868 = vmatmul.f32.gmra.mxu0 %v1809
      %v2869 = vpop.f32.mrf.mxu0
      %v2870 = vadd.f32 %v2841, %v2869
      %2871 = vmatmul.f32.gmra.mxu0 %v1812
      %v2872 = vpop.f32.mrf.mxu0
      %v2873 = vadd.f32 %v2844, %v2872
      %2874 = vmatmul.f32.gmra.mxu0 %v1815
      %v2875 = vpop.f32.mrf.mxu0
      %v2876 = vadd.f32 %v2847, %v2875
      %2877 = vmatmul.f32.gmra.mxu0 %v1818
      %v2878 = vpop.f32.mrf.mxu0
      %v2879 = vadd.f32 %v2850, %v2878
      %2880 = vdwg.mxu0
      %2881 = vmatpush.msra.mxu0 0.0
      %2882 = vmatpush.msra.mxu0 0.0
      %2883 = vmatpush.msra.mxu0 0.0
      %2884 = vmatpush.msra.mxu0 0.0
      %2885 = vmatpush.msra.mxu0 0.0
      %2886 = vmatpush.msra.mxu0 0.0
      %2887 = vmatpush.msra.mxu0 0.0
      %2888 = vmatpush.msra.mxu0 0.0
      %2889 = vmatpush.msra.mxu0 0.0
      %2890 = vmatpush.msra.mxu0 0.0
      %2891 = vmatpush.msra.mxu0 0.0
      %2892 = vmatpush.msra.mxu0 0.0
      %2893 = vmatpush.msra.mxu0 %v2528
      %2894 = vmatpush.msra.mxu0 %v2525
      %2895 = vmatpush.msra.mxu0 %v2522
      %2896 = vmatpush.msra.mxu0 %v2519
      %2897 = vmatmul.f32.gmra.mxu0 %v2638
      %v2898 = vpop.f32.mrf.mxu0
      %v2899 = vadd.f32 %v2870, %v2898
      %2900 = vmatmul.f32.gmra.mxu0 %v2641
      %v2901 = vpop.f32.mrf.mxu0
      %v2902 = vadd.f32 %v2873, %v2901
      %2903 = vmatmul.f32.gmra.mxu0 %v2644
      %v2904 = vpop.f32.mrf.mxu0
      %v2905 = vadd.f32 %v2876, %v2904
      %2906 = vmatmul.f32.gmra.mxu0 %v2647
      %v2907 = vpop.f32.mrf.mxu0
      %v2908 = vadd.f32 %v2879, %v2907
      %2909 = vdwg.mxu0
      %v2910 = vmul.f32 %v2725, %v663
      %v2911 = vmul.f32 %v2812, %v664
      %v2912 = vmul.f32 %v2899, %v665
      %v2913 = vmul.f32 %v2728, %v663
      %v2914 = vmul.f32 %v2815, %v664
      %v2915 = vmul.f32 %v2902, %v665
      %v2916 = vmul.f32 %v2731, %v663
      %v2917 = vmul.f32 %v2818, %v664
      %v2918 = vmul.f32 %v2905, %v665
      %v2919 = vmul.f32 %v2734, %v663
      %v2920 = vmul.f32 %v2821, %v664
      %v2921 = vmul.f32 %v2908, %v665
      %v2922 = vadd.f32 %v2910, %v669
      %v2923 = vadd.f32 %v2911, %v670
      %v2924 = vadd.f32 %v2912, %v671
      %v2925 = vadd.f32 %v2913, %v672
      %v2926 = vadd.f32 %v2914, %v673
      %v2927 = vadd.f32 %v2915, %v674
      %v2928 = vadd.f32 %v2916, %v675
      %v2929 = vadd.f32 %v2917, %v676
      %v2930 = vadd.f32 %v2918, %v677
      %v2931 = vadd.f32 %v2919, %v678
      %v2932 = vadd.f32 %v2920, %v679
      %v2933 = vadd.f32 %v2921, %v680
      %s2934 = scalar_lea.vmem %s4, 192
      %v2935 = vld [vmem:[%s2934] sm:$0xff]
      %v2936 = vld [vmem:[%s2934 + $0x8] sm:$0xff]
      %v2937 = vld [vmem:[%s2934 + $0x10] sm:$0xff]
      %v2938 = vld [vmem:[%s2934 + $0x18] sm:$0xff]
      %v2939 = vld [vmem:[%s2934 + $0x20] sm:$0xff]
      %v2940 = vld [vmem:[%s2934 + $0x28] sm:$0xff]
      %v2941 = vld [vmem:[%s2934 + $0x30] sm:$0xff]
      %v2942 = vld [vmem:[%s2934 + $0x38] sm:$0xff]
      %v2943 = vld [vmem:[%s2934 + $0x40] sm:$0xff]
      %v2944 = vld [vmem:[%s2934 + $0x48] sm:$0xff]
      %v2945 = vld [vmem:[%s2934 + $0x50] sm:$0xff]
      %v2946 = vld [vmem:[%s2934 + $0x58] sm:$0xff]
      %s2947 = scalar_lea.vmem %s5, 64
      %v2948 = vld [vmem:[%s2947] sm:$0xff]
      %v2949 = vld [vmem:[%s2947 + $0x8] sm:$0xff]
      %v2950 = vld [vmem:[%s2947 + $0x10] sm:$0xff]
      %v2951 = vld [vmem:[%s2947 + $0x18] sm:$0xff]
      %2964 = vrot.lane.b32.xlu0 %v2922, 127
      %v2965 = vpop.permute.xlu0 %2964
      %2966 = vrot.lane.b32.xlu0 %v2923, 127
      %v2967 = vpop.permute.xlu0 %2966
      %2968 = vrot.lane.b32.xlu0 %v2924, 127
      %v2969 = vpop.permute.xlu0 %2968
      %2970 = vrot.lane.b32.xlu0 %v2925, 127
      %v2971 = vpop.permute.xlu0 %2970
      %2972 = vrot.lane.b32.xlu0 %v2926, 127
      %v2973 = vpop.permute.xlu0 %2972
      %2974 = vrot.lane.b32.xlu0 %v2927, 127
      %v2975 = vpop.permute.xlu0 %2974
      %2976 = vrot.lane.b32.xlu0 %v2928, 127
      %v2977 = vpop.permute.xlu0 %2976
      %2978 = vrot.lane.b32.xlu0 %v2929, 127
      %v2979 = vpop.permute.xlu0 %2978
      %2980 = vrot.lane.b32.xlu0 %v2930, 127
      %v2981 = vpop.permute.xlu0 %2980
      %2982 = vrot.lane.b32.xlu0 %v2931, 127
      %v2983 = vpop.permute.xlu0 %2982
      %2984 = vrot.lane.b32.xlu0 %v2932, 127
      %v2985 = vpop.permute.xlu0 %2984
      %2986 = vrot.lane.b32.xlu0 %v2933, 127
      %v2987 = vpop.permute.xlu0 %2986
      %v2988 = vsel %vm330, %v323, %v2965
      %v2989 = vsel %vm330, %v2965, %v2967
      %v2990 = vsel %vm330, %v2967, %v2969
      %v2991 = vsel %vm330, %v323, %v2971
      %v2992 = vsel %vm330, %v2971, %v2973
      %v2993 = vsel %vm330, %v2973, %v2975
      %v2994 = vsel %vm330, %v323, %v2977
      %v2995 = vsel %vm330, %v2977, %v2979
      %v2996 = vsel %vm330, %v2979, %v2981
      %v2997 = vsel %vm330, %v323, %v2983
      %v2998 = vsel %vm330, %v2983, %v2985
      %v2999 = vsel %vm330, %v2985, %v2987
      %3000 = vrot.lane.b32.xlu0 %v2922, 126
      %v3001 = vpop.permute.xlu0 %3000
      %3002 = vrot.lane.b32.xlu0 %v2923, 126
      %v3003 = vpop.permute.xlu0 %3002
      %3004 = vrot.lane.b32.xlu0 %v2924, 126
      %v3005 = vpop.permute.xlu0 %3004
      %3006 = vrot.lane.b32.xlu0 %v2925, 126
      %v3007 = vpop.permute.xlu0 %3006
      %3008 = vrot.lane.b32.xlu0 %v2926, 126
      %v3009 = vpop.permute.xlu0 %3008
      %3010 = vrot.lane.b32.xlu0 %v2927, 126
      %v3011 = vpop.permute.xlu0 %3010
      %3012 = vrot.lane.b32.xlu0 %v2928, 126
      %v3013 = vpop.permute.xlu0 %3012
      %3014 = vrot.lane.b32.xlu0 %v2929, 126
      %v3015 = vpop.permute.xlu0 %3014
      %3016 = vrot.lane.b32.xlu0 %v2930, 126
      %v3017 = vpop.permute.xlu0 %3016
      %3018 = vrot.lane.b32.xlu0 %v2931, 126
      %v3019 = vpop.permute.xlu0 %3018
      %3020 = vrot.lane.b32.xlu0 %v2932, 126
      %v3021 = vpop.permute.xlu0 %3020
      %3022 = vrot.lane.b32.xlu0 %v2933, 126
      %v3023 = vpop.permute.xlu0 %3022
      %v3024 = vsel %vm342, %v335, %v3001
      %v3025 = vsel %vm342, %v3001, %v3003
      %v3026 = vsel %vm342, %v3003, %v3005
      %v3027 = vsel %vm342, %v335, %v3007
      %v3028 = vsel %vm342, %v3007, %v3009
      %v3029 = vsel %vm342, %v3009, %v3011
      %v3030 = vsel %vm342, %v335, %v3013
      %v3031 = vsel %vm342, %v3013, %v3015
      %v3032 = vsel %vm342, %v3015, %v3017
      %v3033 = vsel %vm342, %v335, %v3019
      %v3034 = vsel %vm342, %v3019, %v3021
      %v3035 = vsel %vm342, %v3021, %v3023
      %3036 = vrot.lane.b32.xlu0 %v2922, 110
      %v3037 = vpop.permute.xlu0 %3036
      %3038 = vrot.lane.b32.xlu0 %v2923, 110
      %v3039 = vpop.permute.xlu0 %3038
      %3040 = vrot.lane.b32.xlu0 %v2924, 110
      %v3041 = vpop.permute.xlu0 %3040
      %3042 = vrot.lane.b32.xlu0 %v2925, 110
      %v3043 = vpop.permute.xlu0 %3042
      %3044 = vrot.lane.b32.xlu0 %v2926, 110
      %v3045 = vpop.permute.xlu0 %3044
      %3046 = vrot.lane.b32.xlu0 %v2927, 110
      %v3047 = vpop.permute.xlu0 %3046
      %3048 = vrot.lane.b32.xlu0 %v2928, 110
      %v3049 = vpop.permute.xlu0 %3048
      %3050 = vrot.lane.b32.xlu0 %v2929, 110
      %v3051 = vpop.permute.xlu0 %3050
      %3052 = vrot.lane.b32.xlu0 %v2930, 110
      %v3053 = vpop.permute.xlu0 %3052
      %3054 = vrot.lane.b32.xlu0 %v2931, 110
      %v3055 = vpop.permute.xlu0 %3054
      %3056 = vrot.lane.b32.xlu0 %v2932, 110
      %v3057 = vpop.permute.xlu0 %3056
      %3058 = vrot.lane.b32.xlu0 %v2933, 110
      %v3059 = vpop.permute.xlu0 %3058
      %v3060 = vsel %vm354, %v347, %v3037
      %v3061 = vsel %vm354, %v3037, %v3039
      %v3062 = vsel %vm354, %v3039, %v3041
      %v3063 = vsel %vm354, %v347, %v3043
      %v3064 = vsel %vm354, %v3043, %v3045
      %v3065 = vsel %vm354, %v3045, %v3047
      %v3066 = vsel %vm354, %v347, %v3049
      %v3067 = vsel %vm354, %v3049, %v3051
      %v3068 = vsel %vm354, %v3051, %v3053
      %v3069 = vsel %vm354, %v347, %v3055
      %v3070 = vsel %vm354, %v3055, %v3057
      %v3071 = vsel %vm354, %v3057, %v3059
      %3072 = vrot.lane.b32.xlu0 %v2922, 109
      %v3073 = vpop.permute.xlu0 %3072
      %3074 = vrot.lane.b32.xlu0 %v2923, 109
      %v3075 = vpop.permute.xlu0 %3074
      %3076 = vrot.lane.b32.xlu0 %v2924, 109
      %v3077 = vpop.permute.xlu0 %3076
      %3078 = vrot.lane.b32.xlu0 %v2925, 109
      %v3079 = vpop.permute.xlu0 %3078
      %3080 = vrot.lane.b32.xlu0 %v2926, 109
      %v3081 = vpop.permute.xlu0 %3080
      %3082 = vrot.lane.b32.xlu0 %v2927, 109
      %v3083 = vpop.permute.xlu0 %3082
      %3084 = vrot.lane.b32.xlu0 %v2928, 109
      %v3085 = vpop.permute.xlu0 %3084
      %3086 = vrot.lane.b32.xlu0 %v2929, 109
      %v3087 = vpop.permute.xlu0 %3086
      %3088 = vrot.lane.b32.xlu0 %v2930, 109
      %v3089 = vpop.permute.xlu0 %3088
      %3090 = vrot.lane.b32.xlu0 %v2931, 109
      %v3091 = vpop.permute.xlu0 %3090
      %3092 = vrot.lane.b32.xlu0 %v2932, 109
      %v3093 = vpop.permute.xlu0 %3092
      %3094 = vrot.lane.b32.xlu0 %v2933, 109
      %v3095 = vpop.permute.xlu0 %3094
      %v3096 = vsel %vm364, %v3073, %v3075
      %v3097 = vsel %vm364, %v3075, %v3077
      %v3098 = vsel %vm364, %v3079, %v3081
      %v3099 = vsel %vm364, %v3081, %v3083
      %v3100 = vsel %vm364, %v3085, %v3087
      %v3101 = vsel %vm364, %v3087, %v3089
      %v3102 = vsel %vm364, %v3091, %v3093
      %v3103 = vsel %vm364, %v3093, %v3095
      %3104 = vrot.lane.b32.xlu0 %v2922, 108
      %v3105 = vpop.permute.xlu0 %3104
      %3106 = vrot.lane.b32.xlu0 %v2923, 108
      %v3107 = vpop.permute.xlu0 %3106
      %3108 = vrot.lane.b32.xlu0 %v2924, 108
      %v3109 = vpop.permute.xlu0 %3108
      %3110 = vrot.lane.b32.xlu0 %v2925, 108
      %v3111 = vpop.permute.xlu0 %3110
      %3112 = vrot.lane.b32.xlu0 %v2926, 108
      %v3113 = vpop.permute.xlu0 %3112
      %3114 = vrot.lane.b32.xlu0 %v2927, 108
      %v3115 = vpop.permute.xlu0 %3114
      %3116 = vrot.lane.b32.xlu0 %v2928, 108
      %v3117 = vpop.permute.xlu0 %3116
      %3118 = vrot.lane.b32.xlu0 %v2929, 108
      %v3119 = vpop.permute.xlu0 %3118
      %3120 = vrot.lane.b32.xlu0 %v2930, 108
      %v3121 = vpop.permute.xlu0 %3120
      %3122 = vrot.lane.b32.xlu0 %v2931, 108
      %v3123 = vpop.permute.xlu0 %3122
      %3124 = vrot.lane.b32.xlu0 %v2932, 108
      %v3125 = vpop.permute.xlu0 %3124
      %3126 = vrot.lane.b32.xlu0 %v2933, 108
      %v3127 = vpop.permute.xlu0 %3126
      %v3128 = vsel %vm375, %v3105, %v3107
      %v3129 = vsel %vm375, %v3107, %v3109
      %v3130 = vsel %vm375, %v3109, %v374
      %v3131 = vsel %vm375, %v3111, %v3113
      %v3132 = vsel %vm375, %v3113, %v3115
      %v3133 = vsel %vm375, %v3115, %v374
      %v3134 = vsel %vm375, %v3117, %v3119
      %v3135 = vsel %vm375, %v3119, %v3121
      %v3136 = vsel %vm375, %v3121, %v374
      %v3137 = vsel %vm375, %v3123, %v3125
      %v3138 = vsel %vm375, %v3125, %v3127
      %v3139 = vsel %vm375, %v3127, %v374
      %3140 = vrot.lane.b32.xlu0 %v2922, 92
      %v3141 = vpop.permute.xlu0 %3140
      %3142 = vrot.lane.b32.xlu0 %v2923, 92
      %v3143 = vpop.permute.xlu0 %3142
      %3144 = vrot.lane.b32.xlu0 %v2924, 92
      %v3145 = vpop.permute.xlu0 %3144
      %3146 = vrot.lane.b32.xlu0 %v2925, 92
      %v3147 = vpop.permute.xlu0 %3146
      %3148 = vrot.lane.b32.xlu0 %v2926, 92
      %v3149 = vpop.permute.xlu0 %3148
      %3150 = vrot.lane.b32.xlu0 %v2927, 92
      %v3151 = vpop.permute.xlu0 %3150
      %3152 = vrot.lane.b32.xlu0 %v2928, 92
      %v3153 = vpop.permute.xlu0 %3152
      %3154 = vrot.lane.b32.xlu0 %v2929, 92
      %v3155 = vpop.permute.xlu0 %3154
      %3156 = vrot.lane.b32.xlu0 %v2930, 92
      %v3157 = vpop.permute.xlu0 %3156
      %3158 = vrot.lane.b32.xlu0 %v2931, 92
      %v3159 = vpop.permute.xlu0 %3158
      %3160 = vrot.lane.b32.xlu0 %v2932, 92
      %v3161 = vpop.permute.xlu0 %3160
      %3162 = vrot.lane.b32.xlu0 %v2933, 92
      %v3163 = vpop.permute.xlu0 %3162
      %v3164 = vsel %vm387, %v3141, %v3143
      %v3165 = vsel %vm387, %v3143, %v3145
      %v3166 = vsel %vm387, %v3145, %v386
      %v3167 = vsel %vm387, %v3147, %v3149
      %v3168 = vsel %vm387, %v3149, %v3151
      %v3169 = vsel %vm387, %v3151, %v386
      %v3170 = vsel %vm387, %v3153, %v3155
      %v3171 = vsel %vm387, %v3155, %v3157
      %v3172 = vsel %vm387, %v3157, %v386
      %v3173 = vsel %vm387, %v3159, %v3161
      %v3174 = vsel %vm387, %v3161, %v3163
      %v3175 = vsel %vm387, %v3163, %v386
      %3176 = vrot.lane.b32.xlu0 %v2922, 91
      %v3177 = vpop.permute.xlu0 %3176
      %3178 = vrot.lane.b32.xlu0 %v2923, 91
      %v3179 = vpop.permute.xlu0 %3178
      %3180 = vrot.lane.b32.xlu0 %v2924, 91
      %v3181 = vpop.permute.xlu0 %3180
      %3182 = vrot.lane.b32.xlu0 %v2925, 91
      %v3183 = vpop.permute.xlu0 %3182
      %3184 = vrot.lane.b32.xlu0 %v2926, 91
      %v3185 = vpop.permute.xlu0 %3184
      %3186 = vrot.lane.b32.xlu0 %v2927, 91
      %v3187 = vpop.permute.xlu0 %3186
      %3188 = vrot.lane.b32.xlu0 %v2928, 91
      %v3189 = vpop.permute.xlu0 %3188
      %3190 = vrot.lane.b32.xlu0 %v2929, 91
      %v3191 = vpop.permute.xlu0 %3190
      %3192 = vrot.lane.b32.xlu0 %v2930, 91
      %v3193 = vpop.permute.xlu0 %3192
      %3194 = vrot.lane.b32.xlu0 %v2931, 91
      %v3195 = vpop.permute.xlu0 %3194
      %3196 = vrot.lane.b32.xlu0 %v2932, 91
      %v3197 = vpop.permute.xlu0 %3196
      %3198 = vrot.lane.b32.xlu0 %v2933, 91
      %v3199 = vpop.permute.xlu0 %3198
      %v3200 = vsel %vm399, %v3177, %v3179
      %v3201 = vsel %vm399, %v3179, %v3181
      %v3202 = vsel %vm399, %v3181, %v398
      %v3203 = vsel %vm399, %v3183, %v3185
      %v3204 = vsel %vm399, %v3185, %v3187
      %v3205 = vsel %vm399, %v3187, %v398
      %v3206 = vsel %vm399, %v3189, %v3191
      %v3207 = vsel %vm399, %v3191, %v3193
      %v3208 = vsel %vm399, %v3193, %v398
      %v3209 = vsel %vm399, %v3195, %v3197
      %v3210 = vsel %vm399, %v3197, %v3199
      %v3211 = vsel %vm399, %v3199, %v398
      %3212 = vrot.lane.b32.xlu0 %v2922, 90
      %v3213 = vpop.permute.xlu0 %3212
      %3214 = vrot.lane.b32.xlu0 %v2923, 90
      %v3215 = vpop.permute.xlu0 %3214
      %3216 = vrot.lane.b32.xlu0 %v2924, 90
      %v3217 = vpop.permute.xlu0 %3216
      %3218 = vrot.lane.b32.xlu0 %v2925, 90
      %v3219 = vpop.permute.xlu0 %3218
      %3220 = vrot.lane.b32.xlu0 %v2926, 90
      %v3221 = vpop.permute.xlu0 %3220
      %3222 = vrot.lane.b32.xlu0 %v2927, 90
      %v3223 = vpop.permute.xlu0 %3222
      %3224 = vrot.lane.b32.xlu0 %v2928, 90
      %v3225 = vpop.permute.xlu0 %3224
      %3226 = vrot.lane.b32.xlu0 %v2929, 90
      %v3227 = vpop.permute.xlu0 %3226
      %3228 = vrot.lane.b32.xlu0 %v2930, 90
      %v3229 = vpop.permute.xlu0 %3228
      %3230 = vrot.lane.b32.xlu0 %v2931, 90
      %v3231 = vpop.permute.xlu0 %3230
      %3232 = vrot.lane.b32.xlu0 %v2932, 90
      %v3233 = vpop.permute.xlu0 %3232
      %3234 = vrot.lane.b32.xlu0 %v2933, 90
      %v3235 = vpop.permute.xlu0 %3234
      %v3236 = vsel %vm411, %v3213, %v3215
      %v3237 = vsel %vm411, %v3215, %v3217
      %v3238 = vsel %vm411, %v3217, %v410
      %v3239 = vsel %vm411, %v3219, %v3221
      %v3240 = vsel %vm411, %v3221, %v3223
      %v3241 = vsel %vm411, %v3223, %v410
      %v3242 = vsel %vm411, %v3225, %v3227
      %v3243 = vsel %vm411, %v3227, %v3229
      %v3244 = vsel %vm411, %v3229, %v410
      %v3245 = vsel %vm411, %v3231, %v3233
      %v3246 = vsel %vm411, %v3233, %v3235
      %v3247 = vsel %vm411, %v3235, %v410
      %3249 = vset.pattern.permute.xlu0 0
      %3250 = vperm.xlu0 %3249, %v2948
      %v3251 = vpop.permute.xlu0 %3250
      %3254 = vset.pattern.permute.xlu0 0
      %3255 = vperm.xlu0 %3254, %v2949
      %v3256 = vpop.permute.xlu0 %3255
      %3259 = vset.pattern.permute.xlu0 0
      %3260 = vperm.xlu0 %3259, %v2950
      %v3261 = vpop.permute.xlu0 %3260
      %3264 = vset.pattern.permute.xlu0 0
      %3265 = vperm.xlu0 %3264, %v2951
      %v3266 = vpop.permute.xlu0 %3265
      %3268 = vrot.lane.b32.xlu0 %v2922, 19
      %v3269 = vpop.permute.xlu0 %3268
      %3270 = vrot.lane.b32.xlu0 %v2923, 19
      %v3271 = vpop.permute.xlu0 %3270
      %3272 = vrot.lane.b32.xlu0 %v2924, 19
      %v3273 = vpop.permute.xlu0 %3272
      %3274 = vrot.lane.b32.xlu0 %v2925, 19
      %v3275 = vpop.permute.xlu0 %3274
      %3276 = vrot.lane.b32.xlu0 %v2926, 19
      %v3277 = vpop.permute.xlu0 %3276
      %3278 = vrot.lane.b32.xlu0 %v2927, 19
      %v3279 = vpop.permute.xlu0 %3278
      %3280 = vrot.lane.b32.xlu0 %v2928, 19
      %v3281 = vpop.permute.xlu0 %3280
      %3282 = vrot.lane.b32.xlu0 %v2929, 19
      %v3283 = vpop.permute.xlu0 %3282
      %3284 = vrot.lane.b32.xlu0 %v2930, 19
      %v3285 = vpop.permute.xlu0 %3284
      %3286 = vrot.lane.b32.xlu0 %v2931, 19
      %v3287 = vpop.permute.xlu0 %3286
      %3288 = vrot.lane.b32.xlu0 %v2932, 19
      %v3289 = vpop.permute.xlu0 %3288
      %3290 = vrot.lane.b32.xlu0 %v2933, 19
      %v3291 = vpop.permute.xlu0 %3290
      %3292 = vrot.lane.b32.xlu0 %v2988, 19
      %v3293 = vpop.permute.xlu0 %3292
      %3294 = vrot.lane.b32.xlu0 %v2989, 19
      %v3295 = vpop.permute.xlu0 %3294
      %3296 = vrot.lane.b32.xlu0 %v2990, 19
      %v3297 = vpop.permute.xlu0 %3296
      %3298 = vrot.lane.b32.xlu0 %v2969, 19
      %v3299 = vpop.permute.xlu0 %3298
      %3300 = vrot.lane.b32.xlu0 %v2991, 19
      %v3301 = vpop.permute.xlu0 %3300
      %3302 = vrot.lane.b32.xlu0 %v2992, 19
      %v3303 = vpop.permute.xlu0 %3302
      %3304 = vrot.lane.b32.xlu0 %v2993, 19
      %v3305 = vpop.permute.xlu0 %3304
      %3306 = vrot.lane.b32.xlu0 %v2975, 19
      %v3307 = vpop.permute.xlu0 %3306
      %3308 = vrot.lane.b32.xlu0 %v2994, 19
      %v3309 = vpop.permute.xlu0 %3308
      %3310 = vrot.lane.b32.xlu0 %v2995, 19
      %v3311 = vpop.permute.xlu0 %3310
      %3312 = vrot.lane.b32.xlu0 %v2996, 19
      %v3313 = vpop.permute.xlu0 %3312
      %3314 = vrot.lane.b32.xlu0 %v2981, 19
      %v3315 = vpop.permute.xlu0 %3314
      %3316 = vrot.lane.b32.xlu0 %v2997, 19
      %v3317 = vpop.permute.xlu0 %3316
      %3318 = vrot.lane.b32.xlu0 %v2998, 19
      %v3319 = vpop.permute.xlu0 %3318
      %3320 = vrot.lane.b32.xlu0 %v2999, 19
      %v3321 = vpop.permute.xlu0 %3320
      %3322 = vrot.lane.b32.xlu0 %v2987, 19
      %v3323 = vpop.permute.xlu0 %3322
      %3324 = vrot.lane.b32.xlu0 %v3024, 19
      %v3325 = vpop.permute.xlu0 %3324
      %3326 = vrot.lane.b32.xlu0 %v3025, 19
      %v3327 = vpop.permute.xlu0 %3326
      %3328 = vrot.lane.b32.xlu0 %v3026, 19
      %v3329 = vpop.permute.xlu0 %3328
      %3330 = vrot.lane.b32.xlu0 %v3005, 19
      %v3331 = vpop.permute.xlu0 %3330
      %3332 = vrot.lane.b32.xlu0 %v3027, 19
      %v3333 = vpop.permute.xlu0 %3332
      %3334 = vrot.lane.b32.xlu0 %v3028, 19
      %v3335 = vpop.permute.xlu0 %3334
      %3336 = vrot.lane.b32.xlu0 %v3029, 19
      %v3337 = vpop.permute.xlu0 %3336
      %3338 = vrot.lane.b32.xlu0 %v3011, 19
      %v3339 = vpop.permute.xlu0 %3338
      %3340 = vrot.lane.b32.xlu0 %v3030, 19
      %v3341 = vpop.permute.xlu0 %3340
      %3342 = vrot.lane.b32.xlu0 %v3031, 19
      %v3343 = vpop.permute.xlu0 %3342
      %3344 = vrot.lane.b32.xlu0 %v3032, 19
      %v3345 = vpop.permute.xlu0 %3344
      %3346 = vrot.lane.b32.xlu0 %v3017, 19
      %v3347 = vpop.permute.xlu0 %3346
      %3348 = vrot.lane.b32.xlu0 %v3033, 19
      %v3349 = vpop.permute.xlu0 %3348
      %3350 = vrot.lane.b32.xlu0 %v3034, 19
      %v3351 = vpop.permute.xlu0 %3350
      %3352 = vrot.lane.b32.xlu0 %v3035, 19
      %v3353 = vpop.permute.xlu0 %3352
      %3354 = vrot.lane.b32.xlu0 %v3023, 19
      %v3355 = vpop.permute.xlu0 %3354
      %3356 = vrot.lane.b32.xlu0 %v3060, 19
      %v3357 = vpop.permute.xlu0 %3356
      %3358 = vrot.lane.b32.xlu0 %v3061, 19
      %v3359 = vpop.permute.xlu0 %3358
      %3360 = vrot.lane.b32.xlu0 %v3062, 19
      %v3361 = vpop.permute.xlu0 %3360
      %3362 = vrot.lane.b32.xlu0 %v3041, 19
      %v3363 = vpop.permute.xlu0 %3362
      %3364 = vrot.lane.b32.xlu0 %v3063, 19
      %v3365 = vpop.permute.xlu0 %3364
      %3366 = vrot.lane.b32.xlu0 %v3064, 19
      %v3367 = vpop.permute.xlu0 %3366
      %3368 = vrot.lane.b32.xlu0 %v3065, 19
      %v3369 = vpop.permute.xlu0 %3368
      %3370 = vrot.lane.b32.xlu0 %v3047, 19
      %v3371 = vpop.permute.xlu0 %3370
      %3372 = vrot.lane.b32.xlu0 %v3066, 19
      %v3373 = vpop.permute.xlu0 %3372
      %3374 = vrot.lane.b32.xlu0 %v3067, 19
      %v3375 = vpop.permute.xlu0 %3374
      %3376 = vrot.lane.b32.xlu0 %v3068, 19
      %v3377 = vpop.permute.xlu0 %3376
      %3378 = vrot.lane.b32.xlu0 %v3053, 19
      %v3379 = vpop.permute.xlu0 %3378
      %3380 = vrot.lane.b32.xlu0 %v3069, 19
      %v3381 = vpop.permute.xlu0 %3380
      %3382 = vrot.lane.b32.xlu0 %v3070, 19
      %v3383 = vpop.permute.xlu0 %3382
      %3384 = vrot.lane.b32.xlu0 %v3071, 19
      %v3385 = vpop.permute.xlu0 %3384
      %3386 = vrot.lane.b32.xlu0 %v3059, 19
      %v3387 = vpop.permute.xlu0 %3386
      %3388 = vrot.lane.b32.xlu0 %v3073, 19
      %v3389 = vpop.permute.xlu0 %3388
      %3390 = vrot.lane.b32.xlu0 %v3096, 19
      %v3391 = vpop.permute.xlu0 %3390
      %3392 = vrot.lane.b32.xlu0 %v3097, 19
      %v3393 = vpop.permute.xlu0 %3392
      %3394 = vrot.lane.b32.xlu0 %v3077, 19
      %v3395 = vpop.permute.xlu0 %3394
      %3396 = vrot.lane.b32.xlu0 %v3079, 19
      %v3397 = vpop.permute.xlu0 %3396
      %3398 = vrot.lane.b32.xlu0 %v3098, 19
      %v3399 = vpop.permute.xlu0 %3398
      %3400 = vrot.lane.b32.xlu0 %v3099, 19
      %v3401 = vpop.permute.xlu0 %3400
      %3402 = vrot.lane.b32.xlu0 %v3083, 19
      %v3403 = vpop.permute.xlu0 %3402
      %3404 = vrot.lane.b32.xlu0 %v3085, 19
      %v3405 = vpop.permute.xlu0 %3404
      %3406 = vrot.lane.b32.xlu0 %v3100, 19
      %v3407 = vpop.permute.xlu0 %3406
      %3408 = vrot.lane.b32.xlu0 %v3101, 19
      %v3409 = vpop.permute.xlu0 %3408
      %3410 = vrot.lane.b32.xlu0 %v3089, 19
      %v3411 = vpop.permute.xlu0 %3410
      %3412 = vrot.lane.b32.xlu0 %v3091, 19
      %v3413 = vpop.permute.xlu0 %3412
      %3414 = vrot.lane.b32.xlu0 %v3102, 19
      %v3415 = vpop.permute.xlu0 %3414
      %3416 = vrot.lane.b32.xlu0 %v3103, 19
      %v3417 = vpop.permute.xlu0 %3416
      %3418 = vrot.lane.b32.xlu0 %v3095, 19
      %v3419 = vpop.permute.xlu0 %3418
      %3420 = vrot.lane.b32.xlu0 %v3105, 19
      %v3421 = vpop.permute.xlu0 %3420
      %3422 = vrot.lane.b32.xlu0 %v3128, 19
      %v3423 = vpop.permute.xlu0 %3422
      %3424 = vrot.lane.b32.xlu0 %v3129, 19
      %v3425 = vpop.permute.xlu0 %3424
      %3426 = vrot.lane.b32.xlu0 %v3130, 19
      %v3427 = vpop.permute.xlu0 %3426
      %3428 = vrot.lane.b32.xlu0 %v3111, 19
      %v3429 = vpop.permute.xlu0 %3428
      %3430 = vrot.lane.b32.xlu0 %v3131, 19
      %v3431 = vpop.permute.xlu0 %3430
      %3432 = vrot.lane.b32.xlu0 %v3132, 19
      %v3433 = vpop.permute.xlu0 %3432
      %3434 = vrot.lane.b32.xlu0 %v3133, 19
      %v3435 = vpop.permute.xlu0 %3434
      %3436 = vrot.lane.b32.xlu0 %v3117, 19
      %v3437 = vpop.permute.xlu0 %3436
      %3438 = vrot.lane.b32.xlu0 %v3134, 19
      %v3439 = vpop.permute.xlu0 %3438
      %3440 = vrot.lane.b32.xlu0 %v3135, 19
      %v3441 = vpop.permute.xlu0 %3440
      %3442 = vrot.lane.b32.xlu0 %v3136, 19
      %v3443 = vpop.permute.xlu0 %3442
      %3444 = vrot.lane.b32.xlu0 %v3123, 19
      %v3445 = vpop.permute.xlu0 %3444
      %3446 = vrot.lane.b32.xlu0 %v3137, 19
      %v3447 = vpop.permute.xlu0 %3446
      %3448 = vrot.lane.b32.xlu0 %v3138, 19
      %v3449 = vpop.permute.xlu0 %3448
      %3450 = vrot.lane.b32.xlu0 %v3139, 19
      %v3451 = vpop.permute.xlu0 %3450
      %3452 = vrot.lane.b32.xlu0 %v3141, 19
      %v3453 = vpop.permute.xlu0 %3452
      %3454 = vrot.lane.b32.xlu0 %v3164, 19
      %v3455 = vpop.permute.xlu0 %3454
      %3456 = vrot.lane.b32.xlu0 %v3165, 19
      %v3457 = vpop.permute.xlu0 %3456
      %3458 = vrot.lane.b32.xlu0 %v3166, 19
      %v3459 = vpop.permute.xlu0 %3458
      %3460 = vrot.lane.b32.xlu0 %v3147, 19
      %v3461 = vpop.permute.xlu0 %3460
      %3462 = vrot.lane.b32.xlu0 %v3167, 19
      %v3463 = vpop.permute.xlu0 %3462
      %3464 = vrot.lane.b32.xlu0 %v3168, 19
      %v3465 = vpop.permute.xlu0 %3464
      %3466 = vrot.lane.b32.xlu0 %v3169, 19
      %v3467 = vpop.permute.xlu0 %3466
      %3468 = vrot.lane.b32.xlu0 %v3153, 19
      %v3469 = vpop.permute.xlu0 %3468
      %3470 = vrot.lane.b32.xlu0 %v3170, 19
      %v3471 = vpop.permute.xlu0 %3470
      %3472 = vrot.lane.b32.xlu0 %v3171, 19
      %v3473 = vpop.permute.xlu0 %3472
      %3474 = vrot.lane.b32.xlu0 %v3172, 19
      %v3475 = vpop.permute.xlu0 %3474
      %3476 = vrot.lane.b32.xlu0 %v3159, 19
      %v3477 = vpop.permute.xlu0 %3476
      %3478 = vrot.lane.b32.xlu0 %v3173, 19
      %v3479 = vpop.permute.xlu0 %3478
      %3480 = vrot.lane.b32.xlu0 %v3174, 19
      %v3481 = vpop.permute.xlu0 %3480
      %3482 = vrot.lane.b32.xlu0 %v3175, 19
      %v3483 = vpop.permute.xlu0 %3482
      %3484 = vrot.lane.b32.xlu0 %v3177, 19
      %v3485 = vpop.permute.xlu0 %3484
      %3486 = vrot.lane.b32.xlu0 %v3200, 19
      %v3487 = vpop.permute.xlu0 %3486
      %3488 = vrot.lane.b32.xlu0 %v3201, 19
      %v3489 = vpop.permute.xlu0 %3488
      %3490 = vrot.lane.b32.xlu0 %v3202, 19
      %v3491 = vpop.permute.xlu0 %3490
      %3492 = vrot.lane.b32.xlu0 %v3183, 19
      %v3493 = vpop.permute.xlu0 %3492
      %3494 = vrot.lane.b32.xlu0 %v3203, 19
      %v3495 = vpop.permute.xlu0 %3494
      %3496 = vrot.lane.b32.xlu0 %v3204, 19
      %v3497 = vpop.permute.xlu0 %3496
      %3498 = vrot.lane.b32.xlu0 %v3205, 19
      %v3499 = vpop.permute.xlu0 %3498
      %3500 = vrot.lane.b32.xlu0 %v3189, 19
      %v3501 = vpop.permute.xlu0 %3500
      %3502 = vrot.lane.b32.xlu0 %v3206, 19
      %v3503 = vpop.permute.xlu0 %3502
      %3504 = vrot.lane.b32.xlu0 %v3207, 19
      %v3505 = vpop.permute.xlu0 %3504
      %3506 = vrot.lane.b32.xlu0 %v3208, 19
      %v3507 = vpop.permute.xlu0 %3506
      %3508 = vrot.lane.b32.xlu0 %v3195, 19
      %v3509 = vpop.permute.xlu0 %3508
      %3510 = vrot.lane.b32.xlu0 %v3209, 19
      %v3511 = vpop.permute.xlu0 %3510
      %3512 = vrot.lane.b32.xlu0 %v3210, 19
      %v3513 = vpop.permute.xlu0 %3512
      %3514 = vrot.lane.b32.xlu0 %v3211, 19
      %v3515 = vpop.permute.xlu0 %3514
      %3516 = vrot.lane.b32.xlu0 %v3213, 19
      %v3517 = vpop.permute.xlu0 %3516
      %3518 = vrot.lane.b32.xlu0 %v3236, 19
      %v3519 = vpop.permute.xlu0 %3518
      %3520 = vrot.lane.b32.xlu0 %v3237, 19
      %v3521 = vpop.permute.xlu0 %3520
      %3522 = vrot.lane.b32.xlu0 %v3238, 19
      %v3523 = vpop.permute.xlu0 %3522
      %3524 = vrot.lane.b32.xlu0 %v3219, 19
      %v3525 = vpop.permute.xlu0 %3524
      %3526 = vrot.lane.b32.xlu0 %v3239, 19
      %v3527 = vpop.permute.xlu0 %3526
      %3528 = vrot.lane.b32.xlu0 %v3240, 19
      %v3529 = vpop.permute.xlu0 %3528
      %3530 = vrot.lane.b32.xlu0 %v3241, 19
      %v3531 = vpop.permute.xlu0 %3530
      %3532 = vrot.lane.b32.xlu0 %v3225, 19
      %v3533 = vpop.permute.xlu0 %3532
      %3534 = vrot.lane.b32.xlu0 %v3242, 19
      %v3535 = vpop.permute.xlu0 %3534
      %3536 = vrot.lane.b32.xlu0 %v3243, 19
      %v3537 = vpop.permute.xlu0 %3536
      %3538 = vrot.lane.b32.xlu0 %v3244, 19
      %v3539 = vpop.permute.xlu0 %3538
      %3540 = vrot.lane.b32.xlu0 %v3231, 19
      %v3541 = vpop.permute.xlu0 %3540
      %3542 = vrot.lane.b32.xlu0 %v3245, 19
      %v3543 = vpop.permute.xlu0 %3542
      %3544 = vrot.lane.b32.xlu0 %v3246, 19
      %v3545 = vpop.permute.xlu0 %3544
      %3546 = vrot.lane.b32.xlu0 %v3247, 19
      %v3547 = vpop.permute.xlu0 %3546
      %v3548 = vsel %vm507, %v436, %v3269
      %v3549 = vsel %vm507, %v3269, %v3271
      %v3550 = vsel %vm507, %v3271, %v3273
      %v3551 = vsel %vm507, %v436, %v3275
      %v3552 = vsel %vm507, %v3275, %v3277
      %v3553 = vsel %vm507, %v3277, %v3279
      %v3554 = vsel %vm507, %v436, %v3281
      %v3555 = vsel %vm507, %v3281, %v3283
      %v3556 = vsel %vm507, %v3283, %v3285
      %v3557 = vsel %vm507, %v436, %v3287
      %v3558 = vsel %vm507, %v3287, %v3289
      %v3559 = vsel %vm507, %v3289, %v3291
      %v3560 = vsel %vm507, %v3293, %v3295
      %v3561 = vsel %vm507, %v3295, %v3297
      %v3562 = vsel %vm507, %v3297, %v3299
      %v3563 = vsel %vm507, %v3301, %v3303
      %v3564 = vsel %vm507, %v3303, %v3305
      %v3565 = vsel %vm507, %v3305, %v3307
      %v3566 = vsel %vm507, %v3309, %v3311
      %v3567 = vsel %vm507, %v3311, %v3313
      %v3568 = vsel %vm507, %v3313, %v3315
      %v3569 = vsel %vm507, %v3317, %v3319
      %v3570 = vsel %vm507, %v3319, %v3321
      %v3571 = vsel %vm507, %v3321, %v3323
      %v3572 = vsel %vm507, %v3325, %v3327
      %v3573 = vsel %vm507, %v3327, %v3329
      %v3574 = vsel %vm507, %v3329, %v3331
      %v3575 = vsel %vm507, %v3333, %v3335
      %v3576 = vsel %vm507, %v3335, %v3337
      %v3577 = vsel %vm507, %v3337, %v3339
      %v3578 = vsel %vm507, %v3341, %v3343
      %v3579 = vsel %vm507, %v3343, %v3345
      %v3580 = vsel %vm507, %v3345, %v3347
      %v3581 = vsel %vm507, %v3349, %v3351
      %v3582 = vsel %vm507, %v3351, %v3353
      %v3583 = vsel %vm507, %v3353, %v3355
      %v3584 = vsel %vm507, %v3357, %v3359
      %v3585 = vsel %vm507, %v3359, %v3361
      %v3586 = vsel %vm507, %v3361, %v3363
      %v3587 = vsel %vm507, %v3365, %v3367
      %v3588 = vsel %vm507, %v3367, %v3369
      %v3589 = vsel %vm507, %v3369, %v3371
      %v3590 = vsel %vm507, %v3373, %v3375
      %v3591 = vsel %vm507, %v3375, %v3377
      %v3592 = vsel %vm507, %v3377, %v3379
      %v3593 = vsel %vm507, %v3381, %v3383
      %v3594 = vsel %vm507, %v3383, %v3385
      %v3595 = vsel %vm507, %v3385, %v3387
      %v3596 = vsel %vm507, %v3389, %v3391
      %v3597 = vsel %vm507, %v3391, %v3393
      %v3598 = vsel %vm507, %v3393, %v3395
      %v3599 = vsel %vm507, %v3397, %v3399
      %v3600 = vsel %vm507, %v3399, %v3401
      %v3601 = vsel %vm507, %v3401, %v3403
      %v3602 = vsel %vm507, %v3405, %v3407
      %v3603 = vsel %vm507, %v3407, %v3409
      %v3604 = vsel %vm507, %v3409, %v3411
      %v3605 = vsel %vm507, %v3413, %v3415
      %v3606 = vsel %vm507, %v3415, %v3417
      %v3607 = vsel %vm507, %v3417, %v3419
      %v3608 = vsel %vm507, %v3421, %v3423
      %v3609 = vsel %vm507, %v3423, %v3425
      %v3610 = vsel %vm507, %v3425, %v3427
      %v3611 = vsel %vm507, %v3429, %v3431
      %v3612 = vsel %vm507, %v3431, %v3433
      %v3613 = vsel %vm507, %v3433, %v3435
      %v3614 = vsel %vm507, %v3437, %v3439
      %v3615 = vsel %vm507, %v3439, %v3441
      %v3616 = vsel %vm507, %v3441, %v3443
      %v3617 = vsel %vm507, %v3445, %v3447
      %v3618 = vsel %vm507, %v3447, %v3449
      %v3619 = vsel %vm507, %v3449, %v3451
      %v3620 = vsel %vm507, %v3453, %v3455
      %v3621 = vsel %vm507, %v3455, %v3457
      %v3622 = vsel %vm507, %v3457, %v3459
      %v3623 = vsel %vm507, %v3461, %v3463
      %v3624 = vsel %vm507, %v3463, %v3465
      %v3625 = vsel %vm507, %v3465, %v3467
      %v3626 = vsel %vm507, %v3469, %v3471
      %v3627 = vsel %vm507, %v3471, %v3473
      %v3628 = vsel %vm507, %v3473, %v3475
      %v3629 = vsel %vm507, %v3477, %v3479
      %v3630 = vsel %vm507, %v3479, %v3481
      %v3631 = vsel %vm507, %v3481, %v3483
      %v3632 = vsel %vm507, %v3485, %v3487
      %v3633 = vsel %vm507, %v3487, %v3489
      %v3634 = vsel %vm507, %v3489, %v3491
      %v3635 = vsel %vm507, %v3493, %v3495
      %v3636 = vsel %vm507, %v3495, %v3497
      %v3637 = vsel %vm507, %v3497, %v3499
      %v3638 = vsel %vm507, %v3501, %v3503
      %v3639 = vsel %vm507, %v3503, %v3505
      %v3640 = vsel %vm507, %v3505, %v3507
      %v3641 = vsel %vm507, %v3509, %v3511
      %v3642 = vsel %vm507, %v3511, %v3513
      %v3643 = vsel %vm507, %v3513, %v3515
      %v3644 = vsel %vm507, %v3517, %v3519
      %v3645 = vsel %vm507, %v3519, %v3521
      %v3646 = vsel %vm507, %v3521, %v3523
      %v3647 = vsel %vm507, %v3525, %v3527
      %v3648 = vsel %vm507, %v3527, %v3529
      %v3649 = vsel %vm507, %v3529, %v3531
      %v3650 = vsel %vm507, %v3533, %v3535
      %v3651 = vsel %vm507, %v3535, %v3537
      %v3652 = vsel %vm507, %v3537, %v3539
      %v3653 = vsel %vm507, %v3541, %v3543
      %v3654 = vsel %vm507, %v3543, %v3545
      %v3655 = vsel %vm507, %v3545, %v3547
      %v3765 = vsel %vm1509, %v2937, 0
      %v3768 = vsel %vm1509, %v2940, 0
      %v3771 = vsel %vm1509, %v2943, 0
      %v3774 = vsel %vm1509, %v2946, 0
      %3776 = vmatpush.msra.mxu0 %v3593
      %3777 = vmatpush.msra.mxu0 %v3590
      %3778 = vmatpush.msra.mxu0 %v3587
      %3779 = vmatpush.msra.mxu0 %v3584
      %3780 = vmatpush.msra.mxu0 %v3581
      %3781 = vmatpush.msra.mxu0 %v3578
      %3782 = vmatpush.msra.mxu0 %v3575
      %3783 = vmatpush.msra.mxu0 %v3572
      %3784 = vmatpush.msra.mxu0 %v3569
      %3785 = vmatpush.msra.mxu0 %v3566
      %3786 = vmatpush.msra.mxu0 %v3563
      %3787 = vmatpush.msra.mxu0 %v3560
      %3788 = vmatpush.msra.mxu0 %v3557
      %3789 = vmatpush.msra.mxu0 %v3554
      %3790 = vmatpush.msra.mxu0 %v3551
      %3791 = vmatpush.msra.mxu0 %v3548
      %3792 = vmatmul.f32.gmra.mxu0 %v2935
      %v3793 = vpop.f32.mrf.mxu0
      %v3794 = vadd.f32 %v3251, %v3793
      %3795 = vmatmul.f32.gmra.mxu0 %v2938
      %v3796 = vpop.f32.mrf.mxu0
      %v3797 = vadd.f32 %v3256, %v3796
      %3798 = vmatmul.f32.gmra.mxu0 %v2941
      %v3799 = vpop.f32.mrf.mxu0
      %v3800 = vadd.f32 %v3261, %v3799
      %3801 = vmatmul.f32.gmra.mxu0 %v2944
      %v3802 = vpop.f32.mrf.mxu0
      %v3803 = vadd.f32 %v3266, %v3802
      %3804 = vdwg.mxu0
      %3805 = vmatpush.msra.mxu0 %v3641
      %3806 = vmatpush.msra.mxu0 %v3638
      %3807 = vmatpush.msra.mxu0 %v3635
      %3808 = vmatpush.msra.mxu0 %v3632
      %3809 = vmatpush.msra.mxu0 %v3629
      %3810 = vmatpush.msra.mxu0 %v3626
      %3811 = vmatpush.msra.mxu0 %v3623
      %3812 = vmatpush.msra.mxu0 %v3620
      %3813 = vmatpush.msra.mxu0 %v3617
      %3814 = vmatpush.msra.mxu0 %v3614
      %3815 = vmatpush.msra.mxu0 %v3611
      %3816 = vmatpush.msra.mxu0 %v3608
      %3817 = vmatpush.msra.mxu0 %v3605
      %3818 = vmatpush.msra.mxu0 %v3602
      %3819 = vmatpush.msra.mxu0 %v3599
      %3820 = vmatpush.msra.mxu0 %v3596
      %3821 = vmatmul.f32.gmra.mxu0 %v2936
      %v3822 = vpop.f32.mrf.mxu0
      %v3823 = vadd.f32 %v3794, %v3822
      %3824 = vmatmul.f32.gmra.mxu0 %v2939
      %v3825 = vpop.f32.mrf.mxu0
      %v3826 = vadd.f32 %v3797, %v3825
      %3827 = vmatmul.f32.gmra.mxu0 %v2942
      %v3828 = vpop.f32.mrf.mxu0
      %v3829 = vadd.f32 %v3800, %v3828
      %3830 = vmatmul.f32.gmra.mxu0 %v2945
      %v3831 = vpop.f32.mrf.mxu0
      %v3832 = vadd.f32 %v3803, %v3831
      %3833 = vdwg.mxu0
      %3834 = vmatpush.msra.mxu0 0.0
      %3835 = vmatpush.msra.mxu0 0.0
      %3836 = vmatpush.msra.mxu0 0.0
      %3837 = vmatpush.msra.mxu0 0.0
      %3838 = vmatpush.msra.mxu0 0.0
      %3839 = vmatpush.msra.mxu0 0.0
      %3840 = vmatpush.msra.mxu0 0.0
      %3841 = vmatpush.msra.mxu0 0.0
      %3842 = vmatpush.msra.mxu0 0.0
      %3843 = vmatpush.msra.mxu0 0.0
      %3844 = vmatpush.msra.mxu0 0.0
      %3845 = vmatpush.msra.mxu0 0.0
      %3846 = vmatpush.msra.mxu0 %v3653
      %3847 = vmatpush.msra.mxu0 %v3650
      %3848 = vmatpush.msra.mxu0 %v3647
      %3849 = vmatpush.msra.mxu0 %v3644
      %3850 = vmatmul.f32.gmra.mxu0 %v3765
      %v3851 = vpop.f32.mrf.mxu0
      %v3852 = vadd.f32 %v3823, %v3851
      %3853 = vmatmul.f32.gmra.mxu0 %v3768
      %v3854 = vpop.f32.mrf.mxu0
      %v3855 = vadd.f32 %v3826, %v3854
      %3856 = vmatmul.f32.gmra.mxu0 %v3771
      %v3857 = vpop.f32.mrf.mxu0
      %v3858 = vadd.f32 %v3829, %v3857
      %3859 = vmatmul.f32.gmra.mxu0 %v3774
      %v3860 = vpop.f32.mrf.mxu0
      %v3861 = vadd.f32 %v3832, %v3860
      %3862 = vdwg.mxu0
      %3863 = vmatpush.msra.mxu0 %v3594
      %3864 = vmatpush.msra.mxu0 %v3591
      %3865 = vmatpush.msra.mxu0 %v3588
      %3866 = vmatpush.msra.mxu0 %v3585
      %3867 = vmatpush.msra.mxu0 %v3582
      %3868 = vmatpush.msra.mxu0 %v3579
      %3869 = vmatpush.msra.mxu0 %v3576
      %3870 = vmatpush.msra.mxu0 %v3573
      %3871 = vmatpush.msra.mxu0 %v3570
      %3872 = vmatpush.msra.mxu0 %v3567
      %3873 = vmatpush.msra.mxu0 %v3564
      %3874 = vmatpush.msra.mxu0 %v3561
      %3875 = vmatpush.msra.mxu0 %v3558
      %3876 = vmatpush.msra.mxu0 %v3555
      %3877 = vmatpush.msra.mxu0 %v3552
      %3878 = vmatpush.msra.mxu0 %v3549
      %3879 = vmatmul.f32.gmra.mxu0 %v2935
      %v3880 = vpop.f32.mrf.mxu0
      %v3881 = vadd.f32 %v3251, %v3880
      %3882 = vmatmul.f32.gmra.mxu0 %v2938
      %v3883 = vpop.f32.mrf.mxu0
      %v3884 = vadd.f32 %v3256, %v3883
      %3885 = vmatmul.f32.gmra.mxu0 %v2941
      %v3886 = vpop.f32.mrf.mxu0
      %v3887 = vadd.f32 %v3261, %v3886
      %3888 = vmatmul.f32.gmra.mxu0 %v2944
      %v3889 = vpop.f32.mrf.mxu0
      %v3890 = vadd.f32 %v3266, %v3889
      %3891 = vdwg.mxu0
      %3892 = vmatpush.msra.mxu0 %v3642
      %3893 = vmatpush.msra.mxu0 %v3639
      %3894 = vmatpush.msra.mxu0 %v3636
      %3895 = vmatpush.msra.mxu0 %v3633
      %3896 = vmatpush.msra.mxu0 %v3630
      %3897 = vmatpush.msra.mxu0 %v3627
      %3898 = vmatpush.msra.mxu0 %v3624
      %3899 = vmatpush.msra.mxu0 %v3621
      %3900 = vmatpush.msra.mxu0 %v3618
      %3901 = vmatpush.msra.mxu0 %v3615
      %3902 = vmatpush.msra.mxu0 %v3612
      %3903 = vmatpush.msra.mxu0 %v3609
      %3904 = vmatpush.msra.mxu0 %v3606
      %3905 = vmatpush.msra.mxu0 %v3603
      %3906 = vmatpush.msra.mxu0 %v3600
      %3907 = vmatpush.msra.mxu0 %v3597
      %3908 = vmatmul.f32.gmra.mxu0 %v2936
      %v3909 = vpop.f32.mrf.mxu0
      %v3910 = vadd.f32 %v3881, %v3909
      %3911 = vmatmul.f32.gmra.mxu0 %v2939
      %v3912 = vpop.f32.mrf.mxu0
      %v3913 = vadd.f32 %v3884, %v3912
      %3914 = vmatmul.f32.gmra.mxu0 %v2942
      %v3915 = vpop.f32.mrf.mxu0
      %v3916 = vadd.f32 %v3887, %v3915
      %3917 = vmatmul.f32.gmra.mxu0 %v2945
      %v3918 = vpop.f32.mrf.mxu0
      %v3919 = vadd.f32 %v3890, %v3918
      %3920 = vdwg.mxu0
      %3921 = vmatpush.msra.mxu0 0.0
      %3922 = vmatpush.msra.mxu0 0.0
      %3923 = vmatpush.msra.mxu0 0.0
      %3924 = vmatpush.msra.mxu0 0.0
      %3925 = vmatpush.msra.mxu0 0.0
      %3926 = vmatpush.msra.mxu0 0.0
      %3927 = vmatpush.msra.mxu0 0.0
      %3928 = vmatpush.msra.mxu0 0.0
      %3929 = vmatpush.msra.mxu0 0.0
      %3930 = vmatpush.msra.mxu0 0.0
      %3931 = vmatpush.msra.mxu0 0.0
      %3932 = vmatpush.msra.mxu0 0.0
      %3933 = vmatpush.msra.mxu0 %v3654
      %3934 = vmatpush.msra.mxu0 %v3651
      %3935 = vmatpush.msra.mxu0 %v3648
      %3936 = vmatpush.msra.mxu0 %v3645
      %3937 = vmatmul.f32.gmra.mxu0 %v3765
      %v3938 = vpop.f32.mrf.mxu0
      %v3939 = vadd.f32 %v3910, %v3938
      %3940 = vmatmul.f32.gmra.mxu0 %v3768
      %v3941 = vpop.f32.mrf.mxu0
      %v3942 = vadd.f32 %v3913, %v3941
      %3943 = vmatmul.f32.gmra.mxu0 %v3771
      %v3944 = vpop.f32.mrf.mxu0
      %v3945 = vadd.f32 %v3916, %v3944
      %3946 = vmatmul.f32.gmra.mxu0 %v3774
      %v3947 = vpop.f32.mrf.mxu0
      %v3948 = vadd.f32 %v3919, %v3947
      %3949 = vdwg.mxu0
      %3950 = vmatpush.msra.mxu0 %v3595
      %3951 = vmatpush.msra.mxu0 %v3592
      %3952 = vmatpush.msra.mxu0 %v3589
      %3953 = vmatpush.msra.mxu0 %v3586
      %3954 = vmatpush.msra.mxu0 %v3583
      %3955 = vmatpush.msra.mxu0 %v3580
      %3956 = vmatpush.msra.mxu0 %v3577
      %3957 = vmatpush.msra.mxu0 %v3574
      %3958 = vmatpush.msra.mxu0 %v3571
      %3959 = vmatpush.msra.mxu0 %v3568
      %3960 = vmatpush.msra.mxu0 %v3565
      %3961 = vmatpush.msra.mxu0 %v3562
      %3962 = vmatpush.msra.mxu0 %v3559
      %3963 = vmatpush.msra.mxu0 %v3556
      %3964 = vmatpush.msra.mxu0 %v3553
      %3965 = vmatpush.msra.mxu0 %v3550
      %3966 = vmatmul.f32.gmra.mxu0 %v2935
      %v3967 = vpop.f32.mrf.mxu0
      %v3968 = vadd.f32 %v3251, %v3967
      %3969 = vmatmul.f32.gmra.mxu0 %v2938
      %v3970 = vpop.f32.mrf.mxu0
      %v3971 = vadd.f32 %v3256, %v3970
      %3972 = vmatmul.f32.gmra.mxu0 %v2941
      %v3973 = vpop.f32.mrf.mxu0
      %v3974 = vadd.f32 %v3261, %v3973
      %3975 = vmatmul.f32.gmra.mxu0 %v2944
      %v3976 = vpop.f32.mrf.mxu0
      %v3977 = vadd.f32 %v3266, %v3976
      %3978 = vdwg.mxu0
      %3979 = vmatpush.msra.mxu0 %v3643
      %3980 = vmatpush.msra.mxu0 %v3640
      %3981 = vmatpush.msra.mxu0 %v3637
      %3982 = vmatpush.msra.mxu0 %v3634
      %3983 = vmatpush.msra.mxu0 %v3631
      %3984 = vmatpush.msra.mxu0 %v3628
      %3985 = vmatpush.msra.mxu0 %v3625
      %3986 = vmatpush.msra.mxu0 %v3622
      %3987 = vmatpush.msra.mxu0 %v3619
      %3988 = vmatpush.msra.mxu0 %v3616
      %3989 = vmatpush.msra.mxu0 %v3613
      %3990 = vmatpush.msra.mxu0 %v3610
      %3991 = vmatpush.msra.mxu0 %v3607
      %3992 = vmatpush.msra.mxu0 %v3604
      %3993 = vmatpush.msra.mxu0 %v3601
      %3994 = vmatpush.msra.mxu0 %v3598
      %3995 = vmatmul.f32.gmra.mxu0 %v2936
      %v3996 = vpop.f32.mrf.mxu0
      %v3997 = vadd.f32 %v3968, %v3996
      %3998 = vmatmul.f32.gmra.mxu0 %v2939
      %v3999 = vpop.f32.mrf.mxu0
      %v4000 = vadd.f32 %v3971, %v3999
      %4001 = vmatmul.f32.gmra.mxu0 %v2942
      %v4002 = vpop.f32.mrf.mxu0
      %v4003 = vadd.f32 %v3974, %v4002
      %4004 = vmatmul.f32.gmra.mxu0 %v2945
      %v4005 = vpop.f32.mrf.mxu0
      %v4006 = vadd.f32 %v3977, %v4005
      %4007 = vdwg.mxu0
      %4008 = vmatpush.msra.mxu0 0.0
      %4009 = vmatpush.msra.mxu0 0.0
      %4010 = vmatpush.msra.mxu0 0.0
      %4011 = vmatpush.msra.mxu0 0.0
      %4012 = vmatpush.msra.mxu0 0.0
      %4013 = vmatpush.msra.mxu0 0.0
      %4014 = vmatpush.msra.mxu0 0.0
      %4015 = vmatpush.msra.mxu0 0.0
      %4016 = vmatpush.msra.mxu0 0.0
      %4017 = vmatpush.msra.mxu0 0.0
      %4018 = vmatpush.msra.mxu0 0.0
      %4019 = vmatpush.msra.mxu0 0.0
      %4020 = vmatpush.msra.mxu0 %v3655
      %4021 = vmatpush.msra.mxu0 %v3652
      %4022 = vmatpush.msra.mxu0 %v3649
      %4023 = vmatpush.msra.mxu0 %v3646
      %4024 = vmatmul.f32.gmra.mxu0 %v3765
      %v4025 = vpop.f32.mrf.mxu0
      %v4026 = vadd.f32 %v3997, %v4025
      %4027 = vmatmul.f32.gmra.mxu0 %v3768
      %v4028 = vpop.f32.mrf.mxu0
      %v4029 = vadd.f32 %v4000, %v4028
      %4030 = vmatmul.f32.gmra.mxu0 %v3771
      %v4031 = vpop.f32.mrf.mxu0
      %v4032 = vadd.f32 %v4003, %v4031
      %4033 = vmatmul.f32.gmra.mxu0 %v3774
      %v4034 = vpop.f32.mrf.mxu0
      %v4035 = vadd.f32 %v4006, %v4034
      %4036 = vdwg.mxu0
      %v4037 = vmax.f32 %v3852, 0.0
      %v4038 = vmax.f32 %v3939, 0.0
      %v4039 = vmax.f32 %v4026, 0.0
      %v4040 = vmax.f32 %v3855, 0.0
      %v4041 = vmax.f32 %v3942, 0.0
      %v4042 = vmax.f32 %v4029, 0.0
      %v4043 = vmax.f32 %v3858, 0.0
      %v4044 = vmax.f32 %v3945, 0.0
      %v4045 = vmax.f32 %v4032, 0.0
      %v4046 = vmax.f32 %v3861, 0.0
      %v4047 = vmax.f32 %v3948, 0.0
      %v4048 = vmax.f32 %v4035, 0.0
      %v4049 = vmul.f32 %v4037, %v663
      %v4050 = vmul.f32 %v4038, %v664
      %v4051 = vmul.f32 %v4039, %v665
      %v4052 = vmul.f32 %v4040, %v663
      %v4053 = vmul.f32 %v4041, %v664
      %v4054 = vmul.f32 %v4042, %v665
      %v4055 = vmul.f32 %v4043, %v663
      %v4056 = vmul.f32 %v4044, %v664
      %v4057 = vmul.f32 %v4045, %v665
      %v4058 = vmul.f32 %v4046, %v663
      %v4059 = vmul.f32 %v4047, %v664
      %v4060 = vmul.f32 %v4048, %v665
      %s4061 = scalar_lea.vmem %s4, 288
      %v4062 = vld [vmem:[%s4061] sm:$0xff]
      %v4063 = vld [vmem:[%s4061 + $0x8] sm:$0xff]
      %v4064 = vld [vmem:[%s4061 + $0x10] sm:$0xff]
      %v4065 = vld [vmem:[%s4061 + $0x18] sm:$0xff]
      %v4066 = vld [vmem:[%s4061 + $0x20] sm:$0xff]
      %v4067 = vld [vmem:[%s4061 + $0x28] sm:$0xff]
      %v4068 = vld [vmem:[%s4061 + $0x30] sm:$0xff]
      %v4069 = vld [vmem:[%s4061 + $0x38] sm:$0xff]
      %v4070 = vld [vmem:[%s4061 + $0x40] sm:$0xff]
      %v4071 = vld [vmem:[%s4061 + $0x48] sm:$0xff]
      %v4072 = vld [vmem:[%s4061 + $0x50] sm:$0xff]
      %v4073 = vld [vmem:[%s4061 + $0x58] sm:$0xff]
      %s4074 = scalar_lea.vmem %s5, 96
      %v4075 = vld [vmem:[%s4074] sm:$0xff]
      %v4076 = vld [vmem:[%s4074 + $0x8] sm:$0xff]
      %v4077 = vld [vmem:[%s4074 + $0x10] sm:$0xff]
      %v4078 = vld [vmem:[%s4074 + $0x18] sm:$0xff]
      %4091 = vrot.lane.b32.xlu0 %v4049, 127
      %v4092 = vpop.permute.xlu0 %4091
      %4093 = vrot.lane.b32.xlu0 %v4050, 127
      %v4094 = vpop.permute.xlu0 %4093
      %4095 = vrot.lane.b32.xlu0 %v4051, 127
      %v4096 = vpop.permute.xlu0 %4095
      %4097 = vrot.lane.b32.xlu0 %v4052, 127
      %v4098 = vpop.permute.xlu0 %4097
      %4099 = vrot.lane.b32.xlu0 %v4053, 127
      %v4100 = vpop.permute.xlu0 %4099
      %4101 = vrot.lane.b32.xlu0 %v4054, 127
      %v4102 = vpop.permute.xlu0 %4101
      %4103 = vrot.lane.b32.xlu0 %v4055, 127
      %v4104 = vpop.permute.xlu0 %4103
      %4105 = vrot.lane.b32.xlu0 %v4056, 127
      %v4106 = vpop.permute.xlu0 %4105
      %4107 = vrot.lane.b32.xlu0 %v4057, 127
      %v4108 = vpop.permute.xlu0 %4107
      %4109 = vrot.lane.b32.xlu0 %v4058, 127
      %v4110 = vpop.permute.xlu0 %4109
      %4111 = vrot.lane.b32.xlu0 %v4059, 127
      %v4112 = vpop.permute.xlu0 %4111
      %4113 = vrot.lane.b32.xlu0 %v4060, 127
      %v4114 = vpop.permute.xlu0 %4113
      %v4115 = vsel %vm330, %v323, %v4092
      %v4116 = vsel %vm330, %v4092, %v4094
      %v4117 = vsel %vm330, %v4094, %v4096
      %v4118 = vsel %vm330, %v323, %v4098
      %v4119 = vsel %vm330, %v4098, %v4100
      %v4120 = vsel %vm330, %v4100, %v4102
      %v4121 = vsel %vm330, %v323, %v4104
      %v4122 = vsel %vm330, %v4104, %v4106
      %v4123 = vsel %vm330, %v4106, %v4108
      %v4124 = vsel %vm330, %v323, %v4110
      %v4125 = vsel %vm330, %v4110, %v4112
      %v4126 = vsel %vm330, %v4112, %v4114
      %4127 = vrot.lane.b32.xlu0 %v4049, 126
      %v4128 = vpop.permute.xlu0 %4127
      %4129 = vrot.lane.b32.xlu0 %v4050, 126
      %v4130 = vpop.permute.xlu0 %4129
      %4131 = vrot.lane.b32.xlu0 %v4051, 126
      %v4132 = vpop.permute.xlu0 %4131
      %4133 = vrot.lane.b32.xlu0 %v4052, 126
      %v4134 = vpop.permute.xlu0 %4133
      %4135 = vrot.lane.b32.xlu0 %v4053, 126
      %v4136 = vpop.permute.xlu0 %4135
      %4137 = vrot.lane.b32.xlu0 %v4054, 126
      %v4138 = vpop.permute.xlu0 %4137
      %4139 = vrot.lane.b32.xlu0 %v4055, 126
      %v4140 = vpop.permute.xlu0 %4139
      %4141 = vrot.lane.b32.xlu0 %v4056, 126
      %v4142 = vpop.permute.xlu0 %4141
      %4143 = vrot.lane.b32.xlu0 %v4057, 126
      %v4144 = vpop.permute.xlu0 %4143
      %4145 = vrot.lane.b32.xlu0 %v4058, 126
      %v4146 = vpop.permute.xlu0 %4145
      %4147 = vrot.lane.b32.xlu0 %v4059, 126
      %v4148 = vpop.permute.xlu0 %4147
      %4149 = vrot.lane.b32.xlu0 %v4060, 126
      %v4150 = vpop.permute.xlu0 %4149
      %v4151 = vsel %vm342, %v335, %v4128
      %v4152 = vsel %vm342, %v4128, %v4130
      %v4153 = vsel %vm342, %v4130, %v4132
      %v4154 = vsel %vm342, %v335, %v4134
      %v4155 = vsel %vm342, %v4134, %v4136
      %v4156 = vsel %vm342, %v4136, %v4138
      %v4157 = vsel %vm342, %v335, %v4140
      %v4158 = vsel %vm342, %v4140, %v4142
      %v4159 = vsel %vm342, %v4142, %v4144
      %v4160 = vsel %vm342, %v335, %v4146
      %v4161 = vsel %vm342, %v4146, %v4148
      %v4162 = vsel %vm342, %v4148, %v4150
      %4163 = vrot.lane.b32.xlu0 %v4049, 110
      %v4164 = vpop.permute.xlu0 %4163
      %4165 = vrot.lane.b32.xlu0 %v4050, 110
      %v4166 = vpop.permute.xlu0 %4165
      %4167 = vrot.lane.b32.xlu0 %v4051, 110
      %v4168 = vpop.permute.xlu0 %4167
      %4169 = vrot.lane.b32.xlu0 %v4052, 110
      %v4170 = vpop.permute.xlu0 %4169
      %4171 = vrot.lane.b32.xlu0 %v4053, 110
      %v4172 = vpop.permute.xlu0 %4171
      %4173 = vrot.lane.b32.xlu0 %v4054, 110
      %v4174 = vpop.permute.xlu0 %4173
      %4175 = vrot.lane.b32.xlu0 %v4055, 110
      %v4176 = vpop.permute.xlu0 %4175
      %4177 = vrot.lane.b32.xlu0 %v4056, 110
      %v4178 = vpop.permute.xlu0 %4177
      %4179 = vrot.lane.b32.xlu0 %v4057, 110
      %v4180 = vpop.permute.xlu0 %4179
      %4181 = vrot.lane.b32.xlu0 %v4058, 110
      %v4182 = vpop.permute.xlu0 %4181
      %4183 = vrot.lane.b32.xlu0 %v4059, 110
      %v4184 = vpop.permute.xlu0 %4183
      %4185 = vrot.lane.b32.xlu0 %v4060, 110
      %v4186 = vpop.permute.xlu0 %4185
      %v4187 = vsel %vm354, %v347, %v4164
      %v4188 = vsel %vm354, %v4164, %v4166
      %v4189 = vsel %vm354, %v4166, %v4168
      %v4190 = vsel %vm354, %v347, %v4170
      %v4191 = vsel %vm354, %v4170, %v4172
      %v4192 = vsel %vm354, %v4172, %v4174
      %v4193 = vsel %vm354, %v347, %v4176
      %v4194 = vsel %vm354, %v4176, %v4178
      %v4195 = vsel %vm354, %v4178, %v4180
      %v4196 = vsel %vm354, %v347, %v4182
      %v4197 = vsel %vm354, %v4182, %v4184
      %v4198 = vsel %vm354, %v4184, %v4186
      %4199 = vrot.lane.b32.xlu0 %v4049, 109
      %v4200 = vpop.permute.xlu0 %4199
      %4201 = vrot.lane.b32.xlu0 %v4050, 109
      %v4202 = vpop.permute.xlu0 %4201
      %4203 = vrot.lane.b32.xlu0 %v4051, 109
      %v4204 = vpop.permute.xlu0 %4203
      %4205 = vrot.lane.b32.xlu0 %v4052, 109
      %v4206 = vpop.permute.xlu0 %4205
      %4207 = vrot.lane.b32.xlu0 %v4053, 109
      %v4208 = vpop.permute.xlu0 %4207
      %4209 = vrot.lane.b32.xlu0 %v4054, 109
      %v4210 = vpop.permute.xlu0 %4209
      %4211 = vrot.lane.b32.xlu0 %v4055, 109
      %v4212 = vpop.permute.xlu0 %4211
      %4213 = vrot.lane.b32.xlu0 %v4056, 109
      %v4214 = vpop.permute.xlu0 %4213
      %4215 = vrot.lane.b32.xlu0 %v4057, 109
      %v4216 = vpop.permute.xlu0 %4215
      %4217 = vrot.lane.b32.xlu0 %v4058, 109
      %v4218 = vpop.permute.xlu0 %4217
      %4219 = vrot.lane.b32.xlu0 %v4059, 109
      %v4220 = vpop.permute.xlu0 %4219
      %4221 = vrot.lane.b32.xlu0 %v4060, 109
      %v4222 = vpop.permute.xlu0 %4221
      %v4223 = vsel %vm364, %v4200, %v4202
      %v4224 = vsel %vm364, %v4202, %v4204
      %v4225 = vsel %vm364, %v4206, %v4208
      %v4226 = vsel %vm364, %v4208, %v4210
      %v4227 = vsel %vm364, %v4212, %v4214
      %v4228 = vsel %vm364, %v4214, %v4216
      %v4229 = vsel %vm364, %v4218, %v4220
      %v4230 = vsel %vm364, %v4220, %v4222
      %4231 = vrot.lane.b32.xlu0 %v4049, 108
      %v4232 = vpop.permute.xlu0 %4231
      %4233 = vrot.lane.b32.xlu0 %v4050, 108
      %v4234 = vpop.permute.xlu0 %4233
      %4235 = vrot.lane.b32.xlu0 %v4051, 108
      %v4236 = vpop.permute.xlu0 %4235
      %4237 = vrot.lane.b32.xlu0 %v4052, 108
      %v4238 = vpop.permute.xlu0 %4237
      %4239 = vrot.lane.b32.xlu0 %v4053, 108
      %v4240 = vpop.permute.xlu0 %4239
      %4241 = vrot.lane.b32.xlu0 %v4054, 108
      %v4242 = vpop.permute.xlu0 %4241
      %4243 = vrot.lane.b32.xlu0 %v4055, 108
      %v4244 = vpop.permute.xlu0 %4243
      %4245 = vrot.lane.b32.xlu0 %v4056, 108
      %v4246 = vpop.permute.xlu0 %4245
      %4247 = vrot.lane.b32.xlu0 %v4057, 108
      %v4248 = vpop.permute.xlu0 %4247
      %4249 = vrot.lane.b32.xlu0 %v4058, 108
      %v4250 = vpop.permute.xlu0 %4249
      %4251 = vrot.lane.b32.xlu0 %v4059, 108
      %v4252 = vpop.permute.xlu0 %4251
      %4253 = vrot.lane.b32.xlu0 %v4060, 108
      %v4254 = vpop.permute.xlu0 %4253
      %v4255 = vsel %vm375, %v4232, %v4234
      %v4256 = vsel %vm375, %v4234, %v4236
      %v4257 = vsel %vm375, %v4236, %v374
      %v4258 = vsel %vm375, %v4238, %v4240
      %v4259 = vsel %vm375, %v4240, %v4242
      %v4260 = vsel %vm375, %v4242, %v374
      %v4261 = vsel %vm375, %v4244, %v4246
      %v4262 = vsel %vm375, %v4246, %v4248
      %v4263 = vsel %vm375, %v4248, %v374
      %v4264 = vsel %vm375, %v4250, %v4252
      %v4265 = vsel %vm375, %v4252, %v4254
      %v4266 = vsel %vm375, %v4254, %v374
      %4267 = vrot.lane.b32.xlu0 %v4049, 92
      %v4268 = vpop.permute.xlu0 %4267
      %4269 = vrot.lane.b32.xlu0 %v4050, 92
      %v4270 = vpop.permute.xlu0 %4269
      %4271 = vrot.lane.b32.xlu0 %v4051, 92
      %v4272 = vpop.permute.xlu0 %4271
      %4273 = vrot.lane.b32.xlu0 %v4052, 92
      %v4274 = vpop.permute.xlu0 %4273
      %4275 = vrot.lane.b32.xlu0 %v4053, 92
      %v4276 = vpop.permute.xlu0 %4275
      %4277 = vrot.lane.b32.xlu0 %v4054, 92
      %v4278 = vpop.permute.xlu0 %4277
      %4279 = vrot.lane.b32.xlu0 %v4055, 92
      %v4280 = vpop.permute.xlu0 %4279
      %4281 = vrot.lane.b32.xlu0 %v4056, 92
      %v4282 = vpop.permute.xlu0 %4281
      %4283 = vrot.lane.b32.xlu0 %v4057, 92
      %v4284 = vpop.permute.xlu0 %4283
      %4285 = vrot.lane.b32.xlu0 %v4058, 92
      %v4286 = vpop.permute.xlu0 %4285
      %4287 = vrot.lane.b32.xlu0 %v4059, 92
      %v4288 = vpop.permute.xlu0 %4287
      %4289 = vrot.lane.b32.xlu0 %v4060, 92
      %v4290 = vpop.permute.xlu0 %4289
      %v4291 = vsel %vm387, %v4268, %v4270
      %v4292 = vsel %vm387, %v4270, %v4272
      %v4293 = vsel %vm387, %v4272, %v386
      %v4294 = vsel %vm387, %v4274, %v4276
      %v4295 = vsel %vm387, %v4276, %v4278
      %v4296 = vsel %vm387, %v4278, %v386
      %v4297 = vsel %vm387, %v4280, %v4282
      %v4298 = vsel %vm387, %v4282, %v4284
      %v4299 = vsel %vm387, %v4284, %v386
      %v4300 = vsel %vm387, %v4286, %v4288
      %v4301 = vsel %vm387, %v4288, %v4290
      %v4302 = vsel %vm387, %v4290, %v386
      %4303 = vrot.lane.b32.xlu0 %v4049, 91
      %v4304 = vpop.permute.xlu0 %4303
      %4305 = vrot.lane.b32.xlu0 %v4050, 91
      %v4306 = vpop.permute.xlu0 %4305
      %4307 = vrot.lane.b32.xlu0 %v4051, 91
      %v4308 = vpop.permute.xlu0 %4307
      %4309 = vrot.lane.b32.xlu0 %v4052, 91
      %v4310 = vpop.permute.xlu0 %4309
      %4311 = vrot.lane.b32.xlu0 %v4053, 91
      %v4312 = vpop.permute.xlu0 %4311
      %4313 = vrot.lane.b32.xlu0 %v4054, 91
      %v4314 = vpop.permute.xlu0 %4313
      %4315 = vrot.lane.b32.xlu0 %v4055, 91
      %v4316 = vpop.permute.xlu0 %4315
      %4317 = vrot.lane.b32.xlu0 %v4056, 91
      %v4318 = vpop.permute.xlu0 %4317
      %4319 = vrot.lane.b32.xlu0 %v4057, 91
      %v4320 = vpop.permute.xlu0 %4319
      %4321 = vrot.lane.b32.xlu0 %v4058, 91
      %v4322 = vpop.permute.xlu0 %4321
      %4323 = vrot.lane.b32.xlu0 %v4059, 91
      %v4324 = vpop.permute.xlu0 %4323
      %4325 = vrot.lane.b32.xlu0 %v4060, 91
      %v4326 = vpop.permute.xlu0 %4325
      %v4327 = vsel %vm399, %v4304, %v4306
      %v4328 = vsel %vm399, %v4306, %v4308
      %v4329 = vsel %vm399, %v4308, %v398
      %v4330 = vsel %vm399, %v4310, %v4312
      %v4331 = vsel %vm399, %v4312, %v4314
      %v4332 = vsel %vm399, %v4314, %v398
      %v4333 = vsel %vm399, %v4316, %v4318
      %v4334 = vsel %vm399, %v4318, %v4320
      %v4335 = vsel %vm399, %v4320, %v398
      %v4336 = vsel %vm399, %v4322, %v4324
      %v4337 = vsel %vm399, %v4324, %v4326
      %v4338 = vsel %vm399, %v4326, %v398
      %4339 = vrot.lane.b32.xlu0 %v4049, 90
      %v4340 = vpop.permute.xlu0 %4339
      %4341 = vrot.lane.b32.xlu0 %v4050, 90
      %v4342 = vpop.permute.xlu0 %4341
      %4343 = vrot.lane.b32.xlu0 %v4051, 90
      %v4344 = vpop.permute.xlu0 %4343
      %4345 = vrot.lane.b32.xlu0 %v4052, 90
      %v4346 = vpop.permute.xlu0 %4345
      %4347 = vrot.lane.b32.xlu0 %v4053, 90
      %v4348 = vpop.permute.xlu0 %4347
      %4349 = vrot.lane.b32.xlu0 %v4054, 90
      %v4350 = vpop.permute.xlu0 %4349
      %4351 = vrot.lane.b32.xlu0 %v4055, 90
      %v4352 = vpop.permute.xlu0 %4351
      %4353 = vrot.lane.b32.xlu0 %v4056, 90
      %v4354 = vpop.permute.xlu0 %4353
      %4355 = vrot.lane.b32.xlu0 %v4057, 90
      %v4356 = vpop.permute.xlu0 %4355
      %4357 = vrot.lane.b32.xlu0 %v4058, 90
      %v4358 = vpop.permute.xlu0 %4357
      %4359 = vrot.lane.b32.xlu0 %v4059, 90
      %v4360 = vpop.permute.xlu0 %4359
      %4361 = vrot.lane.b32.xlu0 %v4060, 90
      %v4362 = vpop.permute.xlu0 %4361
      %v4363 = vsel %vm411, %v4340, %v4342
      %v4364 = vsel %vm411, %v4342, %v4344
      %v4365 = vsel %vm411, %v4344, %v410
      %v4366 = vsel %vm411, %v4346, %v4348
      %v4367 = vsel %vm411, %v4348, %v4350
      %v4368 = vsel %vm411, %v4350, %v410
      %v4369 = vsel %vm411, %v4352, %v4354
      %v4370 = vsel %vm411, %v4354, %v4356
      %v4371 = vsel %vm411, %v4356, %v410
      %v4372 = vsel %vm411, %v4358, %v4360
      %v4373 = vsel %vm411, %v4360, %v4362
      %v4374 = vsel %vm411, %v4362, %v410
      %4376 = vset.pattern.permute.xlu0 0
      %4377 = vperm.xlu0 %4376, %v4075
      %v4378 = vpop.permute.xlu0 %4377
      %4381 = vset.pattern.permute.xlu0 0
      %4382 = vperm.xlu0 %4381, %v4076
      %v4383 = vpop.permute.xlu0 %4382
      %4386 = vset.pattern.permute.xlu0 0
      %4387 = vperm.xlu0 %4386, %v4077
      %v4388 = vpop.permute.xlu0 %4387
      %4391 = vset.pattern.permute.xlu0 0
      %4392 = vperm.xlu0 %4391, %v4078
      %v4393 = vpop.permute.xlu0 %4392
      %4395 = vrot.lane.b32.xlu0 %v4049, 19
      %v4396 = vpop.permute.xlu0 %4395
      %4397 = vrot.lane.b32.xlu0 %v4050, 19
      %v4398 = vpop.permute.xlu0 %4397
      %4399 = vrot.lane.b32.xlu0 %v4051, 19
      %v4400 = vpop.permute.xlu0 %4399
      %4401 = vrot.lane.b32.xlu0 %v4052, 19
      %v4402 = vpop.permute.xlu0 %4401
      %4403 = vrot.lane.b32.xlu0 %v4053, 19
      %v4404 = vpop.permute.xlu0 %4403
      %4405 = vrot.lane.b32.xlu0 %v4054, 19
      %v4406 = vpop.permute.xlu0 %4405
      %4407 = vrot.lane.b32.xlu0 %v4055, 19
      %v4408 = vpop.permute.xlu0 %4407
      %4409 = vrot.lane.b32.xlu0 %v4056, 19
      %v4410 = vpop.permute.xlu0 %4409
      %4411 = vrot.lane.b32.xlu0 %v4057, 19
      %v4412 = vpop.permute.xlu0 %4411
      %4413 = vrot.lane.b32.xlu0 %v4058, 19
      %v4414 = vpop.permute.xlu0 %4413
      %4415 = vrot.lane.b32.xlu0 %v4059, 19
      %v4416 = vpop.permute.xlu0 %4415
      %4417 = vrot.lane.b32.xlu0 %v4060, 19
      %v4418 = vpop.permute.xlu0 %4417
      %4419 = vrot.lane.b32.xlu0 %v4115, 19
      %v4420 = vpop.permute.xlu0 %4419
      %4421 = vrot.lane.b32.xlu0 %v4116, 19
      %v4422 = vpop.permute.xlu0 %4421
      %4423 = vrot.lane.b32.xlu0 %v4117, 19
      %v4424 = vpop.permute.xlu0 %4423
      %4425 = vrot.lane.b32.xlu0 %v4096, 19
      %v4426 = vpop.permute.xlu0 %4425
      %4427 = vrot.lane.b32.xlu0 %v4118, 19
      %v4428 = vpop.permute.xlu0 %4427
      %4429 = vrot.lane.b32.xlu0 %v4119, 19
      %v4430 = vpop.permute.xlu0 %4429
      %4431 = vrot.lane.b32.xlu0 %v4120, 19
      %v4432 = vpop.permute.xlu0 %4431
      %4433 = vrot.lane.b32.xlu0 %v4102, 19
      %v4434 = vpop.permute.xlu0 %4433
      %4435 = vrot.lane.b32.xlu0 %v4121, 19
      %v4436 = vpop.permute.xlu0 %4435
      %4437 = vrot.lane.b32.xlu0 %v4122, 19
      %v4438 = vpop.permute.xlu0 %4437
      %4439 = vrot.lane.b32.xlu0 %v4123, 19
      %v4440 = vpop.permute.xlu0 %4439
      %4441 = vrot.lane.b32.xlu0 %v4108, 19
      %v4442 = vpop.permute.xlu0 %4441
      %4443 = vrot.lane.b32.xlu0 %v4124, 19
      %v4444 = vpop.permute.xlu0 %4443
      %4445 = vrot.lane.b32.xlu0 %v4125, 19
      %v4446 = vpop.permute.xlu0 %4445
      %4447 = vrot.lane.b32.xlu0 %v4126, 19
      %v4448 = vpop.permute.xlu0 %4447
      %4449 = vrot.lane.b32.xlu0 %v4114, 19
      %v4450 = vpop.permute.xlu0 %4449
      %4451 = vrot.lane.b32.xlu0 %v4151, 19
      %v4452 = vpop.permute.xlu0 %4451
      %4453 = vrot.lane.b32.xlu0 %v4152, 19
      %v4454 = vpop.permute.xlu0 %4453
      %4455 = vrot.lane.b32.xlu0 %v4153, 19
      %v4456 = vpop.permute.xlu0 %4455
      %4457 = vrot.lane.b32.xlu0 %v4132, 19
      %v4458 = vpop.permute.xlu0 %4457
      %4459 = vrot.lane.b32.xlu0 %v4154, 19
      %v4460 = vpop.permute.xlu0 %4459
      %4461 = vrot.lane.b32.xlu0 %v4155, 19
      %v4462 = vpop.permute.xlu0 %4461
      %4463 = vrot.lane.b32.xlu0 %v4156, 19
      %v4464 = vpop.permute.xlu0 %4463
      %4465 = vrot.lane.b32.xlu0 %v4138, 19
      %v4466 = vpop.permute.xlu0 %4465
      %4467 = vrot.lane.b32.xlu0 %v4157, 19
      %v4468 = vpop.permute.xlu0 %4467
      %4469 = vrot.lane.b32.xlu0 %v4158, 19
      %v4470 = vpop.permute.xlu0 %4469
      %4471 = vrot.lane.b32.xlu0 %v4159, 19
      %v4472 = vpop.permute.xlu0 %4471
      %4473 = vrot.lane.b32.xlu0 %v4144, 19
      %v4474 = vpop.permute.xlu0 %4473
      %4475 = vrot.lane.b32.xlu0 %v4160, 19
      %v4476 = vpop.permute.xlu0 %4475
      %4477 = vrot.lane.b32.xlu0 %v4161, 19
      %v4478 = vpop.permute.xlu0 %4477
      %4479 = vrot.lane.b32.xlu0 %v4162, 19
      %v4480 = vpop.permute.xlu0 %4479
      %4481 = vrot.lane.b32.xlu0 %v4150, 19
      %v4482 = vpop.permute.xlu0 %4481
      %4483 = vrot.lane.b32.xlu0 %v4187, 19
      %v4484 = vpop.permute.xlu0 %4483
      %4485 = vrot.lane.b32.xlu0 %v4188, 19
      %v4486 = vpop.permute.xlu0 %4485
      %4487 = vrot.lane.b32.xlu0 %v4189, 19
      %v4488 = vpop.permute.xlu0 %4487
      %4489 = vrot.lane.b32.xlu0 %v4168, 19
      %v4490 = vpop.permute.xlu0 %4489
      %4491 = vrot.lane.b32.xlu0 %v4190, 19
      %v4492 = vpop.permute.xlu0 %4491
      %4493 = vrot.lane.b32.xlu0 %v4191, 19
      %v4494 = vpop.permute.xlu0 %4493
      %4495 = vrot.lane.b32.xlu0 %v4192, 19
      %v4496 = vpop.permute.xlu0 %4495
      %4497 = vrot.lane.b32.xlu0 %v4174, 19
      %v4498 = vpop.permute.xlu0 %4497
      %4499 = vrot.lane.b32.xlu0 %v4193, 19
      %v4500 = vpop.permute.xlu0 %4499
      %4501 = vrot.lane.b32.xlu0 %v4194, 19
      %v4502 = vpop.permute.xlu0 %4501
      %4503 = vrot.lane.b32.xlu0 %v4195, 19
      %v4504 = vpop.permute.xlu0 %4503
      %4505 = vrot.lane.b32.xlu0 %v4180, 19
      %v4506 = vpop.permute.xlu0 %4505
      %4507 = vrot.lane.b32.xlu0 %v4196, 19
      %v4508 = vpop.permute.xlu0 %4507
      %4509 = vrot.lane.b32.xlu0 %v4197, 19
      %v4510 = vpop.permute.xlu0 %4509
      %4511 = vrot.lane.b32.xlu0 %v4198, 19
      %v4512 = vpop.permute.xlu0 %4511
      %4513 = vrot.lane.b32.xlu0 %v4186, 19
      %v4514 = vpop.permute.xlu0 %4513
      %4515 = vrot.lane.b32.xlu0 %v4200, 19
      %v4516 = vpop.permute.xlu0 %4515
      %4517 = vrot.lane.b32.xlu0 %v4223, 19
      %v4518 = vpop.permute.xlu0 %4517
      %4519 = vrot.lane.b32.xlu0 %v4224, 19
      %v4520 = vpop.permute.xlu0 %4519
      %4521 = vrot.lane.b32.xlu0 %v4204, 19
      %v4522 = vpop.permute.xlu0 %4521
      %4523 = vrot.lane.b32.xlu0 %v4206, 19
      %v4524 = vpop.permute.xlu0 %4523
      %4525 = vrot.lane.b32.xlu0 %v4225, 19
      %v4526 = vpop.permute.xlu0 %4525
      %4527 = vrot.lane.b32.xlu0 %v4226, 19
      %v4528 = vpop.permute.xlu0 %4527
      %4529 = vrot.lane.b32.xlu0 %v4210, 19
      %v4530 = vpop.permute.xlu0 %4529
      %4531 = vrot.lane.b32.xlu0 %v4212, 19
      %v4532 = vpop.permute.xlu0 %4531
      %4533 = vrot.lane.b32.xlu0 %v4227, 19
      %v4534 = vpop.permute.xlu0 %4533
      %4535 = vrot.lane.b32.xlu0 %v4228, 19
      %v4536 = vpop.permute.xlu0 %4535
      %4537 = vrot.lane.b32.xlu0 %v4216, 19
      %v4538 = vpop.permute.xlu0 %4537
      %4539 = vrot.lane.b32.xlu0 %v4218, 19
      %v4540 = vpop.permute.xlu0 %4539
      %4541 = vrot.lane.b32.xlu0 %v4229, 19
      %v4542 = vpop.permute.xlu0 %4541
      %4543 = vrot.lane.b32.xlu0 %v4230, 19
      %v4544 = vpop.permute.xlu0 %4543
      %4545 = vrot.lane.b32.xlu0 %v4222, 19
      %v4546 = vpop.permute.xlu0 %4545
      %4547 = vrot.lane.b32.xlu0 %v4232, 19
      %v4548 = vpop.permute.xlu0 %4547
      %4549 = vrot.lane.b32.xlu0 %v4255, 19
      %v4550 = vpop.permute.xlu0 %4549
      %4551 = vrot.lane.b32.xlu0 %v4256, 19
      %v4552 = vpop.permute.xlu0 %4551
      %4553 = vrot.lane.b32.xlu0 %v4257, 19
      %v4554 = vpop.permute.xlu0 %4553
      %4555 = vrot.lane.b32.xlu0 %v4238, 19
      %v4556 = vpop.permute.xlu0 %4555
      %4557 = vrot.lane.b32.xlu0 %v4258, 19
      %v4558 = vpop.permute.xlu0 %4557
      %4559 = vrot.lane.b32.xlu0 %v4259, 19
      %v4560 = vpop.permute.xlu0 %4559
      %4561 = vrot.lane.b32.xlu0 %v4260, 19
      %v4562 = vpop.permute.xlu0 %4561
      %4563 = vrot.lane.b32.xlu0 %v4244, 19
      %v4564 = vpop.permute.xlu0 %4563
      %4565 = vrot.lane.b32.xlu0 %v4261, 19
      %v4566 = vpop.permute.xlu0 %4565
      %4567 = vrot.lane.b32.xlu0 %v4262, 19
      %v4568 = vpop.permute.xlu0 %4567
      %4569 = vrot.lane.b32.xlu0 %v4263, 19
      %v4570 = vpop.permute.xlu0 %4569
      %4571 = vrot.lane.b32.xlu0 %v4250, 19
      %v4572 = vpop.permute.xlu0 %4571
      %4573 = vrot.lane.b32.xlu0 %v4264, 19
      %v4574 = vpop.permute.xlu0 %4573
      %4575 = vrot.lane.b32.xlu0 %v4265, 19
      %v4576 = vpop.permute.xlu0 %4575
      %4577 = vrot.lane.b32.xlu0 %v4266, 19
      %v4578 = vpop.permute.xlu0 %4577
      %4579 = vrot.lane.b32.xlu0 %v4268, 19
      %v4580 = vpop.permute.xlu0 %4579
      %4581 = vrot.lane.b32.xlu0 %v4291, 19
      %v4582 = vpop.permute.xlu0 %4581
      %4583 = vrot.lane.b32.xlu0 %v4292, 19
      %v4584 = vpop.permute.xlu0 %4583
      %4585 = vrot.lane.b32.xlu0 %v4293, 19
      %v4586 = vpop.permute.xlu0 %4585
      %4587 = vrot.lane.b32.xlu0 %v4274, 19
      %v4588 = vpop.permute.xlu0 %4587
      %4589 = vrot.lane.b32.xlu0 %v4294, 19
      %v4590 = vpop.permute.xlu0 %4589
      %4591 = vrot.lane.b32.xlu0 %v4295, 19
      %v4592 = vpop.permute.xlu0 %4591
      %4593 = vrot.lane.b32.xlu0 %v4296, 19
      %v4594 = vpop.permute.xlu0 %4593
      %4595 = vrot.lane.b32.xlu0 %v4280, 19
      %v4596 = vpop.permute.xlu0 %4595
      %4597 = vrot.lane.b32.xlu0 %v4297, 19
      %v4598 = vpop.permute.xlu0 %4597
      %4599 = vrot.lane.b32.xlu0 %v4298, 19
      %v4600 = vpop.permute.xlu0 %4599
      %4601 = vrot.lane.b32.xlu0 %v4299, 19
      %v4602 = vpop.permute.xlu0 %4601
      %4603 = vrot.lane.b32.xlu0 %v4286, 19
      %v4604 = vpop.permute.xlu0 %4603
      %4605 = vrot.lane.b32.xlu0 %v4300, 19
      %v4606 = vpop.permute.xlu0 %4605
      %4607 = vrot.lane.b32.xlu0 %v4301, 19
      %v4608 = vpop.permute.xlu0 %4607
      %4609 = vrot.lane.b32.xlu0 %v4302, 19
      %v4610 = vpop.permute.xlu0 %4609
      %4611 = vrot.lane.b32.xlu0 %v4304, 19
      %v4612 = vpop.permute.xlu0 %4611
      %4613 = vrot.lane.b32.xlu0 %v4327, 19
      %v4614 = vpop.permute.xlu0 %4613
      %4615 = vrot.lane.b32.xlu0 %v4328, 19
      %v4616 = vpop.permute.xlu0 %4615
      %4617 = vrot.lane.b32.xlu0 %v4329, 19
      %v4618 = vpop.permute.xlu0 %4617
      %4619 = vrot.lane.b32.xlu0 %v4310, 19
      %v4620 = vpop.permute.xlu0 %4619
      %4621 = vrot.lane.b32.xlu0 %v4330, 19
      %v4622 = vpop.permute.xlu0 %4621
      %4623 = vrot.lane.b32.xlu0 %v4331, 19
      %v4624 = vpop.permute.xlu0 %4623
      %4625 = vrot.lane.b32.xlu0 %v4332, 19
      %v4626 = vpop.permute.xlu0 %4625
      %4627 = vrot.lane.b32.xlu0 %v4316, 19
      %v4628 = vpop.permute.xlu0 %4627
      %4629 = vrot.lane.b32.xlu0 %v4333, 19
      %v4630 = vpop.permute.xlu0 %4629
      %4631 = vrot.lane.b32.xlu0 %v4334, 19
      %v4632 = vpop.permute.xlu0 %4631
      %4633 = vrot.lane.b32.xlu0 %v4335, 19
      %v4634 = vpop.permute.xlu0 %4633
      %4635 = vrot.lane.b32.xlu0 %v4322, 19
      %v4636 = vpop.permute.xlu0 %4635
      %4637 = vrot.lane.b32.xlu0 %v4336, 19
      %v4638 = vpop.permute.xlu0 %4637
      %4639 = vrot.lane.b32.xlu0 %v4337, 19
      %v4640 = vpop.permute.xlu0 %4639
      %4641 = vrot.lane.b32.xlu0 %v4338, 19
      %v4642 = vpop.permute.xlu0 %4641
      %4643 = vrot.lane.b32.xlu0 %v4340, 19
      %v4644 = vpop.permute.xlu0 %4643
      %4645 = vrot.lane.b32.xlu0 %v4363, 19
      %v4646 = vpop.permute.xlu0 %4645
      %4647 = vrot.lane.b32.xlu0 %v4364, 19
      %v4648 = vpop.permute.xlu0 %4647
      %4649 = vrot.lane.b32.xlu0 %v4365, 19
      %v4650 = vpop.permute.xlu0 %4649
      %4651 = vrot.lane.b32.xlu0 %v4346, 19
      %v4652 = vpop.permute.xlu0 %4651
      %4653 = vrot.lane.b32.xlu0 %v4366, 19
      %v4654 = vpop.permute.xlu0 %4653
      %4655 = vrot.lane.b32.xlu0 %v4367, 19
      %v4656 = vpop.permute.xlu0 %4655
      %4657 = vrot.lane.b32.xlu0 %v4368, 19
      %v4658 = vpop.permute.xlu0 %4657
      %4659 = vrot.lane.b32.xlu0 %v4352, 19
      %v4660 = vpop.permute.xlu0 %4659
      %4661 = vrot.lane.b32.xlu0 %v4369, 19
      %v4662 = vpop.permute.xlu0 %4661
      %4663 = vrot.lane.b32.xlu0 %v4370, 19
      %v4664 = vpop.permute.xlu0 %4663
      %4665 = vrot.lane.b32.xlu0 %v4371, 19
      %v4666 = vpop.permute.xlu0 %4665
      %4667 = vrot.lane.b32.xlu0 %v4358, 19
      %v4668 = vpop.permute.xlu0 %4667
      %4669 = vrot.lane.b32.xlu0 %v4372, 19
      %v4670 = vpop.permute.xlu0 %4669
      %4671 = vrot.lane.b32.xlu0 %v4373, 19
      %v4672 = vpop.permute.xlu0 %4671
      %4673 = vrot.lane.b32.xlu0 %v4374, 19
      %v4674 = vpop.permute.xlu0 %4673
      %v4675 = vsel %vm507, %v436, %v4396
      %v4676 = vsel %vm507, %v4396, %v4398
      %v4677 = vsel %vm507, %v4398, %v4400
      %v4678 = vsel %vm507, %v436, %v4402
      %v4679 = vsel %vm507, %v4402, %v4404
      %v4680 = vsel %vm507, %v4404, %v4406
      %v4681 = vsel %vm507, %v436, %v4408
      %v4682 = vsel %vm507, %v4408, %v4410
      %v4683 = vsel %vm507, %v4410, %v4412
      %v4684 = vsel %vm507, %v436, %v4414
      %v4685 = vsel %vm507, %v4414, %v4416
      %v4686 = vsel %vm507, %v4416, %v4418
      %v4687 = vsel %vm507, %v4420, %v4422
      %v4688 = vsel %vm507, %v4422, %v4424
      %v4689 = vsel %vm507, %v4424, %v4426
      %v4690 = vsel %vm507, %v4428, %v4430
      %v4691 = vsel %vm507, %v4430, %v4432
      %v4692 = vsel %vm507, %v4432, %v4434
      %v4693 = vsel %vm507, %v4436, %v4438
      %v4694 = vsel %vm507, %v4438, %v4440
      %v4695 = vsel %vm507, %v4440, %v4442
      %v4696 = vsel %vm507, %v4444, %v4446
      %v4697 = vsel %vm507, %v4446, %v4448
      %v4698 = vsel %vm507, %v4448, %v4450
      %v4699 = vsel %vm507, %v4452, %v4454
      %v4700 = vsel %vm507, %v4454, %v4456
      %v4701 = vsel %vm507, %v4456, %v4458
      %v4702 = vsel %vm507, %v4460, %v4462
      %v4703 = vsel %vm507, %v4462, %v4464
      %v4704 = vsel %vm507, %v4464, %v4466
      %v4705 = vsel %vm507, %v4468, %v4470
      %v4706 = vsel %vm507, %v4470, %v4472
      %v4707 = vsel %vm507, %v4472, %v4474
      %v4708 = vsel %vm507, %v4476, %v4478
      %v4709 = vsel %vm507, %v4478, %v4480
      %v4710 = vsel %vm507, %v4480, %v4482
      %v4711 = vsel %vm507, %v4484, %v4486
      %v4712 = vsel %vm507, %v4486, %v4488
      %v4713 = vsel %vm507, %v4488, %v4490
      %v4714 = vsel %vm507, %v4492, %v4494
      %v4715 = vsel %vm507, %v4494, %v4496
      %v4716 = vsel %vm507, %v4496, %v4498
      %v4717 = vsel %vm507, %v4500, %v4502
      %v4718 = vsel %vm507, %v4502, %v4504
      %v4719 = vsel %vm507, %v4504, %v4506
      %v4720 = vsel %vm507, %v4508, %v4510
      %v4721 = vsel %vm507, %v4510, %v4512
      %v4722 = vsel %vm507, %v4512, %v4514
      %v4723 = vsel %vm507, %v4516, %v4518
      %v4724 = vsel %vm507, %v4518, %v4520
      %v4725 = vsel %vm507, %v4520, %v4522
      %v4726 = vsel %vm507, %v4524, %v4526
      %v4727 = vsel %vm507, %v4526, %v4528
      %v4728 = vsel %vm507, %v4528, %v4530
      %v4729 = vsel %vm507, %v4532, %v4534
      %v4730 = vsel %vm507, %v4534, %v4536
      %v4731 = vsel %vm507, %v4536, %v4538
      %v4732 = vsel %vm507, %v4540, %v4542
      %v4733 = vsel %vm507, %v4542, %v4544
      %v4734 = vsel %vm507, %v4544, %v4546
      %v4735 = vsel %vm507, %v4548, %v4550
      %v4736 = vsel %vm507, %v4550, %v4552
      %v4737 = vsel %vm507, %v4552, %v4554
      %v4738 = vsel %vm507, %v4556, %v4558
      %v4739 = vsel %vm507, %v4558, %v4560
      %v4740 = vsel %vm507, %v4560, %v4562
      %v4741 = vsel %vm507, %v4564, %v4566
      %v4742 = vsel %vm507, %v4566, %v4568
      %v4743 = vsel %vm507, %v4568, %v4570
      %v4744 = vsel %vm507, %v4572, %v4574
      %v4745 = vsel %vm507, %v4574, %v4576
      %v4746 = vsel %vm507, %v4576, %v4578
      %v4747 = vsel %vm507, %v4580, %v4582
      %v4748 = vsel %vm507, %v4582, %v4584
      %v4749 = vsel %vm507, %v4584, %v4586
      %v4750 = vsel %vm507, %v4588, %v4590
      %v4751 = vsel %vm507, %v4590, %v4592
      %v4752 = vsel %vm507, %v4592, %v4594
      %v4753 = vsel %vm507, %v4596, %v4598
      %v4754 = vsel %vm507, %v4598, %v4600
      %v4755 = vsel %vm507, %v4600, %v4602
      %v4756 = vsel %vm507, %v4604, %v4606
      %v4757 = vsel %vm507, %v4606, %v4608
      %v4758 = vsel %vm507, %v4608, %v4610
      %v4759 = vsel %vm507, %v4612, %v4614
      %v4760 = vsel %vm507, %v4614, %v4616
      %v4761 = vsel %vm507, %v4616, %v4618
      %v4762 = vsel %vm507, %v4620, %v4622
      %v4763 = vsel %vm507, %v4622, %v4624
      %v4764 = vsel %vm507, %v4624, %v4626
      %v4765 = vsel %vm507, %v4628, %v4630
      %v4766 = vsel %vm507, %v4630, %v4632
      %v4767 = vsel %vm507, %v4632, %v4634
      %v4768 = vsel %vm507, %v4636, %v4638
      %v4769 = vsel %vm507, %v4638, %v4640
      %v4770 = vsel %vm507, %v4640, %v4642
      %v4771 = vsel %vm507, %v4644, %v4646
      %v4772 = vsel %vm507, %v4646, %v4648
      %v4773 = vsel %vm507, %v4648, %v4650
      %v4774 = vsel %vm507, %v4652, %v4654
      %v4775 = vsel %vm507, %v4654, %v4656
      %v4776 = vsel %vm507, %v4656, %v4658
      %v4777 = vsel %vm507, %v4660, %v4662
      %v4778 = vsel %vm507, %v4662, %v4664
      %v4779 = vsel %vm507, %v4664, %v4666
      %v4780 = vsel %vm507, %v4668, %v4670
      %v4781 = vsel %vm507, %v4670, %v4672
      %v4782 = vsel %vm507, %v4672, %v4674
      %v4892 = vsel %vm1509, %v4064, 0
      %v4895 = vsel %vm1509, %v4067, 0
      %v4898 = vsel %vm1509, %v4070, 0
      %v4901 = vsel %vm1509, %v4073, 0
      %4903 = vmatpush.msra.mxu0 %v4720
      %4904 = vmatpush.msra.mxu0 %v4717
      %4905 = vmatpush.msra.mxu0 %v4714
      %4906 = vmatpush.msra.mxu0 %v4711
      %4907 = vmatpush.msra.mxu0 %v4708
      %4908 = vmatpush.msra.mxu0 %v4705
      %4909 = vmatpush.msra.mxu0 %v4702
      %4910 = vmatpush.msra.mxu0 %v4699
      %4911 = vmatpush.msra.mxu0 %v4696
      %4912 = vmatpush.msra.mxu0 %v4693
      %4913 = vmatpush.msra.mxu0 %v4690
      %4914 = vmatpush.msra.mxu0 %v4687
      %4915 = vmatpush.msra.mxu0 %v4684
      %4916 = vmatpush.msra.mxu0 %v4681
      %4917 = vmatpush.msra.mxu0 %v4678
      %4918 = vmatpush.msra.mxu0 %v4675
      %4919 = vmatmul.f32.gmra.mxu0 %v4062
      %v4920 = vpop.f32.mrf.mxu0
      %v4921 = vadd.f32 %v4378, %v4920
      %4922 = vmatmul.f32.gmra.mxu0 %v4065
      %v4923 = vpop.f32.mrf.mxu0
      %v4924 = vadd.f32 %v4383, %v4923
      %4925 = vmatmul.f32.gmra.mxu0 %v4068
      %v4926 = vpop.f32.mrf.mxu0
      %v4927 = vadd.f32 %v4388, %v4926
      %4928 = vmatmul.f32.gmra.mxu0 %v4071
      %v4929 = vpop.f32.mrf.mxu0
      %v4930 = vadd.f32 %v4393, %v4929
      %4931 = vdwg.mxu0
      %4932 = vmatpush.msra.mxu0 %v4768
      %4933 = vmatpush.msra.mxu0 %v4765
      %4934 = vmatpush.msra.mxu0 %v4762
      %4935 = vmatpush.msra.mxu0 %v4759
      %4936 = vmatpush.msra.mxu0 %v4756
      %4937 = vmatpush.msra.mxu0 %v4753
      %4938 = vmatpush.msra.mxu0 %v4750
      %4939 = vmatpush.msra.mxu0 %v4747
      %4940 = vmatpush.msra.mxu0 %v4744
      %4941 = vmatpush.msra.mxu0 %v4741
      %4942 = vmatpush.msra.mxu0 %v4738
      %4943 = vmatpush.msra.mxu0 %v4735
      %4944 = vmatpush.msra.mxu0 %v4732
      %4945 = vmatpush.msra.mxu0 %v4729
      %4946 = vmatpush.msra.mxu0 %v4726
      %4947 = vmatpush.msra.mxu0 %v4723
      %4948 = vmatmul.f32.gmra.mxu0 %v4063
      %v4949 = vpop.f32.mrf.mxu0
      %v4950 = vadd.f32 %v4921, %v4949
      %4951 = vmatmul.f32.gmra.mxu0 %v4066
      %v4952 = vpop.f32.mrf.mxu0
      %v4953 = vadd.f32 %v4924, %v4952
      %4954 = vmatmul.f32.gmra.mxu0 %v4069
      %v4955 = vpop.f32.mrf.mxu0
      %v4956 = vadd.f32 %v4927, %v4955
      %4957 = vmatmul.f32.gmra.mxu0 %v4072
      %v4958 = vpop.f32.mrf.mxu0
      %v4959 = vadd.f32 %v4930, %v4958
      %4960 = vdwg.mxu0
      %4961 = vmatpush.msra.mxu0 0.0
      %4962 = vmatpush.msra.mxu0 0.0
      %4963 = vmatpush.msra.mxu0 0.0
      %4964 = vmatpush.msra.mxu0 0.0
      %4965 = vmatpush.msra.mxu0 0.0
      %4966 = vmatpush.msra.mxu0 0.0
      %4967 = vmatpush.msra.mxu0 0.0
      %4968 = vmatpush.msra.mxu0 0.0
      %4969 = vmatpush.msra.mxu0 0.0
      %4970 = vmatpush.msra.mxu0 0.0
      %4971 = vmatpush.msra.mxu0 0.0
      %4972 = vmatpush.msra.mxu0 0.0
      %4973 = vmatpush.msra.mxu0 %v4780
      %4974 = vmatpush.msra.mxu0 %v4777
      %4975 = vmatpush.msra.mxu0 %v4774
      %4976 = vmatpush.msra.mxu0 %v4771
      %4977 = vmatmul.f32.gmra.mxu0 %v4892
      %v4978 = vpop.f32.mrf.mxu0
      %v4979 = vadd.f32 %v4950, %v4978
      %4980 = vmatmul.f32.gmra.mxu0 %v4895
      %v4981 = vpop.f32.mrf.mxu0
      %v4982 = vadd.f32 %v4953, %v4981
      %4983 = vmatmul.f32.gmra.mxu0 %v4898
      %v4984 = vpop.f32.mrf.mxu0
      %v4985 = vadd.f32 %v4956, %v4984
      %4986 = vmatmul.f32.gmra.mxu0 %v4901
      %v4987 = vpop.f32.mrf.mxu0
      %v4988 = vadd.f32 %v4959, %v4987
      %4989 = vdwg.mxu0
      %4990 = vmatpush.msra.mxu0 %v4721
      %4991 = vmatpush.msra.mxu0 %v4718
      %4992 = vmatpush.msra.mxu0 %v4715
      %4993 = vmatpush.msra.mxu0 %v4712
      %4994 = vmatpush.msra.mxu0 %v4709
      %4995 = vmatpush.msra.mxu0 %v4706
      %4996 = vmatpush.msra.mxu0 %v4703
      %4997 = vmatpush.msra.mxu0 %v4700
      %4998 = vmatpush.msra.mxu0 %v4697
      %4999 = vmatpush.msra.mxu0 %v4694
      %5000 = vmatpush.msra.mxu0 %v4691
      %5001 = vmatpush.msra.mxu0 %v4688
      %5002 = vmatpush.msra.mxu0 %v4685
      %5003 = vmatpush.msra.mxu0 %v4682
      %5004 = vmatpush.msra.mxu0 %v4679
      %5005 = vmatpush.msra.mxu0 %v4676
      %5006 = vmatmul.f32.gmra.mxu0 %v4062
      %v5007 = vpop.f32.mrf.mxu0
      %v5008 = vadd.f32 %v4378, %v5007
      %5009 = vmatmul.f32.gmra.mxu0 %v4065
      %v5010 = vpop.f32.mrf.mxu0
      %v5011 = vadd.f32 %v4383, %v5010
      %5012 = vmatmul.f32.gmra.mxu0 %v4068
      %v5013 = vpop.f32.mrf.mxu0
      %v5014 = vadd.f32 %v4388, %v5013
      %5015 = vmatmul.f32.gmra.mxu0 %v4071
      %v5016 = vpop.f32.mrf.mxu0
      %v5017 = vadd.f32 %v4393, %v5016
      %5018 = vdwg.mxu0
      %5019 = vmatpush.msra.mxu0 %v4769
      %5020 = vmatpush.msra.mxu0 %v4766
      %5021 = vmatpush.msra.mxu0 %v4763
      %5022 = vmatpush.msra.mxu0 %v4760
      %5023 = vmatpush.msra.mxu0 %v4757
      %5024 = vmatpush.msra.mxu0 %v4754
      %5025 = vmatpush.msra.mxu0 %v4751
      %5026 = vmatpush.msra.mxu0 %v4748
      %5027 = vmatpush.msra.mxu0 %v4745
      %5028 = vmatpush.msra.mxu0 %v4742
      %5029 = vmatpush.msra.mxu0 %v4739
      %5030 = vmatpush.msra.mxu0 %v4736
      %5031 = vmatpush.msra.mxu0 %v4733
      %5032 = vmatpush.msra.mxu0 %v4730
      %5033 = vmatpush.msra.mxu0 %v4727
      %5034 = vmatpush.msra.mxu0 %v4724
      %5035 = vmatmul.f32.gmra.mxu0 %v4063
      %v5036 = vpop.f32.mrf.mxu0
      %v5037 = vadd.f32 %v5008, %v5036
      %5038 = vmatmul.f32.gmra.mxu0 %v4066
      %v5039 = vpop.f32.mrf.mxu0
      %v5040 = vadd.f32 %v5011, %v5039
      %5041 = vmatmul.f32.gmra.mxu0 %v4069
      %v5042 = vpop.f32.mrf.mxu0
      %v5043 = vadd.f32 %v5014, %v5042
      %5044 = vmatmul.f32.gmra.mxu0 %v4072
      %v5045 = vpop.f32.mrf.mxu0
      %v5046 = vadd.f32 %v5017, %v5045
      %5047 = vdwg.mxu0
      %5048 = vmatpush.msra.mxu0 0.0
      %5049 = vmatpush.msra.mxu0 0.0
      %5050 = vmatpush.msra.mxu0 0.0
      %5051 = vmatpush.msra.mxu0 0.0
      %5052 = vmatpush.msra.mxu0 0.0
      %5053 = vmatpush.msra.mxu0 0.0
      %5054 = vmatpush.msra.mxu0 0.0
      %5055 = vmatpush.msra.mxu0 0.0
      %5056 = vmatpush.msra.mxu0 0.0
      %5057 = vmatpush.msra.mxu0 0.0
      %5058 = vmatpush.msra.mxu0 0.0
      %5059 = vmatpush.msra.mxu0 0.0
      %5060 = vmatpush.msra.mxu0 %v4781
      %5061 = vmatpush.msra.mxu0 %v4778
      %5062 = vmatpush.msra.mxu0 %v4775
      %5063 = vmatpush.msra.mxu0 %v4772
      %5064 = vmatmul.f32.gmra.mxu0 %v4892
      %v5065 = vpop.f32.mrf.mxu0
      %v5066 = vadd.f32 %v5037, %v5065
      %5067 = vmatmul.f32.gmra.mxu0 %v4895
      %v5068 = vpop.f32.mrf.mxu0
      %v5069 = vadd.f32 %v5040, %v5068
      %5070 = vmatmul.f32.gmra.mxu0 %v4898
      %v5071 = vpop.f32.mrf.mxu0
      %v5072 = vadd.f32 %v5043, %v5071
      %5073 = vmatmul.f32.gmra.mxu0 %v4901
      %v5074 = vpop.f32.mrf.mxu0
      %v5075 = vadd.f32 %v5046, %v5074
      %5076 = vdwg.mxu0
      %5077 = vmatpush.msra.mxu0 %v4722
      %5078 = vmatpush.msra.mxu0 %v4719
      %5079 = vmatpush.msra.mxu0 %v4716
      %5080 = vmatpush.msra.mxu0 %v4713
      %5081 = vmatpush.msra.mxu0 %v4710
      %5082 = vmatpush.msra.mxu0 %v4707
      %5083 = vmatpush.msra.mxu0 %v4704
      %5084 = vmatpush.msra.mxu0 %v4701
      %5085 = vmatpush.msra.mxu0 %v4698
      %5086 = vmatpush.msra.mxu0 %v4695
      %5087 = vmatpush.msra.mxu0 %v4692
      %5088 = vmatpush.msra.mxu0 %v4689
      %5089 = vmatpush.msra.mxu0 %v4686
      %5090 = vmatpush.msra.mxu0 %v4683
      %5091 = vmatpush.msra.mxu0 %v4680
      %5092 = vmatpush.msra.mxu0 %v4677
      %5093 = vmatmul.f32.gmra.mxu0 %v4062
      %v5094 = vpop.f32.mrf.mxu0
      %v5095 = vadd.f32 %v4378, %v5094
      %5096 = vmatmul.f32.gmra.mxu0 %v4065
      %v5097 = vpop.f32.mrf.mxu0
      %v5098 = vadd.f32 %v4383, %v5097
      %5099 = vmatmul.f32.gmra.mxu0 %v4068
      %v5100 = vpop.f32.mrf.mxu0
      %v5101 = vadd.f32 %v4388, %v5100
      %5102 = vmatmul.f32.gmra.mxu0 %v4071
      %v5103 = vpop.f32.mrf.mxu0
      %v5104 = vadd.f32 %v4393, %v5103
      %5105 = vdwg.mxu0
      %5106 = vmatpush.msra.mxu0 %v4770
      %5107 = vmatpush.msra.mxu0 %v4767
      %5108 = vmatpush.msra.mxu0 %v4764
      %5109 = vmatpush.msra.mxu0 %v4761
      %5110 = vmatpush.msra.mxu0 %v4758
      %5111 = vmatpush.msra.mxu0 %v4755
      %5112 = vmatpush.msra.mxu0 %v4752
      %5113 = vmatpush.msra.mxu0 %v4749
      %5114 = vmatpush.msra.mxu0 %v4746
      %5115 = vmatpush.msra.mxu0 %v4743
      %5116 = vmatpush.msra.mxu0 %v4740
      %5117 = vmatpush.msra.mxu0 %v4737
      %5118 = vmatpush.msra.mxu0 %v4734
      %5119 = vmatpush.msra.mxu0 %v4731
      %5120 = vmatpush.msra.mxu0 %v4728
      %5121 = vmatpush.msra.mxu0 %v4725
      %5122 = vmatmul.f32.gmra.mxu0 %v4063
      %v5123 = vpop.f32.mrf.mxu0
      %v5124 = vadd.f32 %v5095, %v5123
      %5125 = vmatmul.f32.gmra.mxu0 %v4066
      %v5126 = vpop.f32.mrf.mxu0
      %v5127 = vadd.f32 %v5098, %v5126
      %5128 = vmatmul.f32.gmra.mxu0 %v4069
      %v5129 = vpop.f32.mrf.mxu0
      %v5130 = vadd.f32 %v5101, %v5129
      %5131 = vmatmul.f32.gmra.mxu0 %v4072
      %v5132 = vpop.f32.mrf.mxu0
      %v5133 = vadd.f32 %v5104, %v5132
      %5134 = vdwg.mxu0
      %5135 = vmatpush.msra.mxu0 0.0
      %5136 = vmatpush.msra.mxu0 0.0
      %5137 = vmatpush.msra.mxu0 0.0
      %5138 = vmatpush.msra.mxu0 0.0
      %5139 = vmatpush.msra.mxu0 0.0
      %5140 = vmatpush.msra.mxu0 0.0
      %5141 = vmatpush.msra.mxu0 0.0
      %5142 = vmatpush.msra.mxu0 0.0
      %5143 = vmatpush.msra.mxu0 0.0
      %5144 = vmatpush.msra.mxu0 0.0
      %5145 = vmatpush.msra.mxu0 0.0
      %5146 = vmatpush.msra.mxu0 0.0
      %5147 = vmatpush.msra.mxu0 %v4782
      %5148 = vmatpush.msra.mxu0 %v4779
      %5149 = vmatpush.msra.mxu0 %v4776
      %5150 = vmatpush.msra.mxu0 %v4773
      %5151 = vmatmul.f32.gmra.mxu0 %v4892
      %v5152 = vpop.f32.mrf.mxu0
      %v5153 = vadd.f32 %v5124, %v5152
      %5154 = vmatmul.f32.gmra.mxu0 %v4895
      %v5155 = vpop.f32.mrf.mxu0
      %v5156 = vadd.f32 %v5127, %v5155
      %5157 = vmatmul.f32.gmra.mxu0 %v4898
      %v5158 = vpop.f32.mrf.mxu0
      %v5159 = vadd.f32 %v5130, %v5158
      %5160 = vmatmul.f32.gmra.mxu0 %v4901
      %v5161 = vpop.f32.mrf.mxu0
      %v5162 = vadd.f32 %v5133, %v5161
      %5163 = vdwg.mxu0
      %v5164 = vmul.f32 %v4979, %v663
      %v5165 = vmul.f32 %v5066, %v664
      %v5166 = vmul.f32 %v5153, %v665
      %v5167 = vmul.f32 %v4982, %v663
      %v5168 = vmul.f32 %v5069, %v664
      %v5169 = vmul.f32 %v5156, %v665
      %v5170 = vmul.f32 %v4985, %v663
      %v5171 = vmul.f32 %v5072, %v664
      %v5172 = vmul.f32 %v5159, %v665
      %v5173 = vmul.f32 %v4988, %v663
      %v5174 = vmul.f32 %v5075, %v664
      %v5175 = vmul.f32 %v5162, %v665
      %v5176 = vadd.f32 %v5164, %v2922
      %v5177 = vadd.f32 %v5165, %v2923
      %v5178 = vadd.f32 %v5166, %v2924
      %v5179 = vadd.f32 %v5167, %v2925
      %v5180 = vadd.f32 %v5168, %v2926
      %v5181 = vadd.f32 %v5169, %v2927
      %v5182 = vadd.f32 %v5170, %v2928
      %v5183 = vadd.f32 %v5171, %v2929
      %v5184 = vadd.f32 %v5172, %v2930
      %v5185 = vadd.f32 %v5173, %v2931
      %v5186 = vadd.f32 %v5174, %v2932
      %v5187 = vadd.f32 %v5175, %v2933
      %v5188 = vld [vmem:[%s6] sm:$0xff]
      %v5189 = vld [vmem:[%s6 + $0x8] sm:$0xff]
      %v5190 = vld [vmem:[%s6 + $0x10] sm:$0xff]
      %v5191 = vld [vmem:[%s6 + $0x18] sm:$0xff]
      %v5192 = vld [vmem:[%s6 + $0x20] sm:$0xff]
      %v5193 = vld [vmem:[%s6 + $0x28] sm:$0xff]
      %v5194 = vld [vmem:[%s6 + $0x30] sm:$0xff]
      %v5195 = vld [vmem:[%s6 + $0x38] sm:$0xff]
      %v5196 = vld [vmem:[%s6 + $0x40] sm:$0xff]
      %v5197 = vld [vmem:[%s6 + $0x48] sm:$0xff]
      %v5198 = vld [vmem:[%s6 + $0x50] sm:$0xff]
      %v5199 = vld [vmem:[%s6 + $0x58] sm:$0xff]
      %v5200 = vld [vmem:[%s7] sm:$0xff]
      %v5201 = vld [vmem:[%s7 + $0x8] sm:$0xff]
      %v5202 = vld [vmem:[%s7 + $0x10] sm:$0xff]
      %v5203 = vld [vmem:[%s7 + $0x18] sm:$0xff]
      %5216 = vrot.lane.b32.xlu0 %v5176, 127
      %v5217 = vpop.permute.xlu0 %5216
      %5218 = vrot.lane.b32.xlu0 %v5177, 127
      %v5219 = vpop.permute.xlu0 %5218
      %5220 = vrot.lane.b32.xlu0 %v5178, 127
      %v5221 = vpop.permute.xlu0 %5220
      %5222 = vrot.lane.b32.xlu0 %v5179, 127
      %v5223 = vpop.permute.xlu0 %5222
      %5224 = vrot.lane.b32.xlu0 %v5180, 127
      %v5225 = vpop.permute.xlu0 %5224
      %5226 = vrot.lane.b32.xlu0 %v5181, 127
      %v5227 = vpop.permute.xlu0 %5226
      %5228 = vrot.lane.b32.xlu0 %v5182, 127
      %v5229 = vpop.permute.xlu0 %5228
      %5230 = vrot.lane.b32.xlu0 %v5183, 127
      %v5231 = vpop.permute.xlu0 %5230
      %5232 = vrot.lane.b32.xlu0 %v5184, 127
      %v5233 = vpop.permute.xlu0 %5232
      %5234 = vrot.lane.b32.xlu0 %v5185, 127
      %v5235 = vpop.permute.xlu0 %5234
      %5236 = vrot.lane.b32.xlu0 %v5186, 127
      %v5237 = vpop.permute.xlu0 %5236
      %5238 = vrot.lane.b32.xlu0 %v5187, 127
      %v5239 = vpop.permute.xlu0 %5238
      %v5240 = vsel %vm330, %v323, %v5217
      %v5241 = vsel %vm330, %v5217, %v5219
      %v5242 = vsel %vm330, %v5219, %v5221
      %v5243 = vsel %vm330, %v323, %v5223
      %v5244 = vsel %vm330, %v5223, %v5225
      %v5245 = vsel %vm330, %v5225, %v5227
      %v5246 = vsel %vm330, %v323, %v5229
      %v5247 = vsel %vm330, %v5229, %v5231
      %v5248 = vsel %vm330, %v5231, %v5233
      %v5249 = vsel %vm330, %v323, %v5235
      %v5250 = vsel %vm330, %v5235, %v5237
      %v5251 = vsel %vm330, %v5237, %v5239
      %5252 = vrot.lane.b32.xlu0 %v5176, 126
      %v5253 = vpop.permute.xlu0 %5252
      %5254 = vrot.lane.b32.xlu0 %v5177, 126
      %v5255 = vpop.permute.xlu0 %5254
      %5256 = vrot.lane.b32.xlu0 %v5178, 126
      %v5257 = vpop.permute.xlu0 %5256
      %5258 = vrot.lane.b32.xlu0 %v5179, 126
      %v5259 = vpop.permute.xlu0 %5258
      %5260 = vrot.lane.b32.xlu0 %v5180, 126
      %v5261 = vpop.permute.xlu0 %5260
      %5262 = vrot.lane.b32.xlu0 %v5181, 126
      %v5263 = vpop.permute.xlu0 %5262
      %5264 = vrot.lane.b32.xlu0 %v5182, 126
      %v5265 = vpop.permute.xlu0 %5264
      %5266 = vrot.lane.b32.xlu0 %v5183, 126
      %v5267 = vpop.permute.xlu0 %5266
      %5268 = vrot.lane.b32.xlu0 %v5184, 126
      %v5269 = vpop.permute.xlu0 %5268
      %5270 = vrot.lane.b32.xlu0 %v5185, 126
      %v5271 = vpop.permute.xlu0 %5270
      %5272 = vrot.lane.b32.xlu0 %v5186, 126
      %v5273 = vpop.permute.xlu0 %5272
      %5274 = vrot.lane.b32.xlu0 %v5187, 126
      %v5275 = vpop.permute.xlu0 %5274
      %v5276 = vsel %vm342, %v335, %v5253
      %v5277 = vsel %vm342, %v5253, %v5255
      %v5278 = vsel %vm342, %v5255, %v5257
      %v5279 = vsel %vm342, %v335, %v5259
      %v5280 = vsel %vm342, %v5259, %v5261
      %v5281 = vsel %vm342, %v5261, %v5263
      %v5282 = vsel %vm342, %v335, %v5265
      %v5283 = vsel %vm342, %v5265, %v5267
      %v5284 = vsel %vm342, %v5267, %v5269
      %v5285 = vsel %vm342, %v335, %v5271
      %v5286 = vsel %vm342, %v5271, %v5273
      %v5287 = vsel %vm342, %v5273, %v5275
      %5288 = vrot.lane.b32.xlu0 %v5176, 110
      %v5289 = vpop.permute.xlu0 %5288
      %5290 = vrot.lane.b32.xlu0 %v5177, 110
      %v5291 = vpop.permute.xlu0 %5290
      %5292 = vrot.lane.b32.xlu0 %v5178, 110
      %v5293 = vpop.permute.xlu0 %5292
      %5294 = vrot.lane.b32.xlu0 %v5179, 110
      %v5295 = vpop.permute.xlu0 %5294
      %5296 = vrot.lane.b32.xlu0 %v5180, 110
      %v5297 = vpop.permute.xlu0 %5296
      %5298 = vrot.lane.b32.xlu0 %v5181, 110
      %v5299 = vpop.permute.xlu0 %5298
      %5300 = vrot.lane.b32.xlu0 %v5182, 110
      %v5301 = vpop.permute.xlu0 %5300
      %5302 = vrot.lane.b32.xlu0 %v5183, 110
      %v5303 = vpop.permute.xlu0 %5302
      %5304 = vrot.lane.b32.xlu0 %v5184, 110
      %v5305 = vpop.permute.xlu0 %5304
      %5306 = vrot.lane.b32.xlu0 %v5185, 110
      %v5307 = vpop.permute.xlu0 %5306
      %5308 = vrot.lane.b32.xlu0 %v5186, 110
      %v5309 = vpop.permute.xlu0 %5308
      %5310 = vrot.lane.b32.xlu0 %v5187, 110
      %v5311 = vpop.permute.xlu0 %5310
      %v5312 = vsel %vm354, %v347, %v5289
      %v5313 = vsel %vm354, %v5289, %v5291
      %v5314 = vsel %vm354, %v5291, %v5293
      %v5315 = vsel %vm354, %v347, %v5295
      %v5316 = vsel %vm354, %v5295, %v5297
      %v5317 = vsel %vm354, %v5297, %v5299
      %v5318 = vsel %vm354, %v347, %v5301
      %v5319 = vsel %vm354, %v5301, %v5303
      %v5320 = vsel %vm354, %v5303, %v5305
      %v5321 = vsel %vm354, %v347, %v5307
      %v5322 = vsel %vm354, %v5307, %v5309
      %v5323 = vsel %vm354, %v5309, %v5311
      %5324 = vrot.lane.b32.xlu0 %v5176, 109
      %v5325 = vpop.permute.xlu0 %5324
      %5326 = vrot.lane.b32.xlu0 %v5177, 109
      %v5327 = vpop.permute.xlu0 %5326
      %5328 = vrot.lane.b32.xlu0 %v5178, 109
      %v5329 = vpop.permute.xlu0 %5328
      %5330 = vrot.lane.b32.xlu0 %v5179, 109
      %v5331 = vpop.permute.xlu0 %5330
      %5332 = vrot.lane.b32.xlu0 %v5180, 109
      %v5333 = vpop.permute.xlu0 %5332
      %5334 = vrot.lane.b32.xlu0 %v5181, 109
      %v5335 = vpop.permute.xlu0 %5334
      %5336 = vrot.lane.b32.xlu0 %v5182, 109
      %v5337 = vpop.permute.xlu0 %5336
      %5338 = vrot.lane.b32.xlu0 %v5183, 109
      %v5339 = vpop.permute.xlu0 %5338
      %5340 = vrot.lane.b32.xlu0 %v5184, 109
      %v5341 = vpop.permute.xlu0 %5340
      %5342 = vrot.lane.b32.xlu0 %v5185, 109
      %v5343 = vpop.permute.xlu0 %5342
      %5344 = vrot.lane.b32.xlu0 %v5186, 109
      %v5345 = vpop.permute.xlu0 %5344
      %5346 = vrot.lane.b32.xlu0 %v5187, 109
      %v5347 = vpop.permute.xlu0 %5346
      %v5348 = vsel %vm364, %v5325, %v5327
      %v5349 = vsel %vm364, %v5327, %v5329
      %v5350 = vsel %vm364, %v5331, %v5333
      %v5351 = vsel %vm364, %v5333, %v5335
      %v5352 = vsel %vm364, %v5337, %v5339
      %v5353 = vsel %vm364, %v5339, %v5341
      %v5354 = vsel %vm364, %v5343, %v5345
      %v5355 = vsel %vm364, %v5345, %v5347
      %5356 = vrot.lane.b32.xlu0 %v5176, 108
      %v5357 = vpop.permute.xlu0 %5356
      %5358 = vrot.lane.b32.xlu0 %v5177, 108
      %v5359 = vpop.permute.xlu0 %5358
      %5360 = vrot.lane.b32.xlu0 %v5178, 108
      %v5361 = vpop.permute.xlu0 %5360
      %5362 = vrot.lane.b32.xlu0 %v5179, 108
      %v5363 = vpop.permute.xlu0 %5362
      %5364 = vrot.lane.b32.xlu0 %v5180, 108
      %v5365 = vpop.permute.xlu0 %5364
      %5366 = vrot.lane.b32.xlu0 %v5181, 108
      %v5367 = vpop.permute.xlu0 %5366
      %5368 = vrot.lane.b32.xlu0 %v5182, 108
      %v5369 = vpop.permute.xlu0 %5368
      %5370 = vrot.lane.b32.xlu0 %v5183, 108
      %v5371 = vpop.permute.xlu0 %5370
      %5372 = vrot.lane.b32.xlu0 %v5184, 108
      %v5373 = vpop.permute.xlu0 %5372
      %5374 = vrot.lane.b32.xlu0 %v5185, 108
      %v5375 = vpop.permute.xlu0 %5374
      %5376 = vrot.lane.b32.xlu0 %v5186, 108
      %v5377 = vpop.permute.xlu0 %5376
      %5378 = vrot.lane.b32.xlu0 %v5187, 108
      %v5379 = vpop.permute.xlu0 %5378
      %v5380 = vsel %vm375, %v5357, %v5359
      %v5381 = vsel %vm375, %v5359, %v5361
      %v5382 = vsel %vm375, %v5361, %v374
      %v5383 = vsel %vm375, %v5363, %v5365
      %v5384 = vsel %vm375, %v5365, %v5367
      %v5385 = vsel %vm375, %v5367, %v374
      %v5386 = vsel %vm375, %v5369, %v5371
      %v5387 = vsel %vm375, %v5371, %v5373
      %v5388 = vsel %vm375, %v5373, %v374
      %v5389 = vsel %vm375, %v5375, %v5377
      %v5390 = vsel %vm375, %v5377, %v5379
      %v5391 = vsel %vm375, %v5379, %v374
      %5392 = vrot.lane.b32.xlu0 %v5176, 92
      %v5393 = vpop.permute.xlu0 %5392
      %5394 = vrot.lane.b32.xlu0 %v5177, 92
      %v5395 = vpop.permute.xlu0 %5394
      %5396 = vrot.lane.b32.xlu0 %v5178, 92
      %v5397 = vpop.permute.xlu0 %5396
      %5398 = vrot.lane.b32.xlu0 %v5179, 92
      %v5399 = vpop.permute.xlu0 %5398
      %5400 = vrot.lane.b32.xlu0 %v5180, 92
      %v5401 = vpop.permute.xlu0 %5400
      %5402 = vrot.lane.b32.xlu0 %v5181, 92
      %v5403 = vpop.permute.xlu0 %5402
      %5404 = vrot.lane.b32.xlu0 %v5182, 92
      %v5405 = vpop.permute.xlu0 %5404
      %5406 = vrot.lane.b32.xlu0 %v5183, 92
      %v5407 = vpop.permute.xlu0 %5406
      %5408 = vrot.lane.b32.xlu0 %v5184, 92
      %v5409 = vpop.permute.xlu0 %5408
      %5410 = vrot.lane.b32.xlu0 %v5185, 92
      %v5411 = vpop.permute.xlu0 %5410
      %5412 = vrot.lane.b32.xlu0 %v5186, 92
      %v5413 = vpop.permute.xlu0 %5412
      %5414 = vrot.lane.b32.xlu0 %v5187, 92
      %v5415 = vpop.permute.xlu0 %5414
      %v5416 = vsel %vm387, %v5393, %v5395
      %v5417 = vsel %vm387, %v5395, %v5397
      %v5418 = vsel %vm387, %v5397, %v386
      %v5419 = vsel %vm387, %v5399, %v5401
      %v5420 = vsel %vm387, %v5401, %v5403
      %v5421 = vsel %vm387, %v5403, %v386
      %v5422 = vsel %vm387, %v5405, %v5407
      %v5423 = vsel %vm387, %v5407, %v5409
      %v5424 = vsel %vm387, %v5409, %v386
      %v5425 = vsel %vm387, %v5411, %v5413
      %v5426 = vsel %vm387, %v5413, %v5415
      %v5427 = vsel %vm387, %v5415, %v386
      %5428 = vrot.lane.b32.xlu0 %v5176, 91
      %v5429 = vpop.permute.xlu0 %5428
      %5430 = vrot.lane.b32.xlu0 %v5177, 91
      %v5431 = vpop.permute.xlu0 %5430
      %5432 = vrot.lane.b32.xlu0 %v5178, 91
      %v5433 = vpop.permute.xlu0 %5432
      %5434 = vrot.lane.b32.xlu0 %v5179, 91
      %v5435 = vpop.permute.xlu0 %5434
      %5436 = vrot.lane.b32.xlu0 %v5180, 91
      %v5437 = vpop.permute.xlu0 %5436
      %5438 = vrot.lane.b32.xlu0 %v5181, 91
      %v5439 = vpop.permute.xlu0 %5438
      %5440 = vrot.lane.b32.xlu0 %v5182, 91
      %v5441 = vpop.permute.xlu0 %5440
      %5442 = vrot.lane.b32.xlu0 %v5183, 91
      %v5443 = vpop.permute.xlu0 %5442
      %5444 = vrot.lane.b32.xlu0 %v5184, 91
      %v5445 = vpop.permute.xlu0 %5444
      %5446 = vrot.lane.b32.xlu0 %v5185, 91
      %v5447 = vpop.permute.xlu0 %5446
      %5448 = vrot.lane.b32.xlu0 %v5186, 91
      %v5449 = vpop.permute.xlu0 %5448
      %5450 = vrot.lane.b32.xlu0 %v5187, 91
      %v5451 = vpop.permute.xlu0 %5450
      %v5452 = vsel %vm399, %v5429, %v5431
      %v5453 = vsel %vm399, %v5431, %v5433
      %v5454 = vsel %vm399, %v5433, %v398
      %v5455 = vsel %vm399, %v5435, %v5437
      %v5456 = vsel %vm399, %v5437, %v5439
      %v5457 = vsel %vm399, %v5439, %v398
      %v5458 = vsel %vm399, %v5441, %v5443
      %v5459 = vsel %vm399, %v5443, %v5445
      %v5460 = vsel %vm399, %v5445, %v398
      %v5461 = vsel %vm399, %v5447, %v5449
      %v5462 = vsel %vm399, %v5449, %v5451
      %v5463 = vsel %vm399, %v5451, %v398
      %5464 = vrot.lane.b32.xlu0 %v5176, 90
      %v5465 = vpop.permute.xlu0 %5464
      %5466 = vrot.lane.b32.xlu0 %v5177, 90
      %v5467 = vpop.permute.xlu0 %5466
      %5468 = vrot.lane.b32.xlu0 %v5178, 90
      %v5469 = vpop.permute.xlu0 %5468
      %5470 = vrot.lane.b32.xlu0 %v5179, 90
      %v5471 = vpop.permute.xlu0 %5470
      %5472 = vrot.lane.b32.xlu0 %v5180, 90
      %v5473 = vpop.permute.xlu0 %5472
      %5474 = vrot.lane.b32.xlu0 %v5181, 90
      %v5475 = vpop.permute.xlu0 %5474
      %5476 = vrot.lane.b32.xlu0 %v5182, 90
      %v5477 = vpop.permute.xlu0 %5476
      %5478 = vrot.lane.b32.xlu0 %v5183, 90
      %v5479 = vpop.permute.xlu0 %5478
      %5480 = vrot.lane.b32.xlu0 %v5184, 90
      %v5481 = vpop.permute.xlu0 %5480
      %5482 = vrot.lane.b32.xlu0 %v5185, 90
      %v5483 = vpop.permute.xlu0 %5482
      %5484 = vrot.lane.b32.xlu0 %v5186, 90
      %v5485 = vpop.permute.xlu0 %5484
      %5486 = vrot.lane.b32.xlu0 %v5187, 90
      %v5487 = vpop.permute.xlu0 %5486
      %v5488 = vsel %vm411, %v5465, %v5467
      %v5489 = vsel %vm411, %v5467, %v5469
      %v5490 = vsel %vm411, %v5469, %v410
      %v5491 = vsel %vm411, %v5471, %v5473
      %v5492 = vsel %vm411, %v5473, %v5475
      %v5493 = vsel %vm411, %v5475, %v410
      %v5494 = vsel %vm411, %v5477, %v5479
      %v5495 = vsel %vm411, %v5479, %v5481
      %v5496 = vsel %vm411, %v5481, %v410
      %v5497 = vsel %vm411, %v5483, %v5485
      %v5498 = vsel %vm411, %v5485, %v5487
      %v5499 = vsel %vm411, %v5487, %v410
      %5501 = vset.pattern.permute.xlu0 0
      %5502 = vperm.xlu0 %5501, %v5200
      %v5503 = vpop.permute.xlu0 %5502
      %5506 = vset.pattern.permute.xlu0 0
      %5507 = vperm.xlu0 %5506, %v5201
      %v5508 = vpop.permute.xlu0 %5507
      %5511 = vset.pattern.permute.xlu0 0
      %5512 = vperm.xlu0 %5511, %v5202
      %v5513 = vpop.permute.xlu0 %5512
      %5516 = vset.pattern.permute.xlu0 0
      %5517 = vperm.xlu0 %5516, %v5203
      %v5518 = vpop.permute.xlu0 %5517
      %5520 = vrot.lane.b32.xlu0 %v5176, 19
      %v5521 = vpop.permute.xlu0 %5520
      %5522 = vrot.lane.b32.xlu0 %v5177, 19
      %v5523 = vpop.permute.xlu0 %5522
      %5524 = vrot.lane.b32.xlu0 %v5178, 19
      %v5525 = vpop.permute.xlu0 %5524
      %5526 = vrot.lane.b32.xlu0 %v5179, 19
      %v5527 = vpop.permute.xlu0 %5526
      %5528 = vrot.lane.b32.xlu0 %v5180, 19
      %v5529 = vpop.permute.xlu0 %5528
      %5530 = vrot.lane.b32.xlu0 %v5181, 19
      %v5531 = vpop.permute.xlu0 %5530
      %5532 = vrot.lane.b32.xlu0 %v5182, 19
      %v5533 = vpop.permute.xlu0 %5532
      %5534 = vrot.lane.b32.xlu0 %v5183, 19
      %v5535 = vpop.permute.xlu0 %5534
      %5536 = vrot.lane.b32.xlu0 %v5184, 19
      %v5537 = vpop.permute.xlu0 %5536
      %5538 = vrot.lane.b32.xlu0 %v5185, 19
      %v5539 = vpop.permute.xlu0 %5538
      %5540 = vrot.lane.b32.xlu0 %v5186, 19
      %v5541 = vpop.permute.xlu0 %5540
      %5542 = vrot.lane.b32.xlu0 %v5187, 19
      %v5543 = vpop.permute.xlu0 %5542
      %5544 = vrot.lane.b32.xlu0 %v5240, 19
      %v5545 = vpop.permute.xlu0 %5544
      %5546 = vrot.lane.b32.xlu0 %v5241, 19
      %v5547 = vpop.permute.xlu0 %5546
      %5548 = vrot.lane.b32.xlu0 %v5242, 19
      %v5549 = vpop.permute.xlu0 %5548
      %5550 = vrot.lane.b32.xlu0 %v5221, 19
      %v5551 = vpop.permute.xlu0 %5550
      %5552 = vrot.lane.b32.xlu0 %v5243, 19
      %v5553 = vpop.permute.xlu0 %5552
      %5554 = vrot.lane.b32.xlu0 %v5244, 19
      %v5555 = vpop.permute.xlu0 %5554
      %5556 = vrot.lane.b32.xlu0 %v5245, 19
      %v5557 = vpop.permute.xlu0 %5556
      %5558 = vrot.lane.b32.xlu0 %v5227, 19
      %v5559 = vpop.permute.xlu0 %5558
      %5560 = vrot.lane.b32.xlu0 %v5246, 19
      %v5561 = vpop.permute.xlu0 %5560
      %5562 = vrot.lane.b32.xlu0 %v5247, 19
      %v5563 = vpop.permute.xlu0 %5562
      %5564 = vrot.lane.b32.xlu0 %v5248, 19
      %v5565 = vpop.permute.xlu0 %5564
      %5566 = vrot.lane.b32.xlu0 %v5233, 19
      %v5567 = vpop.permute.xlu0 %5566
      %5568 = vrot.lane.b32.xlu0 %v5249, 19
      %v5569 = vpop.permute.xlu0 %5568
      %5570 = vrot.lane.b32.xlu0 %v5250, 19
      %v5571 = vpop.permute.xlu0 %5570
      %5572 = vrot.lane.b32.xlu0 %v5251, 19
      %v5573 = vpop.permute.xlu0 %5572
      %5574 = vrot.lane.b32.xlu0 %v5239, 19
      %v5575 = vpop.permute.xlu0 %5574
      %5576 = vrot.lane.b32.xlu0 %v5276, 19
      %v5577 = vpop.permute.xlu0 %5576
      %5578 = vrot.lane.b32.xlu0 %v5277, 19
      %v5579 = vpop.permute.xlu0 %5578
      %5580 = vrot.lane.b32.xlu0 %v5278, 19
      %v5581 = vpop.permute.xlu0 %5580
      %5582 = vrot.lane.b32.xlu0 %v5257, 19
      %v5583 = vpop.permute.xlu0 %5582
      %5584 = vrot.lane.b32.xlu0 %v5279, 19
      %v5585 = vpop.permute.xlu0 %5584
      %5586 = vrot.lane.b32.xlu0 %v5280, 19
      %v5587 = vpop.permute.xlu0 %5586
      %5588 = vrot.lane.b32.xlu0 %v5281, 19
      %v5589 = vpop.permute.xlu0 %5588
      %5590 = vrot.lane.b32.xlu0 %v5263, 19
      %v5591 = vpop.permute.xlu0 %5590
      %5592 = vrot.lane.b32.xlu0 %v5282, 19
      %v5593 = vpop.permute.xlu0 %5592
      %5594 = vrot.lane.b32.xlu0 %v5283, 19
      %v5595 = vpop.permute.xlu0 %5594
      %5596 = vrot.lane.b32.xlu0 %v5284, 19
      %v5597 = vpop.permute.xlu0 %5596
      %5598 = vrot.lane.b32.xlu0 %v5269, 19
      %v5599 = vpop.permute.xlu0 %5598
      %5600 = vrot.lane.b32.xlu0 %v5285, 19
      %v5601 = vpop.permute.xlu0 %5600
      %5602 = vrot.lane.b32.xlu0 %v5286, 19
      %v5603 = vpop.permute.xlu0 %5602
      %5604 = vrot.lane.b32.xlu0 %v5287, 19
      %v5605 = vpop.permute.xlu0 %5604
      %5606 = vrot.lane.b32.xlu0 %v5275, 19
      %v5607 = vpop.permute.xlu0 %5606
      %5608 = vrot.lane.b32.xlu0 %v5312, 19
      %v5609 = vpop.permute.xlu0 %5608
      %5610 = vrot.lane.b32.xlu0 %v5313, 19
      %v5611 = vpop.permute.xlu0 %5610
      %5612 = vrot.lane.b32.xlu0 %v5314, 19
      %v5613 = vpop.permute.xlu0 %5612
      %5614 = vrot.lane.b32.xlu0 %v5293, 19
      %v5615 = vpop.permute.xlu0 %5614
      %5616 = vrot.lane.b32.xlu0 %v5315, 19
      %v5617 = vpop.permute.xlu0 %5616
      %5618 = vrot.lane.b32.xlu0 %v5316, 19
      %v5619 = vpop.permute.xlu0 %5618
      %5620 = vrot.lane.b32.xlu0 %v5317, 19
      %v5621 = vpop.permute.xlu0 %5620
      %5622 = vrot.lane.b32.xlu0 %v5299, 19
      %v5623 = vpop.permute.xlu0 %5622
      %5624 = vrot.lane.b32.xlu0 %v5318, 19
      %v5625 = vpop.permute.xlu0 %5624
      %5626 = vrot.lane.b32.xlu0 %v5319, 19
      %v5627 = vpop.permute.xlu0 %5626
      %5628 = vrot.lane.b32.xlu0 %v5320, 19
      %v5629 = vpop.permute.xlu0 %5628
      %5630 = vrot.lane.b32.xlu0 %v5305, 19
      %v5631 = vpop.permute.xlu0 %5630
      %5632 = vrot.lane.b32.xlu0 %v5321, 19
      %v5633 = vpop.permute.xlu0 %5632
      %5634 = vrot.lane.b32.xlu0 %v5322, 19
      %v5635 = vpop.permute.xlu0 %5634
      %5636 = vrot.lane.b32.xlu0 %v5323, 19
      %v5637 = vpop.permute.xlu0 %5636
      %5638 = vrot.lane.b32.xlu0 %v5311, 19
      %v5639 = vpop.permute.xlu0 %5638
      %5640 = vrot.lane.b32.xlu0 %v5325, 19
      %v5641 = vpop.permute.xlu0 %5640
      %5642 = vrot.lane.b32.xlu0 %v5348, 19
      %v5643 = vpop.permute.xlu0 %5642
      %5644 = vrot.lane.b32.xlu0 %v5349, 19
      %v5645 = vpop.permute.xlu0 %5644
      %5646 = vrot.lane.b32.xlu0 %v5329, 19
      %v5647 = vpop.permute.xlu0 %5646
      %5648 = vrot.lane.b32.xlu0 %v5331, 19
      %v5649 = vpop.permute.xlu0 %5648
      %5650 = vrot.lane.b32.xlu0 %v5350, 19
      %v5651 = vpop.permute.xlu0 %5650
      %5652 = vrot.lane.b32.xlu0 %v5351, 19
      %v5653 = vpop.permute.xlu0 %5652
      %5654 = vrot.lane.b32.xlu0 %v5335, 19
      %v5655 = vpop.permute.xlu0 %5654
      %5656 = vrot.lane.b32.xlu0 %v5337, 19
      %v5657 = vpop.permute.xlu0 %5656
      %5658 = vrot.lane.b32.xlu0 %v5352, 19
      %v5659 = vpop.permute.xlu0 %5658
      %5660 = vrot.lane.b32.xlu0 %v5353, 19
      %v5661 = vpop.permute.xlu0 %5660
      %5662 = vrot.lane.b32.xlu0 %v5341, 19
      %v5663 = vpop.permute.xlu0 %5662
      %5664 = vrot.lane.b32.xlu0 %v5343, 19
      %v5665 = vpop.permute.xlu0 %5664
      %5666 = vrot.lane.b32.xlu0 %v5354, 19
      %v5667 = vpop.permute.xlu0 %5666
      %5668 = vrot.lane.b32.xlu0 %v5355, 19
      %v5669 = vpop.permute.xlu0 %5668
      %5670 = vrot.lane.b32.xlu0 %v5347, 19
      %v5671 = vpop.permute.xlu0 %5670
      %5672 = vrot.lane.b32.xlu0 %v5357, 19
      %v5673 = vpop.permute.xlu0 %5672
      %5674 = vrot.lane.b32.xlu0 %v5380, 19
      %v5675 = vpop.permute.xlu0 %5674
      %5676 = vrot.lane.b32.xlu0 %v5381, 19
      %v5677 = vpop.permute.xlu0 %5676
      %5678 = vrot.lane.b32.xlu0 %v5382, 19
      %v5679 = vpop.permute.xlu0 %5678
      %5680 = vrot.lane.b32.xlu0 %v5363, 19
      %v5681 = vpop.permute.xlu0 %5680
      %5682 = vrot.lane.b32.xlu0 %v5383, 19
      %v5683 = vpop.permute.xlu0 %5682
      %5684 = vrot.lane.b32.xlu0 %v5384, 19
      %v5685 = vpop.permute.xlu0 %5684
      %5686 = vrot.lane.b32.xlu0 %v5385, 19
      %v5687 = vpop.permute.xlu0 %5686
      %5688 = vrot.lane.b32.xlu0 %v5369, 19
      %v5689 = vpop.permute.xlu0 %5688
      %5690 = vrot.lane.b32.xlu0 %v5386, 19
      %v5691 = vpop.permute.xlu0 %5690
      %5692 = vrot.lane.b32.xlu0 %v5387, 19
      %v5693 = vpop.permute.xlu0 %5692
      %5694 = vrot.lane.b32.xlu0 %v5388, 19
      %v5695 = vpop.permute.xlu0 %5694
      %5696 = vrot.lane.b32.xlu0 %v5375, 19
      %v5697 = vpop.permute.xlu0 %5696
      %5698 = vrot.lane.b32.xlu0 %v5389, 19
      %v5699 = vpop.permute.xlu0 %5698
      %5700 = vrot.lane.b32.xlu0 %v5390, 19
      %v5701 = vpop.permute.xlu0 %5700
      %5702 = vrot.lane.b32.xlu0 %v5391, 19
      %v5703 = vpop.permute.xlu0 %5702
      %5704 = vrot.lane.b32.xlu0 %v5393, 19
      %v5705 = vpop.permute.xlu0 %5704
      %5706 = vrot.lane.b32.xlu0 %v5416, 19
      %v5707 = vpop.permute.xlu0 %5706
      %5708 = vrot.lane.b32.xlu0 %v5417, 19
      %v5709 = vpop.permute.xlu0 %5708
      %5710 = vrot.lane.b32.xlu0 %v5418, 19
      %v5711 = vpop.permute.xlu0 %5710
      %5712 = vrot.lane.b32.xlu0 %v5399, 19
      %v5713 = vpop.permute.xlu0 %5712
      %5714 = vrot.lane.b32.xlu0 %v5419, 19
      %v5715 = vpop.permute.xlu0 %5714
      %5716 = vrot.lane.b32.xlu0 %v5420, 19
      %v5717 = vpop.permute.xlu0 %5716
      %5718 = vrot.lane.b32.xlu0 %v5421, 19
      %v5719 = vpop.permute.xlu0 %5718
      %5720 = vrot.lane.b32.xlu0 %v5405, 19
      %v5721 = vpop.permute.xlu0 %5720
      %5722 = vrot.lane.b32.xlu0 %v5422, 19
      %v5723 = vpop.permute.xlu0 %5722
      %5724 = vrot.lane.b32.xlu0 %v5423, 19
      %v5725 = vpop.permute.xlu0 %5724
      %5726 = vrot.lane.b32.xlu0 %v5424, 19
      %v5727 = vpop.permute.xlu0 %5726
      %5728 = vrot.lane.b32.xlu0 %v5411, 19
      %v5729 = vpop.permute.xlu0 %5728
      %5730 = vrot.lane.b32.xlu0 %v5425, 19
      %v5731 = vpop.permute.xlu0 %5730
      %5732 = vrot.lane.b32.xlu0 %v5426, 19
      %v5733 = vpop.permute.xlu0 %5732
      %5734 = vrot.lane.b32.xlu0 %v5427, 19
      %v5735 = vpop.permute.xlu0 %5734
      %5736 = vrot.lane.b32.xlu0 %v5429, 19
      %v5737 = vpop.permute.xlu0 %5736
      %5738 = vrot.lane.b32.xlu0 %v5452, 19
      %v5739 = vpop.permute.xlu0 %5738
      %5740 = vrot.lane.b32.xlu0 %v5453, 19
      %v5741 = vpop.permute.xlu0 %5740
      %5742 = vrot.lane.b32.xlu0 %v5454, 19
      %v5743 = vpop.permute.xlu0 %5742
      %5744 = vrot.lane.b32.xlu0 %v5435, 19
      %v5745 = vpop.permute.xlu0 %5744
      %5746 = vrot.lane.b32.xlu0 %v5455, 19
      %v5747 = vpop.permute.xlu0 %5746
      %5748 = vrot.lane.b32.xlu0 %v5456, 19
      %v5749 = vpop.permute.xlu0 %5748
      %5750 = vrot.lane.b32.xlu0 %v5457, 19
      %v5751 = vpop.permute.xlu0 %5750
      %5752 = vrot.lane.b32.xlu0 %v5441, 19
      %v5753 = vpop.permute.xlu0 %5752
      %5754 = vrot.lane.b32.xlu0 %v5458, 19
      %v5755 = vpop.permute.xlu0 %5754
      %5756 = vrot.lane.b32.xlu0 %v5459, 19
      %v5757 = vpop.permute.xlu0 %5756
      %5758 = vrot.lane.b32.xlu0 %v5460, 19
      %v5759 = vpop.permute.xlu0 %5758
      %5760 = vrot.lane.b32.xlu0 %v5447, 19
      %v5761 = vpop.permute.xlu0 %5760
      %5762 = vrot.lane.b32.xlu0 %v5461, 19
      %v5763 = vpop.permute.xlu0 %5762
      %5764 = vrot.lane.b32.xlu0 %v5462, 19
      %v5765 = vpop.permute.xlu0 %5764
      %5766 = vrot.lane.b32.xlu0 %v5463, 19
      %v5767 = vpop.permute.xlu0 %5766
      %5768 = vrot.lane.b32.xlu0 %v5465, 19
      %v5769 = vpop.permute.xlu0 %5768
      %5770 = vrot.lane.b32.xlu0 %v5488, 19
      %v5771 = vpop.permute.xlu0 %5770
      %5772 = vrot.lane.b32.xlu0 %v5489, 19
      %v5773 = vpop.permute.xlu0 %5772
      %5774 = vrot.lane.b32.xlu0 %v5490, 19
      %v5775 = vpop.permute.xlu0 %5774
      %5776 = vrot.lane.b32.xlu0 %v5471, 19
      %v5777 = vpop.permute.xlu0 %5776
      %5778 = vrot.lane.b32.xlu0 %v5491, 19
      %v5779 = vpop.permute.xlu0 %5778
      %5780 = vrot.lane.b32.xlu0 %v5492, 19
      %v5781 = vpop.permute.xlu0 %5780
      %5782 = vrot.lane.b32.xlu0 %v5493, 19
      %v5783 = vpop.permute.xlu0 %5782
      %5784 = vrot.lane.b32.xlu0 %v5477, 19
      %v5785 = vpop.permute.xlu0 %5784
      %5786 = vrot.lane.b32.xlu0 %v5494, 19
      %v5787 = vpop.permute.xlu0 %5786
      %5788 = vrot.lane.b32.xlu0 %v5495, 19
      %v5789 = vpop.permute.xlu0 %5788
      %5790 = vrot.lane.b32.xlu0 %v5496, 19
      %v5791 = vpop.permute.xlu0 %5790
      %5792 = vrot.lane.b32.xlu0 %v5483, 19
      %v5793 = vpop.permute.xlu0 %5792
      %5794 = vrot.lane.b32.xlu0 %v5497, 19
      %v5795 = vpop.permute.xlu0 %5794
      %5796 = vrot.lane.b32.xlu0 %v5498, 19
      %v5797 = vpop.permute.xlu0 %5796
      %5798 = vrot.lane.b32.xlu0 %v5499, 19
      %v5799 = vpop.permute.xlu0 %5798
      %v5800 = vsel %vm507, %v436, %v5521
      %v5801 = vsel %vm507, %v5521, %v5523
      %v5802 = vsel %vm507, %v5523, %v5525
      %v5803 = vsel %vm507, %v436, %v5527
      %v5804 = vsel %vm507, %v5527, %v5529
      %v5805 = vsel %vm507, %v5529, %v5531
      %v5806 = vsel %vm507, %v436, %v5533
      %v5807 = vsel %vm507, %v5533, %v5535
      %v5808 = vsel %vm507, %v5535, %v5537
      %v5809 = vsel %vm507, %v436, %v5539
      %v5810 = vsel %vm507, %v5539, %v5541
      %v5811 = vsel %vm507, %v5541, %v5543
      %v5812 = vsel %vm507, %v5545, %v5547
      %v5813 = vsel %vm507, %v5547, %v5549
      %v5814 = vsel %vm507, %v5549, %v5551
      %v5815 = vsel %vm507, %v5553, %v5555
      %v5816 = vsel %vm507, %v5555, %v5557
      %v5817 = vsel %vm507, %v5557, %v5559
      %v5818 = vsel %vm507, %v5561, %v5563
      %v5819 = vsel %vm507, %v5563, %v5565
      %v5820 = vsel %vm507, %v5565, %v5567
      %v5821 = vsel %vm507, %v5569, %v5571
      %v5822 = vsel %vm507, %v5571, %v5573
      %v5823 = vsel %vm507, %v5573, %v5575
      %v5824 = vsel %vm507, %v5577, %v5579
      %v5825 = vsel %vm507, %v5579, %v5581
      %v5826 = vsel %vm507, %v5581, %v5583
      %v5827 = vsel %vm507, %v5585, %v5587
      %v5828 = vsel %vm507, %v5587, %v5589
      %v5829 = vsel %vm507, %v5589, %v5591
      %v5830 = vsel %vm507, %v5593, %v5595
      %v5831 = vsel %vm507, %v5595, %v5597
      %v5832 = vsel %vm507, %v5597, %v5599
      %v5833 = vsel %vm507, %v5601, %v5603
      %v5834 = vsel %vm507, %v5603, %v5605
      %v5835 = vsel %vm507, %v5605, %v5607
      %v5836 = vsel %vm507, %v5609, %v5611
      %v5837 = vsel %vm507, %v5611, %v5613
      %v5838 = vsel %vm507, %v5613, %v5615
      %v5839 = vsel %vm507, %v5617, %v5619
      %v5840 = vsel %vm507, %v5619, %v5621
      %v5841 = vsel %vm507, %v5621, %v5623
      %v5842 = vsel %vm507, %v5625, %v5627
      %v5843 = vsel %vm507, %v5627, %v5629
      %v5844 = vsel %vm507, %v5629, %v5631
      %v5845 = vsel %vm507, %v5633, %v5635
      %v5846 = vsel %vm507, %v5635, %v5637
      %v5847 = vsel %vm507, %v5637, %v5639
      %v5848 = vsel %vm507, %v5641, %v5643
      %v5849 = vsel %vm507, %v5643, %v5645
      %v5850 = vsel %vm507, %v5645, %v5647
      %v5851 = vsel %vm507, %v5649, %v5651
      %v5852 = vsel %vm507, %v5651, %v5653
      %v5853 = vsel %vm507, %v5653, %v5655
      %v5854 = vsel %vm507, %v5657, %v5659
      %v5855 = vsel %vm507, %v5659, %v5661
      %v5856 = vsel %vm507, %v5661, %v5663
      %v5857 = vsel %vm507, %v5665, %v5667
      %v5858 = vsel %vm507, %v5667, %v5669
      %v5859 = vsel %vm507, %v5669, %v5671
      %v5860 = vsel %vm507, %v5673, %v5675
      %v5861 = vsel %vm507, %v5675, %v5677
      %v5862 = vsel %vm507, %v5677, %v5679
      %v5863 = vsel %vm507, %v5681, %v5683
      %v5864 = vsel %vm507, %v5683, %v5685
      %v5865 = vsel %vm507, %v5685, %v5687
      %v5866 = vsel %vm507, %v5689, %v5691
      %v5867 = vsel %vm507, %v5691, %v5693
      %v5868 = vsel %vm507, %v5693, %v5695
      %v5869 = vsel %vm507, %v5697, %v5699
      %v5870 = vsel %vm507, %v5699, %v5701
      %v5871 = vsel %vm507, %v5701, %v5703
      %v5872 = vsel %vm507, %v5705, %v5707
      %v5873 = vsel %vm507, %v5707, %v5709
      %v5874 = vsel %vm507, %v5709, %v5711
      %v5875 = vsel %vm507, %v5713, %v5715
      %v5876 = vsel %vm507, %v5715, %v5717
      %v5877 = vsel %vm507, %v5717, %v5719
      %v5878 = vsel %vm507, %v5721, %v5723
      %v5879 = vsel %vm507, %v5723, %v5725
      %v5880 = vsel %vm507, %v5725, %v5727
      %v5881 = vsel %vm507, %v5729, %v5731
      %v5882 = vsel %vm507, %v5731, %v5733
      %v5883 = vsel %vm507, %v5733, %v5735
      %v5884 = vsel %vm507, %v5737, %v5739
      %v5885 = vsel %vm507, %v5739, %v5741
      %v5886 = vsel %vm507, %v5741, %v5743
      %v5887 = vsel %vm507, %v5745, %v5747
      %v5888 = vsel %vm507, %v5747, %v5749
      %v5889 = vsel %vm507, %v5749, %v5751
      %v5890 = vsel %vm507, %v5753, %v5755
      %v5891 = vsel %vm507, %v5755, %v5757
      %v5892 = vsel %vm507, %v5757, %v5759
      %v5893 = vsel %vm507, %v5761, %v5763
      %v5894 = vsel %vm507, %v5763, %v5765
      %v5895 = vsel %vm507, %v5765, %v5767
      %v5896 = vsel %vm507, %v5769, %v5771
      %v5897 = vsel %vm507, %v5771, %v5773
      %v5898 = vsel %vm507, %v5773, %v5775
      %v5899 = vsel %vm507, %v5777, %v5779
      %v5900 = vsel %vm507, %v5779, %v5781
      %v5901 = vsel %vm507, %v5781, %v5783
      %v5902 = vsel %vm507, %v5785, %v5787
      %v5903 = vsel %vm507, %v5787, %v5789
      %v5904 = vsel %vm507, %v5789, %v5791
      %v5905 = vsel %vm507, %v5793, %v5795
      %v5906 = vsel %vm507, %v5795, %v5797
      %v5907 = vsel %vm507, %v5797, %v5799
      %v6017 = vsel %vm1509, %v5190, 0
      %v6020 = vsel %vm1509, %v5193, 0
      %v6023 = vsel %vm1509, %v5196, 0
      %v6026 = vsel %vm1509, %v5199, 0
      %6028 = vmatpush.msra.mxu0 %v5845
      %6029 = vmatpush.msra.mxu0 %v5842
      %6030 = vmatpush.msra.mxu0 %v5839
      %6031 = vmatpush.msra.mxu0 %v5836
      %6032 = vmatpush.msra.mxu0 %v5833
      %6033 = vmatpush.msra.mxu0 %v5830
      %6034 = vmatpush.msra.mxu0 %v5827
      %6035 = vmatpush.msra.mxu0 %v5824
      %6036 = vmatpush.msra.mxu0 %v5821
      %6037 = vmatpush.msra.mxu0 %v5818
      %6038 = vmatpush.msra.mxu0 %v5815
      %6039 = vmatpush.msra.mxu0 %v5812
      %6040 = vmatpush.msra.mxu0 %v5809
      %6041 = vmatpush.msra.mxu0 %v5806
      %6042 = vmatpush.msra.mxu0 %v5803
      %6043 = vmatpush.msra.mxu0 %v5800
      %6044 = vmatmul.f32.gmra.mxu0 %v5188
      %v6045 = vpop.f32.mrf.mxu0
      %v6046 = vadd.f32 %v5503, %v6045
      %6047 = vmatmul.f32.gmra.mxu0 %v5191
      %v6048 = vpop.f32.mrf.mxu0
      %v6049 = vadd.f32 %v5508, %v6048
      %6050 = vmatmul.f32.gmra.mxu0 %v5194
      %v6051 = vpop.f32.mrf.mxu0
      %v6052 = vadd.f32 %v5513, %v6051
      %6053 = vmatmul.f32.gmra.mxu0 %v5197
      %v6054 = vpop.f32.mrf.mxu0
      %v6055 = vadd.f32 %v5518, %v6054
      %6056 = vdwg.mxu0
      %6057 = vmatpush.msra.mxu0 %v5893
      %6058 = vmatpush.msra.mxu0 %v5890
      %6059 = vmatpush.msra.mxu0 %v5887
      %6060 = vmatpush.msra.mxu0 %v5884
      %6061 = vmatpush.msra.mxu0 %v5881
      %6062 = vmatpush.msra.mxu0 %v5878
      %6063 = vmatpush.msra.mxu0 %v5875
      %6064 = vmatpush.msra.mxu0 %v5872
      %6065 = vmatpush.msra.mxu0 %v5869
      %6066 = vmatpush.msra.mxu0 %v5866
      %6067 = vmatpush.msra.mxu0 %v5863
      %6068 = vmatpush.msra.mxu0 %v5860
      %6069 = vmatpush.msra.mxu0 %v5857
      %6070 = vmatpush.msra.mxu0 %v5854
      %6071 = vmatpush.msra.mxu0 %v5851
      %6072 = vmatpush.msra.mxu0 %v5848
      %6073 = vmatmul.f32.gmra.mxu0 %v5189
      %v6074 = vpop.f32.mrf.mxu0
      %v6075 = vadd.f32 %v6046, %v6074
      %6076 = vmatmul.f32.gmra.mxu0 %v5192
      %v6077 = vpop.f32.mrf.mxu0
      %v6078 = vadd.f32 %v6049, %v6077
      %6079 = vmatmul.f32.gmra.mxu0 %v5195
      %v6080 = vpop.f32.mrf.mxu0
      %v6081 = vadd.f32 %v6052, %v6080
      %6082 = vmatmul.f32.gmra.mxu0 %v5198
      %v6083 = vpop.f32.mrf.mxu0
      %v6084 = vadd.f32 %v6055, %v6083
      %6085 = vdwg.mxu0
      %6086 = vmatpush.msra.mxu0 0.0
      %6087 = vmatpush.msra.mxu0 0.0
      %6088 = vmatpush.msra.mxu0 0.0
      %6089 = vmatpush.msra.mxu0 0.0
      %6090 = vmatpush.msra.mxu0 0.0
      %6091 = vmatpush.msra.mxu0 0.0
      %6092 = vmatpush.msra.mxu0 0.0
      %6093 = vmatpush.msra.mxu0 0.0
      %6094 = vmatpush.msra.mxu0 0.0
      %6095 = vmatpush.msra.mxu0 0.0
      %6096 = vmatpush.msra.mxu0 0.0
      %6097 = vmatpush.msra.mxu0 0.0
      %6098 = vmatpush.msra.mxu0 %v5905
      %6099 = vmatpush.msra.mxu0 %v5902
      %6100 = vmatpush.msra.mxu0 %v5899
      %6101 = vmatpush.msra.mxu0 %v5896
      %6102 = vmatmul.f32.gmra.mxu0 %v6017
      %v6103 = vpop.f32.mrf.mxu0
      %v6104 = vadd.f32 %v6075, %v6103
      %6105 = vmatmul.f32.gmra.mxu0 %v6020
      %v6106 = vpop.f32.mrf.mxu0
      %v6107 = vadd.f32 %v6078, %v6106
      %6108 = vmatmul.f32.gmra.mxu0 %v6023
      %v6109 = vpop.f32.mrf.mxu0
      %v6110 = vadd.f32 %v6081, %v6109
      %6111 = vmatmul.f32.gmra.mxu0 %v6026
      %v6112 = vpop.f32.mrf.mxu0
      %v6113 = vadd.f32 %v6084, %v6112
      %6114 = vdwg.mxu0
      %6115 = vmatpush.msra.mxu0 %v5846
      %6116 = vmatpush.msra.mxu0 %v5843
      %6117 = vmatpush.msra.mxu0 %v5840
      %6118 = vmatpush.msra.mxu0 %v5837
      %6119 = vmatpush.msra.mxu0 %v5834
      %6120 = vmatpush.msra.mxu0 %v5831
      %6121 = vmatpush.msra.mxu0 %v5828
      %6122 = vmatpush.msra.mxu0 %v5825
      %6123 = vmatpush.msra.mxu0 %v5822
      %6124 = vmatpush.msra.mxu0 %v5819
      %6125 = vmatpush.msra.mxu0 %v5816
      %6126 = vmatpush.msra.mxu0 %v5813
      %6127 = vmatpush.msra.mxu0 %v5810
      %6128 = vmatpush.msra.mxu0 %v5807
      %6129 = vmatpush.msra.mxu0 %v5804
      %6130 = vmatpush.msra.mxu0 %v5801
      %6131 = vmatmul.f32.gmra.mxu0 %v5188
      %v6132 = vpop.f32.mrf.mxu0
      %v6133 = vadd.f32 %v5503, %v6132
      %6134 = vmatmul.f32.gmra.mxu0 %v5191
      %v6135 = vpop.f32.mrf.mxu0
      %v6136 = vadd.f32 %v5508, %v6135
      %6137 = vmatmul.f32.gmra.mxu0 %v5194
      %v6138 = vpop.f32.mrf.mxu0
      %v6139 = vadd.f32 %v5513, %v6138
      %6140 = vmatmul.f32.gmra.mxu0 %v5197
      %v6141 = vpop.f32.mrf.mxu0
      %v6142 = vadd.f32 %v5518, %v6141
      %6143 = vdwg.mxu0
      %6144 = vmatpush.msra.mxu0 %v5894
      %6145 = vmatpush.msra.mxu0 %v5891
      %6146 = vmatpush.msra.mxu0 %v5888
      %6147 = vmatpush.msra.mxu0 %v5885
      %6148 = vmatpush.msra.mxu0 %v5882
      %6149 = vmatpush.msra.mxu0 %v5879
      %6150 = vmatpush.msra.mxu0 %v5876
      %6151 = vmatpush.msra.mxu0 %v5873
      %6152 = vmatpush.msra.mxu0 %v5870
      %6153 = vmatpush.msra.mxu0 %v5867
      %6154 = vmatpush.msra.mxu0 %v5864
      %6155 = vmatpush.msra.mxu0 %v5861
      %6156 = vmatpush.msra.mxu0 %v5858
      %6157 = vmatpush.msra.mxu0 %v5855
      %6158 = vmatpush.msra.mxu0 %v5852
      %6159 = vmatpush.msra.mxu0 %v5849
      %6160 = vmatmul.f32.gmra.mxu0 %v5189
      %v6161 = vpop.f32.mrf.mxu0
      %v6162 = vadd.f32 %v6133, %v6161
      %6163 = vmatmul.f32.gmra.mxu0 %v5192
      %v6164 = vpop.f32.mrf.mxu0
      %v6165 = vadd.f32 %v6136, %v6164
      %6166 = vmatmul.f32.gmra.mxu0 %v5195
      %v6167 = vpop.f32.mrf.mxu0
      %v6168 = vadd.f32 %v6139, %v6167
      %6169 = vmatmul.f32.gmra.mxu0 %v5198
      %v6170 = vpop.f32.mrf.mxu0
      %v6171 = vadd.f32 %v6142, %v6170
      %6172 = vdwg.mxu0
      %6173 = vmatpush.msra.mxu0 0.0
      %6174 = vmatpush.msra.mxu0 0.0
      %6175 = vmatpush.msra.mxu0 0.0
      %6176 = vmatpush.msra.mxu0 0.0
      %6177 = vmatpush.msra.mxu0 0.0
      %6178 = vmatpush.msra.mxu0 0.0
      %6179 = vmatpush.msra.mxu0 0.0
      %6180 = vmatpush.msra.mxu0 0.0
      %6181 = vmatpush.msra.mxu0 0.0
      %6182 = vmatpush.msra.mxu0 0.0
      %6183 = vmatpush.msra.mxu0 0.0
      %6184 = vmatpush.msra.mxu0 0.0
      %6185 = vmatpush.msra.mxu0 %v5906
      %6186 = vmatpush.msra.mxu0 %v5903
      %6187 = vmatpush.msra.mxu0 %v5900
      %6188 = vmatpush.msra.mxu0 %v5897
      %6189 = vmatmul.f32.gmra.mxu0 %v6017
      %v6190 = vpop.f32.mrf.mxu0
      %v6191 = vadd.f32 %v6162, %v6190
      %6192 = vmatmul.f32.gmra.mxu0 %v6020
      %v6193 = vpop.f32.mrf.mxu0
      %v6194 = vadd.f32 %v6165, %v6193
      %6195 = vmatmul.f32.gmra.mxu0 %v6023
      %v6196 = vpop.f32.mrf.mxu0
      %v6197 = vadd.f32 %v6168, %v6196
      %6198 = vmatmul.f32.gmra.mxu0 %v6026
      %v6199 = vpop.f32.mrf.mxu0
      %v6200 = vadd.f32 %v6171, %v6199
      %6201 = vdwg.mxu0
      %6202 = vmatpush.msra.mxu0 %v5847
      %6203 = vmatpush.msra.mxu0 %v5844
      %6204 = vmatpush.msra.mxu0 %v5841
      %6205 = vmatpush.msra.mxu0 %v5838
      %6206 = vmatpush.msra.mxu0 %v5835
      %6207 = vmatpush.msra.mxu0 %v5832
      %6208 = vmatpush.msra.mxu0 %v5829
      %6209 = vmatpush.msra.mxu0 %v5826
      %6210 = vmatpush.msra.mxu0 %v5823
      %6211 = vmatpush.msra.mxu0 %v5820
      %6212 = vmatpush.msra.mxu0 %v5817
      %6213 = vmatpush.msra.mxu0 %v5814
      %6214 = vmatpush.msra.mxu0 %v5811
      %6215 = vmatpush.msra.mxu0 %v5808
      %6216 = vmatpush.msra.mxu0 %v5805
      %6217 = vmatpush.msra.mxu0 %v5802
      %6218 = vmatmul.f32.gmra.mxu0 %v5188
      %v6219 = vpop.f32.mrf.mxu0
      %v6220 = vadd.f32 %v5503, %v6219
      %6221 = vmatmul.f32.gmra.mxu0 %v5191
      %v6222 = vpop.f32.mrf.mxu0
      %v6223 = vadd.f32 %v5508, %v6222
      %6224 = vmatmul.f32.gmra.mxu0 %v5194
      %v6225 = vpop.f32.mrf.mxu0
      %v6226 = vadd.f32 %v5513, %v6225
      %6227 = vmatmul.f32.gmra.mxu0 %v5197
      %v6228 = vpop.f32.mrf.mxu0
      %v6229 = vadd.f32 %v5518, %v6228
      %6230 = vdwg.mxu0
      %6231 = vmatpush.msra.mxu0 %v5895
      %6232 = vmatpush.msra.mxu0 %v5892
      %6233 = vmatpush.msra.mxu0 %v5889
      %6234 = vmatpush.msra.mxu0 %v5886
      %6235 = vmatpush.msra.mxu0 %v5883
      %6236 = vmatpush.msra.mxu0 %v5880
      %6237 = vmatpush.msra.mxu0 %v5877
      %6238 = vmatpush.msra.mxu0 %v5874
      %6239 = vmatpush.msra.mxu0 %v5871
      %6240 = vmatpush.msra.mxu0 %v5868
      %6241 = vmatpush.msra.mxu0 %v5865
      %6242 = vmatpush.msra.mxu0 %v5862
      %6243 = vmatpush.msra.mxu0 %v5859
      %6244 = vmatpush.msra.mxu0 %v5856
      %6245 = vmatpush.msra.mxu0 %v5853
      %6246 = vmatpush.msra.mxu0 %v5850
      %6247 = vmatmul.f32.gmra.mxu0 %v5189
      %v6248 = vpop.f32.mrf.mxu0
      %v6249 = vadd.f32 %v6220, %v6248
      %6250 = vmatmul.f32.gmra.mxu0 %v5192
      %v6251 = vpop.f32.mrf.mxu0
      %v6252 = vadd.f32 %v6223, %v6251
      %6253 = vmatmul.f32.gmra.mxu0 %v5195
      %v6254 = vpop.f32.mrf.mxu0
      %v6255 = vadd.f32 %v6226, %v6254
      %6256 = vmatmul.f32.gmra.mxu0 %v5198
      %v6257 = vpop.f32.mrf.mxu0
      %v6258 = vadd.f32 %v6229, %v6257
      %6259 = vdwg.mxu0
      %6260 = vmatpush.msra.mxu0 0.0
      %6261 = vmatpush.msra.mxu0 0.0
      %6262 = vmatpush.msra.mxu0 0.0
      %6263 = vmatpush.msra.mxu0 0.0
      %6264 = vmatpush.msra.mxu0 0.0
      %6265 = vmatpush.msra.mxu0 0.0
      %6266 = vmatpush.msra.mxu0 0.0
      %6267 = vmatpush.msra.mxu0 0.0
      %6268 = vmatpush.msra.mxu0 0.0
      %6269 = vmatpush.msra.mxu0 0.0
      %6270 = vmatpush.msra.mxu0 0.0
      %6271 = vmatpush.msra.mxu0 0.0
      %6272 = vmatpush.msra.mxu0 %v5907
      %6273 = vmatpush.msra.mxu0 %v5904
      %6274 = vmatpush.msra.mxu0 %v5901
      %6275 = vmatpush.msra.mxu0 %v5898
      %6276 = vmatmul.f32.gmra.mxu0 %v6017
      %v6277 = vpop.f32.mrf.mxu0
      %v6278 = vadd.f32 %v6249, %v6277
      %6279 = vmatmul.f32.gmra.mxu0 %v6020
      %v6280 = vpop.f32.mrf.mxu0
      %v6281 = vadd.f32 %v6252, %v6280
      %6282 = vmatmul.f32.gmra.mxu0 %v6023
      %v6283 = vpop.f32.mrf.mxu0
      %v6284 = vadd.f32 %v6255, %v6283
      %6285 = vmatmul.f32.gmra.mxu0 %v6026
      %v6286 = vpop.f32.mrf.mxu0
      %v6287 = vadd.f32 %v6258, %v6286
      %6288 = vdwg.mxu0
      %v6289 = vmul.f32 %v6104, %v663
      %v6290 = vmul.f32 %v6191, %v664
      %v6291 = vmul.f32 %v6278, %v665
      %v6292 = vmul.f32 %v6107, %v663
      %v6293 = vmul.f32 %v6194, %v664
      %v6294 = vmul.f32 %v6281, %v665
      %v6295 = vmul.f32 %v6110, %v663
      %v6296 = vmul.f32 %v6197, %v664
      %v6297 = vmul.f32 %v6284, %v665
      %v6298 = vmul.f32 %v6113, %v663
      %v6299 = vmul.f32 %v6200, %v664
      %v6300 = vmul.f32 %v6287, %v665
      %v6301 = vadd.f32 %v6289, %v669
      %v6302 = vadd.f32 %v6290, %v670
      %v6303 = vadd.f32 %v6291, %v671
      %v6304 = vadd.f32 %v6292, %v672
      %v6305 = vadd.f32 %v6293, %v673
      %v6306 = vadd.f32 %v6294, %v674
      %v6307 = vadd.f32 %v6295, %v675
      %v6308 = vadd.f32 %v6296, %v676
      %v6309 = vadd.f32 %v6297, %v677
      %v6310 = vadd.f32 %v6298, %v678
      %v6311 = vadd.f32 %v6299, %v679
      %v6312 = vadd.f32 %v6300, %v680
      %6313 = vst [vmem:[%s305] sm:$0xff] %v6301
      %6314 = vst [vmem:[%s305 + $0x8] sm:$0xff] %v6302
      %6315 = vst [vmem:[%s305 + $0x10] sm:$0xff] %v6303
      %6316 = vst [vmem:[%s305 + $0x18] sm:$0xff] %v6304
      %6317 = vst [vmem:[%s305 + $0x20] sm:$0xff] %v6305
      %6318 = vst [vmem:[%s305 + $0x28] sm:$0xff] %v6306
      %6319 = vst [vmem:[%s305 + $0x30] sm:$0xff] %v6307
      %6320 = vst [vmem:[%s305 + $0x38] sm:$0xff] %v6308
      %6321 = vst [vmem:[%s305 + $0x40] sm:$0xff] %v6309
      %6322 = vst [vmem:[%s305 + $0x48] sm:$0xff] %v6310
      %6323 = vst [vmem:[%s305 + $0x50] sm:$0xff] %v6311
      %6324 = vst [vmem:[%s305 + $0x58] sm:$0xff] %v6312
      %p6325 = scmp.lt.s32.totalorder %s19, 1
      %s6326 = scalar_select %p6325, %s19, 1
      %s6327 = smul.addr %s6326, 12
      %s6328 = smul.addr %s6327, 8
      %s6329 = scalar_lea.vmem %s8, %s6328
      // Predicated region
      $region53: #{edsr_forward.1} parent=51 // pred_check
        %p6330 = pneg %p210
      $region54: #{edsr_forward.1} parent=51 // pred_check_branch
        %6332 = sbr.rel (%p6330) target = $region56
      $region55: #{edsr_forward.1} parent=51 // pred_region
        _
      $region56: #{edsr_forward.1} parent=51 // pred_fallthru
        _
    $region52: #{edsr_forward.1} parent=5 // pred_fallthru
      _
    %p6333 = scmp.le.s32.totalorder 2, %s14
    // Predicated region
    $region57: #{edsr_forward.1} parent=5 // pred_check
      %p6334 = pneg %p6333
    $region58: #{edsr_forward.1} parent=5 // pred_check_branch
      %6336 = sbr.rel (%p6334) target = $region60
    $region59: #{edsr_forward.1} parent=5 // pred_region
      %s6337 = ssub.s32 %s14, 2
      // Predicated region
      $region61: #{edsr_forward.1} parent=59 // pred_check
        %p6338 = pneg %p216
      $region62: #{edsr_forward.1} parent=59 // pred_check_branch
        %6340 = sbr.rel (%p6338) target = $region64
      $region63: #{edsr_forward.1} parent=59 // pred_region
        %p6341 = scmp.lt.s32.totalorder %s20, 1
        %s6342 = scalar_select %p6341, %s20, 1
        %s6343 = smul.addr %s6342, 12
        %s6344 = smul.addr %s6343, 8
        %s6345 = scalar_lea.vmem %s8, %s6344
      $region64: #{edsr_forward.1} parent=59 // pred_fallthru
        _
    $region60: #{edsr_forward.1} parent=5 // pred_fallthru
      _
  $region6: #{edsr_forward.1} parent=0 // loop_footer
    %s18 = sadd.s32 1, %s14
  $region7: #{edsr_forward.1} parent=0 // loop_footer_branch
    %13 = sbr.rel target = $region3
  $region8: #{edsr_forward.1} parent=0 // loop_exit
    _

</llo_original>
